<compile_context>
chip_gen: v7x
topology: tpu7x:2x2x1
jax: 0.10.0
libtpu: 0.0.40
codegen_flags: <defaults>
</compile_context>

<pallas_src>
import functools

import jax
import jax.numpy as jnp
import numpy as np
from jax.experimental import pallas as pl
from jax.experimental.pallas import tpu as pltpu

EPS = 1e-5

# Constant ordering shared by the call wrapper and the kernels.
_BASE_CONST_ORDER = ("shift", "wdwt", "s2t", "b2t", "w1", "w2", "bse", "gt",
                     "g", "wblk", "s3t", "b3t")
_EXPAND_CONST_ORDER = ("wb", "s1t", "b1t") + _BASE_CONST_ORDER


# ---------------------------------------------------------------------------
# Shared in-kernel tail: depthwise conv + BN + SiLU + SE + 1x1 proj + BN.
# Everything stays in the packed "rows x (W*C)" layout: every store is
# lane-dense and every channel-mixing op runs on the MXU.
# ---------------------------------------------------------------------------
def _dw_se_project(zb, shift_ref, wdwt_ref, s2_ref, b2_ref, w1_ref, w2_ref,
                   bse_ref, gt_ref, g_ref, wblk_ref, s3_ref, b3_ref, o_ref,
                   *, ksize, col_off):
    f32, bf16 = jnp.float32, jnp.bfloat16
    Ho = o_ref.shape[0]
    WoH, hidden = g_ref.shape
    Wo = WoH // hidden

    # Depthwise KxK conv on the VPU: the kh shift / row stride / vertical halo
    # are folded into tiny 0/1 row-shift matrices (MXU, otherwise idle); the
    # kw shifts are static lane windows; per-tap channel weights are a
    # (1, Wo*hidden) broadcast multiply with f32 accumulation.
    acc = jnp.zeros((Ho, WoH), f32)
    for kh in range(ksize):
        rows = jnp.dot(shift_ref[kh], zb, preferred_element_type=f32)
        for kw in range(ksize):
            t = kh * ksize + kw
            tap = rows[:, col_off[kw]:col_off[kw] + WoH]
            acc = acc + tap * wdwt_ref[t:t + 1, :]

    z = acc * s2_ref[...] + b2_ref[...]                       # folded BN2 (+bias)
    z = z * jax.nn.sigmoid(z)                                 # SiLU (f32)

    # Squeeze-and-Excitation.  Global average pool on the MXU: a ones-row
    # matmul reduces the Ho rows, G (tiled identity) reduces the Wo groups.
    zb2 = z.astype(bf16)
    col_sum = jnp.dot(jnp.ones((1, Ho), bf16), zb2,
                      preferred_element_type=f32)             # (1, Wo*hidden)
    pooled = jnp.dot(col_sum.astype(bf16), g_ref[...],
                     preferred_element_type=f32) * (1.0 / (Ho * Wo))
    s = jnp.dot(pooled.astype(bf16), w1_ref[...],
                preferred_element_type=f32)                   # (1, Sq)
    s = s * jax.nn.sigmoid(s)                                 # SiLU
    s = jnp.dot(s.astype(bf16), w2_ref[...],
                preferred_element_type=f32) + bse_ref[...]
    s = jax.nn.sigmoid(s)                                     # (1, hidden) gate
    s_tiled = jnp.dot(s.astype(bf16), gt_ref[...],
                      preferred_element_type=f32)             # (1, Wo*hidden)
    zg = z * s_tiled                                          # channel gating

    # 1x1 projection as block-diagonal kron(I_Wo, W_pw): stays in the packed
    # layout and yields a lane-dense (Ho, Wo*Cout) tile; then folded BN3.
    # TODO(synk): for hidden >= 128, switch to a (Ho*Wo, hidden) flat matmul.
    out = jnp.dot(zg.astype(bf16), wblk_ref[...],
                  preferred_element_type=f32)                 # (Ho, Wo*Cout)
    out = out * s3_ref[...] + b3_ref[...]
    o_ref[...] = out.astype(o_ref.dtype)


def _irb_expand_kernel(xp_ref, wb_ref, s1_ref, b1_ref, shift_ref, wdwt_ref,
                       s2_ref, b2_ref, w1_ref, w2_ref, bse_ref, gt_ref, g_ref,
                       wblk_ref, s3_ref, b3_ref, o_ref, *, ksize, col_off):
    # xp_ref : (H+2, W*Cin) bf16 input, vertically padded for the 3x3 expand.
    # wb_ref : (3*W*Cin, Wz*hidden) banded expansion weights (kw shifts +
    #          zero horizontal-halo columns folded into the output columns).
    f32, bf16 = jnp.float32, jnp.bfloat16
    H = shift_ref.shape[2]

    # 3x3 expansion conv as ONE im2col matmul: the 3 shifted row views are
    # concatenated along K (lane-aligned 128-wide pieces), no per-tap adds.
    rows = jnp.concatenate([xp_ref[kh:kh + H, :] for kh in range(3)], axis=-1)
    acc = jnp.dot(rows, wb_ref[...], preferred_element_type=f32)
    z = acc * s1_ref[...] + b1_ref[...]         # folded BN1 (+bias); halo cols
    z = z * jax.nn.sigmoid(z)                   # stay exactly 0 (SiLU(0)=0)

    # The expanded activation never leaves registers/VMEM (no HBM round trip);
    # it is rounded to bf16 exactly once, as the depthwise/MXU operand.
    _dw_se_project(z.astype(bf16), shift_ref, wdwt_ref, s2_ref, b2_ref, w1_ref,
                   w2_ref, bse_ref, gt_ref, g_ref, wblk_ref, s3_ref, b3_ref,
                   o_ref, ksize=ksize, col_off=col_off)


def _irb_noexpand_kernel(zq_ref, shift_ref, wdwt_ref, s2_ref, b2_ref, w1_ref,
                         w2_ref, bse_ref, gt_ref, g_ref, wblk_ref, s3_ref,
                         b3_ref, o_ref, *, ksize, col_off):
    # zq_ref: (H, Wz*hidden) bf16 input, horizontally padded/packed by wrapper.
    _dw_se_project(zq_ref[...], shift_ref, wdwt_ref, s2_ref, b2_ref, w1_ref,
                   w2_ref, bse_ref, gt_ref, g_ref, wblk_ref, s3_ref, b3_ref,
                   o_ref, ksize=ksize, col_off=col_off)


# ---------------------------------------------------------------------------
# pallas_call wrapper
# ---------------------------------------------------------------------------
def _bcast_spec(shape):
    # Whole-array block, same block for every grid step (weights / affines).
    return pl.BlockSpec(shape, lambda n, _r=len(shape): (0,) * _r)


def _irb_pallas_call(kernel, x_packed, consts_list, *, Ho, WoCout, col_off,
                     ksize):
    N = x_packed.shape[0]
    kern = functools.partial(kernel, ksize=ksize, col_off=col_off)
    return pl.pallas_call(
        kern,
        out_shape=jax.ShapeDtypeStruct((N, Ho, WoCout), jnp.float32),
        grid=(N,),
        in_specs=[pl.BlockSpec((None,) + x_packed.shape[1:],
                               lambda n: (n, 0, 0))]
                 + [_bcast_spec(c.shape) for c in consts_list],
        out_specs=pl.BlockSpec((None, Ho, WoCout), lambda n: (n, 0, 0)),
        compiler_params=pltpu.CompilerParams(
            dimension_semantics=("parallel",)),
    )(x_packed, *consts_list)


# ---------------------------------------------------------------------------
# One-time constant preparation (hoisted out of the per-call forward).
# ---------------------------------------------------------------------------
def prepare_irb_constants(params, x_shape, *, kernel_size, stride, padding,
                          expansion, reduction_ratio=4):
    del reduction_ratio  # only affects parameter shapes, not the forward math
    _, Cin, H, W = x_shape
    f32, bf16 = jnp.float32, jnp.bfloat16
    K, s, pd = kernel_size, stride, padding
    hidden = Cin * expansion
    Cout = params["conv_pw_w"].shape[1]
    Hz, Wz = H + 2 * pd, W + 2 * pd
    Ho, Wo = (Hz - K) // s + 1, (Wz - K) // s + 1

    # Packed-column order: natural padded column q sorted by (q % s, q // s),
    # so every depthwise kw tap is a CONTIGUOUS lane window even for stride>1.
    order = sorted(range(Wz), key=lambda q: (q % s, q // s))
    gsz = [sum(1 for q in range(Wz) if q % s == par) for par in range(s)]
    gstart, running = [], 0
    for par in range(s):
        gstart.append(running)
        running += gsz[par]
    col_off = tuple(int((gstart[kw % s] + kw // s) * hidden) for kw in range(K))
    order_arr = jnp.asarray(order, jnp.int32)

    # Depthwise row-shift matrices: row stride + vertical halo folded in.
    shift_np = np.zeros((K, Ho, H), np.float32)
    for kh in range(K):
        for ho in range(Ho):
            h = s * ho + kh - pd
            if 0 <= h < H:
                shift_np[kh, ho, h] = 1.0

    # Fold BatchNorm running stats (+ conv biases) into per-channel affines.
    s2 = params["bn2_gamma"] / jnp.sqrt(params["bn2_var"] + EPS)
    b2 = params["bn2_beta"] + (params["conv_dw_b"] - params["bn2_mean"]) * s2
    s3 = params["bn3_gamma"] / jnp.sqrt(params["bn3_var"] + EPS)
    b3 = params["bn3_beta"] - params["bn3_mean"] * s3

    eye_h = jnp.eye(hidden, dtype=f32)
    consts = {
        "shift": jnp.asarray(shift_np, bf16),
        # depthwise taps tiled over the packed (Wo*hidden) axis (VPU, f32)
        "wdwt": jnp.tile(params["conv_dw_w"].reshape(K * K, hidden),
                         (1, Wo)).astype(f32),
        "s2t": jnp.tile(s2, Wo).reshape(1, Wo * hidden).astype(f32),
        "b2t": jnp.tile(b2, Wo).reshape(1, Wo * hidden).astype(f32),
        "w1": params["se_w1"].astype(bf16),
        "w2": params["se_w2"].astype(bf16),
        "bse": params["se_b2"].reshape(1, hidden).astype(f32),
        # SE pooling / gate-tiling structure matrices (MXU friendly)
        "gt": jnp.tile(eye_h, (1, Wo)).astype(bf16),
        "g": jnp.tile(eye_h, (Wo, 1)).astype(bf16),
        # 1x1 projection as block-diagonal kron(I_Wo, W_pw)
        "wblk": jnp.einsum("wv,io->wivo", jnp.eye(Wo, dtype=f32),
                           params["conv_pw_w"]).reshape(
                               Wo * hidden, Wo * Cout).astype(bf16),
        "s3t": jnp.tile(s3, Wo).reshape(1, Wo * Cout).astype(f32),
        "b3t": jnp.tile(b3, Wo).reshape(1, Wo * Cout).astype(f32),
    }

    expand = Cin != hidden
    if expand:
        # Expansion ConvBlock (hardcoded 3x3 / stride 1 / pad 1 as in module).
        s1 = params["bn1_gamma"] / jnp.sqrt(params["bn1_var"] + EPS)
        b1 = params["bn1_beta"] + (params["conv1_b"] - params["bn1_mean"]) * s1
        # Banded im2col weights over the UNPADDED input width: kw shifts and
        # zero horizontal-halo columns are folded into the output columns.
        shift_e = (jnp.arange(W)[None, :, None] ==
                   (jnp.arange(W)[None, None, :] +
                    jnp.arange(3)[:, None, None] - 1)).astype(f32)
        wb = jnp.einsum("awb,haio->hwibo", shift_e, params["conv1_w"])
        wb = jnp.pad(wb, ((0, 0), (0, 0), (0, 0), (pd, pd), (0, 0)))
        # NOTE: b1t MUST stay exactly zero at the halo columns (SiLU(0)=0 gives
        # the depthwise its zero horizontal padding).
        b1t = jnp.zeros((Wz, hidden), f32).at[pd:pd + W, :].set(
            jnp.broadcast_to(b1, (W, hidden)))
        s1t = jnp.broadcast_to(s1, (Wz, hidden))
        if s > 1:
            wb = jnp.take(wb, order_arr, axis=3)
            b1t = jnp.take(b1t, order_arr, axis=0)
            s1t = jnp.take(s1t, order_arr, axis=0)
        consts["wb"] = wb.reshape(3 * W * Cin, Wz * hidden).astype(bf16)
        consts["s1t"] = s1t.reshape(1, Wz * hidden).astype(f32)
        consts["b1t"] = b1t.reshape(1, Wz * hidden).astype(f32)

    static = dict(K=K, stride=s, padding=pd, hidden=hidden, Cout=Cout,
                  H=H, W=W, Wz=Wz, Ho=Ho, Wo=Wo, col_off=col_off,
                  order=order, expand=expand)
    return consts, static


# ---------------------------------------------------------------------------
# InvertedResidualBlock forward (eval mode).  Constants are prepared once.
# ---------------------------------------------------------------------------
def inverted_residual_block(x_nchw, consts, static):
    N, Cin, H, W = x_nchw.shape
    bf16 = jnp.bfloat16
    Ho, Wo, Cout = static["Ho"], static["Wo"], static["Cout"]

    # TODO(synk): in a full NHWC/packed-layout model these transposes and the
    # tiny input pads disappear (the kernel already consumes packed rows).
    x = jnp.transpose(x_nchw, (0, 2, 3, 1))                   # NCHW -> NHWC

    if static["expand"]:
        xp = jnp.pad(x, ((0, 0), (1, 1), (0, 0), (0, 0)))     # 3x3-expand rows
        xp = xp.reshape(N, H + 2, W * Cin).astype(bf16)
        consts_list = [consts[k] for k in _EXPAND_CONST_ORDER]
        out = _irb_pallas_call(_irb_expand_kernel, xp, consts_list,
                               Ho=Ho, WoCout=Wo * Cout,
                               col_off=static["col_off"], ksize=static["K"])
    else:
        pd = static["padding"]
        xq = jnp.pad(x, ((0, 0), (0, 0), (pd, pd), (0, 0)))   # dw column halo
        if static["stride"] > 1:
            xq = jnp.take(xq, jnp.asarray(static["order"], jnp.int32), axis=2)
        xq = xq.reshape(N, H, static["Wz"] * static["hidden"]).astype(bf16)
        consts_list = [consts[k] for k in _BASE_CONST_ORDER]
        out = _irb_pallas_call(_irb_noexpand_kernel, xq, consts_list,
                               Ho=Ho, WoCout=Wo * Cout,
                               col_off=static["col_off"], ksize=static["K"])

    # Eval-mode stochastic depth is the identity (the PyTorch forward never
    # adds the skip; `residual` only gates stochastic depth).
    out = out.reshape(N, Ho, Wo, Cout)
    return jnp.transpose(out, (0, 3, 1, 2))                   # NHWC -> NCHW


# ---------------------------------------------------------------------------
# Deterministic parameter init + pure-JAX reference for validation
# ---------------------------------------------------------------------------
def init_params(key, Cin, Cout, kernel_size, expansion, reduction_ratio):
    hidden = Cin * expansion
    sq = hidden // (Cin // reduction_ratio)            # SE_Net(hidden, Cin//rr)
    keys = jax.random.split(key, 24)
    k = iter(range(24))

    def nrm(shape, scale=0.2):
        return scale * jax.random.normal(keys[next(k)], shape, jnp.float32)

    def pos(shape):
        return 1.0 + 0.2 * jax.random.uniform(keys[next(k)], shape, jnp.float32)

    p = {}
    p["conv1_w"] = nrm((3, 3, Cin, hidden))            # HWIO
    p["conv1_b"] = nrm((hidden,), 0.1)
    p["bn1_gamma"], p["bn1_beta"] = pos((hidden,)), nrm((hidden,), 0.1)
    p["bn1_mean"], p["bn1_var"] = nrm((hidden,), 0.1), pos((hidden,))
    p["conv_dw_w"] = nrm((kernel_size, kernel_size, hidden))
    p["conv_dw_b"] = nrm((hidden,), 0.1)
    p["bn2_gamma"], p["bn2_beta"] = pos((hidden,)), nrm((hidden,), 0.1)
    p["bn2_mean"], p["bn2_var"] = nrm((hidden,), 0.1), pos((hidden,))
    p["se_w1"] = nrm((hidden, sq))
    p["se_w2"] = nrm((sq, hidden))
    p["se_b2"] = nrm((hidden,), 0.1)
    p["conv_pw_w"] = nrm((hidden, Cout))
    p["bn3_gamma"], p["bn3_beta"] = pos((Cout,)), nrm((Cout,), 0.1)
    p["bn3_mean"], p["bn3_var"] = nrm((Cout,), 0.1), pos((Cout,))
    return p


def reference_forward(x_nchw, p, *, kernel_size, stride, padding, expansion,
                      reduction_ratio=4):
    del reduction_ratio
    Cin = x_nchw.shape[1]
    hidden = Cin * expansion
    hi = jax.lax.Precision.HIGHEST

    def bn(x, g, b, m, v):
        g, b, m, v = (t[None, :, None, None] for t in (g, b, m, v))
        return (x - m) / jnp.sqrt(v + EPS) * g + b

    def silu(x):
        return x * jax.nn.sigmoid(x)

    z = x_nchw
    if Cin != hidden:
        w = jnp.transpose(p["conv1_w"], (3, 2, 0, 1))          # OIHW
        z = jax.lax.conv_general_dilated(
            z, w, (1, 1), ((1, 1), (1, 1)),
            dimension_numbers=("NCHW", "OIHW", "NCHW"), precision=hi)
        z = z + p["conv1_b"][None, :, None, None]
        z = silu(bn(z, p["bn1_gamma"], p["bn1_beta"], p["bn1_mean"],
                    p["bn1_var"]))

    wdw = jnp.transpose(p["conv_dw_w"], (2, 0, 1))[:, None, :, :]
    z = jax.lax.conv_general_dilated(
        z, wdw, (stride, stride), ((padding, padding), (padding, padding)),
        dimension_numbers=("NCHW", "OIHW", "NCHW"),
        feature_group_count=hidden, precision=hi)
    z = z + p["conv_dw_b"][None, :, None, None]
    z = silu(bn(z, p["bn2_gamma"], p["bn2_beta"], p["bn2_mean"], p["bn2_var"]))

    pooled = jnp.mean(z, axis=(2, 3))                           # (N, hidden)
    s = silu(pooled @ p["se_w1"])
    s = jax.nn.sigmoid(s @ p["se_w2"] + p["se_b2"])
    z = z * s[:, :, None, None]

    wpw = jnp.transpose(p["conv_pw_w"], (1, 0))[:, :, None, None]
    z = jax.lax.conv_general_dilated(
        z, wpw, (1, 1), ((0, 0), (0, 0)),
        dimension_numbers=("NCHW", "OIHW", "NCHW"), precision=hi)
    return bn(z, p["bn3_gamma"], p["bn3_beta"], p["bn3_mean"], p["bn3_var"])


# ---------------------------------------------------------------------------
if __name__ == "__main__":
    root = jax.random.PRNGKey(0)
    keys = jax.random.split(root, 4)

    def run_case(name, key, *, N, Cin, Cout, H, W, kernel_size, stride,
                 padding, expansion, reduction_ratio):
        kx, kp = jax.random.split(key)
        x = jax.random.normal(kx, (N, Cin, H, W), jnp.float32)
        params = init_params(kp, Cin, Cout, kernel_size, expansion,
                             reduction_ratio)
        # Packed constants are prepared ONCE per (params, resolution) and
        # reused across forward calls (hoisted out of the per-call graph).
        consts, static = prepare_irb_constants(
            params, x.shape, kernel_size=kernel_size, stride=stride,
            padding=padding, expansion=expansion,
            reduction_ratio=reduction_ratio)
        out = jax.block_until_ready(inverted_residual_block(x, consts, static))
        ref = jax.block_until_ready(reference_forward(
            x, params, kernel_size=kernel_size, stride=stride, padding=padding,
            expansion=expansion, reduction_ratio=reduction_ratio))
        # Intended precision: bf16 MXU operands with f32 accumulation vs a
        # Precision.HIGHEST f32 reference -> 2e-2 tolerance documents that.
        np.testing.assert_allclose(np.asarray(out), np.asarray(ref),
                                   rtol=2e-2, atol=2e-2, err_msg=name)

    # Primary config: expansion path, stride 1 (standard MBConv).
    run_case("expand_s1", keys[0], N=2, Cin=8, Cout=8, H=16, W=16,
             kernel_size=3, stride=1, padding=1, expansion=4,
             reduction_ratio=4)
    # expansion == 1 -> the expand ConvBlock is skipped.
    run_case("no_expand_s1", keys[1], N=2, Cin=8, Cout=8, H=16, W=16,
             kernel_size=3, stride=1, padding=1, expansion=1,
             reduction_ratio=4)
    # Downsampling MBConv: stride 2 (column stride folded into packed order).
    run_case("expand_s2", keys[2], N=2, Cin=8, Cout=8, H=16, W=16,
             kernel_size=3, stride=2, padding=1, expansion=4,
             reduction_ratio=4)
    # 5x5 depthwise, padding 2.
    run_case("expand_k5", keys[3], N=2, Cin=8, Cout=8, H=16, W=16,
             kernel_size=5, stride=1, padding=2, expansion=2,
             reduction_ratio=4)

    print("KERNEL_OK")
</pallas_src>

<mosaic_0001>
module attributes {stable_mosaic.version = 11 : i64} {
  func.func @_irb_expand_kernel(%arg0: i32, %arg1: memref<1x18x128xbf16, #tpu.memory_space<vmem>>, %arg2: memref<384x576xbf16, #tpu.memory_space<vmem>>, %arg3: memref<1x576xf32, #tpu.memory_space<vmem>>, %arg4: memref<1x576xf32, #tpu.memory_space<vmem>>, %arg5: memref<3x16x16xbf16, #tpu.memory_space<vmem>>, %arg6: memref<9x512xf32, #tpu.memory_space<vmem>>, %arg7: memref<1x512xf32, #tpu.memory_space<vmem>>, %arg8: memref<1x512xf32, #tpu.memory_space<vmem>>, %arg9: memref<32x16xbf16, #tpu.memory_space<vmem>>, %arg10: memref<16x32xbf16, #tpu.memory_space<vmem>>, %arg11: memref<1x32xf32, #tpu.memory_space<vmem>>, %arg12: memref<32x512xbf16, #tpu.memory_space<vmem>>, %arg13: memref<512x32xbf16, #tpu.memory_space<vmem>>, %arg14: memref<512x128xbf16, #tpu.memory_space<vmem>>, %arg15: memref<1x128xf32, #tpu.memory_space<vmem>>, %arg16: memref<1x128xf32, #tpu.memory_space<vmem>>, %arg17: memref<1x16x128xf32, #tpu.memory_space<vmem>>) attributes {dimension_semantics = [#tpu.dimension_semantics<parallel>], iteration_bounds = array<i64: 2>, scalar_prefetch = 0 : i64, scratch_operands = 0 : i64, tpu.core_type = #tpu.core_type<tc>, window_params = [{transform_indices = @transform_0, window_bounds = array<i64: 1, 18, 128>}, {pipeline_mode = #tpu.pipeline_mode<synchronous>, transform_indices = @transform_1, window_bounds = array<i64: 384, 576>}, {pipeline_mode = #tpu.pipeline_mode<synchronous>, transform_indices = @transform_2, window_bounds = array<i64: 1, 576>}, {pipeline_mode = #tpu.pipeline_mode<synchronous>, transform_indices = @transform_3, window_bounds = array<i64: 1, 576>}, {pipeline_mode = #tpu.pipeline_mode<synchronous>, transform_indices = @transform_4, window_bounds = array<i64: 3, 16, 16>}, {pipeline_mode = #tpu.pipeline_mode<synchronous>, transform_indices = @transform_5, window_bounds = array<i64: 9, 512>}, {pipeline_mode = #tpu.pipeline_mode<synchronous>, transform_indices = @transform_6, window_bounds = array<i64: 1, 512>}, {pipeline_mode = #tpu.pipeline_mode<synchronous>, transform_indices = @transform_7, window_bounds = array<i64: 1, 512>}, {pipeline_mode = #tpu.pipeline_mode<synchronous>, transform_indices = @transform_8, window_bounds = array<i64: 32, 16>}, {pipeline_mode = #tpu.pipeline_mode<synchronous>, transform_indices = @transform_9, window_bounds = array<i64: 16, 32>}, {pipeline_mode = #tpu.pipeline_mode<synchronous>, transform_indices = @transform_10, window_bounds = array<i64: 1, 32>}, {pipeline_mode = #tpu.pipeline_mode<synchronous>, transform_indices = @transform_11, window_bounds = array<i64: 32, 512>}, {pipeline_mode = #tpu.pipeline_mode<synchronous>, transform_indices = @transform_12, window_bounds = array<i64: 512, 32>}, {pipeline_mode = #tpu.pipeline_mode<synchronous>, transform_indices = @transform_13, window_bounds = array<i64: 512, 128>}, {pipeline_mode = #tpu.pipeline_mode<synchronous>, transform_indices = @transform_14, window_bounds = array<i64: 1, 128>}, {pipeline_mode = #tpu.pipeline_mode<synchronous>, transform_indices = @transform_15, window_bounds = array<i64: 1, 128>}, {transform_indices = @transform_16, window_bounds = array<i64: 1, 16, 128>}]} {
    %c0 = arith.constant 0 : index
    %c0_0 = arith.constant 0 : index
    %c0_1 = arith.constant 0 : index
    %0 = vector.load %arg1[%c0, %c0_0, %c0_1] : memref<1x18x128xbf16, #tpu.memory_space<vmem>>, vector<1x16x128xbf16>
    %1 = vector.shape_cast %0 : vector<1x16x128xbf16> to vector<16x128xbf16>
    %c0_2 = arith.constant 0 : index
    %c1 = arith.constant 1 : index
    %c0_3 = arith.constant 0 : index
    %2 = vector.load %arg1[%c0_2, %c1, %c0_3] : memref<1x18x128xbf16, #tpu.memory_space<vmem>>, vector<1x16x128xbf16>
    %3 = vector.shape_cast %2 : vector<1x16x128xbf16> to vector<16x128xbf16>
    %c0_4 = arith.constant 0 : index
    %c2 = arith.constant 2 : index
    %c0_5 = arith.constant 0 : index
    %4 = vector.load %arg1[%c0_4, %c2, %c0_5] : memref<1x18x128xbf16, #tpu.memory_space<vmem>>, vector<1x16x128xbf16>
    %5 = vector.shape_cast %4 : vector<1x16x128xbf16> to vector<16x128xbf16>
    %6 = tpu.concatenate %1, %3, %5 in 1 : vector<16x128xbf16>, vector<16x128xbf16>, vector<16x128xbf16> -> vector<16x384xbf16>
    %c0_6 = arith.constant 0 : index
    %c0_7 = arith.constant 0 : index
    %7 = vector.load %arg2[%c0_6, %c0_7] : memref<384x576xbf16, #tpu.memory_space<vmem>>, vector<384x576xbf16>
    %cst = arith.constant dense<0.000000e+00> : vector<16x576xf32>
    %8 = tpu.matmul %6, %7, %cst {dimension_numbers = #tpu.dot_dimension_numbers<[1], [0], [0], [1], [0, 0, 1, 1], [], []>} : vector<16x384xbf16>, vector<384x576xbf16>, vector<16x576xf32> -> vector<16x576xf32>
    %c0_8 = arith.constant 0 : index
    %c0_9 = arith.constant 0 : index
    %9 = vector.load %arg3[%c0_8, %c0_9] : memref<1x576xf32, #tpu.memory_space<vmem>>, vector<1x576xf32>
    %10 = vector.broadcast %9 : vector<1x576xf32> to vector<16x576xf32>
    %11 = arith.mulf %8, %10 : vector<16x576xf32>
    %c0_10 = arith.constant 0 : index
    %c0_11 = arith.constant 0 : index
    %12 = vector.load %arg4[%c0_10, %c0_11] : memref<1x576xf32, #tpu.memory_space<vmem>>, vector<1x576xf32>
    %13 = vector.broadcast %12 : vector<1x576xf32> to vector<16x576xf32>
    %14 = arith.addf %11, %13 : vector<16x576xf32>
    %15 = arith.negf %14 : vector<16x576xf32>
    %16 = math.exp %15 : vector<16x576xf32>
    %cst_12 = arith.constant 1.000000e+00 : f32
    %17 = vector.broadcast %cst_12 : f32 to vector<16x576xf32>
    %18 = arith.addf %17, %16 : vector<16x576xf32>
    %19 = arith.divf %17, %18 : vector<16x576xf32>
    %20 = arith.mulf %14, %19 : vector<16x576xf32>
    %21 = arith.truncf %20 : vector<16x576xf32> to vector<16x576xbf16>
    %cst_13 = arith.constant 0.000000e+00 : f32
    %22 = vector.broadcast %cst_13 : f32 to vector<16x512xf32>
    %c0_14 = arith.constant 0 : index
    %c0_15 = arith.constant 0 : index
    %c0_16 = arith.constant 0 : index
    %23 = vector.load %arg5[%c0_14, %c0_15, %c0_16] : memref<3x16x16xbf16, #tpu.memory_space<vmem>>, vector<1x16x16xbf16>
    %24 = vector.shape_cast %23 : vector<1x16x16xbf16> to vector<16x16xbf16>
    %cst_17 = arith.constant dense<0.000000e+00> : vector<16x576xf32>
    %25 = tpu.matmul %24, %21, %cst_17 {dimension_numbers = #tpu.dot_dimension_numbers<[1], [0], [0], [1], [0, 0, 1, 1], [], []>} : vector<16x16xbf16>, vector<16x576xbf16>, vector<16x576xf32> -> vector<16x576xf32>
    %26 = vector.extract_strided_slice %25 {offsets = [0, 0], sizes = [16, 512], strides = [1, 1]} : vector<16x576xf32> to vector<16x512xf32>
    %c0_18 = arith.constant 0 : index
    %c0_19 = arith.constant 0 : index
    %27 = vector.load %arg6[%c0_18, %c0_19] : memref<9x512xf32, #tpu.memory_space<vmem>>, vector<1x512xf32>
    %28 = vector.broadcast %27 : vector<1x512xf32> to vector<16x512xf32>
    %29 = arith.mulf %26, %28 : vector<16x512xf32>
    %30 = arith.addf %22, %29 : vector<16x512xf32>
    %31 = vector.extract_strided_slice %25 {offsets = [0, 32], sizes = [16, 512], strides = [1, 1]} : vector<16x576xf32> to vector<16x512xf32>
    %c1_20 = arith.constant 1 : index
    %c0_21 = arith.constant 0 : index
    %32 = vector.load %arg6[%c1_20, %c0_21] : memref<9x512xf32, #tpu.memory_space<vmem>>, vector<1x512xf32>
    %33 = vector.broadcast %32 : vector<1x512xf32> to vector<16x512xf32>
    %34 = arith.mulf %31, %33 : vector<16x512xf32>
    %35 = arith.addf %30, %34 : vector<16x512xf32>
    %36 = vector.extract_strided_slice %25 {offsets = [0, 64], sizes = [16, 512], strides = [1, 1]} : vector<16x576xf32> to vector<16x512xf32>
    %c2_22 = arith.constant 2 : index
    %c0_23 = arith.constant 0 : index
    %37 = vector.load %arg6[%c2_22, %c0_23] : memref<9x512xf32, #tpu.memory_space<vmem>>, vector<1x512xf32>
    %38 = vector.broadcast %37 : vector<1x512xf32> to vector<16x512xf32>
    %39 = arith.mulf %36, %38 : vector<16x512xf32>
    %40 = arith.addf %35, %39 : vector<16x512xf32>
    %c1_24 = arith.constant 1 : index
    %c0_25 = arith.constant 0 : index
    %c0_26 = arith.constant 0 : index
    %41 = vector.load %arg5[%c1_24, %c0_25, %c0_26] : memref<3x16x16xbf16, #tpu.memory_space<vmem>>, vector<1x16x16xbf16>
    %42 = vector.shape_cast %41 : vector<1x16x16xbf16> to vector<16x16xbf16>
    %cst_27 = arith.constant dense<0.000000e+00> : vector<16x576xf32>
    %43 = tpu.matmul %42, %21, %cst_27 {dimension_numbers = #tpu.dot_dimension_numbers<[1], [0], [0], [1], [0, 0, 1, 1], [], []>} : vector<16x16xbf16>, vector<16x576xbf16>, vector<16x576xf32> -> vector<16x576xf32>
    %44 = vector.extract_strided_slice %43 {offsets = [0, 0], sizes = [16, 512], strides = [1, 1]} : vector<16x576xf32> to vector<16x512xf32>
    %c3 = arith.constant 3 : index
    %c0_28 = arith.constant 0 : index
    %45 = vector.load %arg6[%c3, %c0_28] : memref<9x512xf32, #tpu.memory_space<vmem>>, vector<1x512xf32>
    %46 = vector.broadcast %45 : vector<1x512xf32> to vector<16x512xf32>
    %47 = arith.mulf %44, %46 : vector<16x512xf32>
    %48 = arith.addf %40, %47 : vector<16x512xf32>
    %49 = vector.extract_strided_slice %43 {offsets = [0, 32], sizes = [16, 512], strides = [1, 1]} : vector<16x576xf32> to vector<16x512xf32>
    %c4 = arith.constant 4 : index
    %c0_29 = arith.constant 0 : index
    %50 = vector.load %arg6[%c4, %c0_29] : memref<9x512xf32, #tpu.memory_space<vmem>>, vector<1x512xf32>
    %51 = vector.broadcast %50 : vector<1x512xf32> to vector<16x512xf32>
    %52 = arith.mulf %49, %51 : vector<16x512xf32>
    %53 = arith.addf %48, %52 : vector<16x512xf32>
    %54 = vector.extract_strided_slice %43 {offsets = [0, 64], sizes = [16, 512], strides = [1, 1]} : vector<16x576xf32> to vector<16x512xf32>
    %c5 = arith.constant 5 : index
    %c0_30 = arith.constant 0 : index
    %55 = vector.load %arg6[%c5, %c0_30] : memref<9x512xf32, #tpu.memory_space<vmem>>, vector<1x512xf32>
    %56 = vector.broadcast %55 : vector<1x512xf32> to vector<16x512xf32>
    %57 = arith.mulf %54, %56 : vector<16x512xf32>
    %58 = arith.addf %53, %57 : vector<16x512xf32>
    %c2_31 = arith.constant 2 : index
    %c0_32 = arith.constant 0 : index
    %c0_33 = arith.constant 0 : index
    %59 = vector.load %arg5[%c2_31, %c0_32, %c0_33] : memref<3x16x16xbf16, #tpu.memory_space<vmem>>, vector<1x16x16xbf16>
    %60 = vector.shape_cast %59 : vector<1x16x16xbf16> to vector<16x16xbf16>
    %cst_34 = arith.constant dense<0.000000e+00> : vector<16x576xf32>
    %61 = tpu.matmul %60, %21, %cst_34 {dimension_numbers = #tpu.dot_dimension_numbers<[1], [0], [0], [1], [0, 0, 1, 1], [], []>} : vector<16x16xbf16>, vector<16x576xbf16>, vector<16x576xf32> -> vector<16x576xf32>
    %62 = vector.extract_strided_slice %61 {offsets = [0, 0], sizes = [16, 512], strides = [1, 1]} : vector<16x576xf32> to vector<16x512xf32>
    %c6 = arith.constant 6 : index
    %c0_35 = arith.constant 0 : index
    %63 = vector.load %arg6[%c6, %c0_35] : memref<9x512xf32, #tpu.memory_space<vmem>>, vector<1x512xf32>
    %64 = vector.broadcast %63 : vector<1x512xf32> to vector<16x512xf32>
    %65 = arith.mulf %62, %64 : vector<16x512xf32>
    %66 = arith.addf %58, %65 : vector<16x512xf32>
    %67 = vector.extract_strided_slice %61 {offsets = [0, 32], sizes = [16, 512], strides = [1, 1]} : vector<16x576xf32> to vector<16x512xf32>
    %c7 = arith.constant 7 : index
    %c0_36 = arith.constant 0 : index
    %68 = vector.load %arg6[%c7, %c0_36] : memref<9x512xf32, #tpu.memory_space<vmem>>, vector<1x512xf32>
    %69 = vector.broadcast %68 : vector<1x512xf32> to vector<16x512xf32>
    %70 = arith.mulf %67, %69 : vector<16x512xf32>
    %71 = arith.addf %66, %70 : vector<16x512xf32>
    %72 = vector.extract_strided_slice %61 {offsets = [0, 64], sizes = [16, 512], strides = [1, 1]} : vector<16x576xf32> to vector<16x512xf32>
    %c8 = arith.constant 8 : index
    %c0_37 = arith.constant 0 : index
    %73 = vector.load %arg6[%c8, %c0_37] : memref<9x512xf32, #tpu.memory_space<vmem>>, vector<1x512xf32>
    %74 = vector.broadcast %73 : vector<1x512xf32> to vector<16x512xf32>
    %75 = arith.mulf %72, %74 : vector<16x512xf32>
    %76 = arith.addf %71, %75 : vector<16x512xf32>
    %c0_38 = arith.constant 0 : index
    %c0_39 = arith.constant 0 : index
    %77 = vector.load %arg7[%c0_38, %c0_39] : memref<1x512xf32, #tpu.memory_space<vmem>>, vector<1x512xf32>
    %78 = vector.broadcast %77 : vector<1x512xf32> to vector<16x512xf32>
    %79 = arith.mulf %76, %78 : vector<16x512xf32>
    %c0_40 = arith.constant 0 : index
    %c0_41 = arith.constant 0 : index
    %80 = vector.load %arg8[%c0_40, %c0_41] : memref<1x512xf32, #tpu.memory_space<vmem>>, vector<1x512xf32>
    %81 = vector.broadcast %80 : vector<1x512xf32> to vector<16x512xf32>
    %82 = arith.addf %79, %81 : vector<16x512xf32>
    %83 = arith.negf %82 : vector<16x512xf32>
    %84 = math.exp %83 : vector<16x512xf32>
    %cst_42 = arith.constant 1.000000e+00 : f32
    %85 = vector.broadcast %cst_42 : f32 to vector<16x512xf32>
    %86 = arith.addf %85, %84 : vector<16x512xf32>
    %87 = arith.divf %85, %86 : vector<16x512xf32>
    %88 = arith.mulf %82, %87 : vector<16x512xf32>
    %89 = arith.truncf %88 : vector<16x512xf32> to vector<16x512xbf16>
    %cst_43 = arith.constant 1.000000e+00 : bf16
    %90 = vector.broadcast %cst_43 : bf16 to vector<1x16xbf16>
    %cst_44 = arith.constant dense<0.000000e+00> : vector<1x512xf32>
    %91 = tpu.matmul %90, %89, %cst_44 {dimension_numbers = #tpu.dot_dimension_numbers<[1], [0], [0], [1], [0, 0, 1, 1], [], []>} : vector<1x16xbf16>, vector<16x512xbf16>, vector<1x512xf32> -> vector<1x512xf32>
    %92 = arith.truncf %91 : vector<1x512xf32> to vector<1x512xbf16>
    %c0_45 = arith.constant 0 : index
    %c0_46 = arith.constant 0 : index
    %93 = vector.load %arg13[%c0_45, %c0_46] : memref<512x32xbf16, #tpu.memory_space<vmem>>, vector<512x32xbf16>
    %cst_47 = arith.constant dense<0.000000e+00> : vector<1x32xf32>
    %94 = tpu.matmul %92, %93, %cst_47 {dimension_numbers = #tpu.dot_dimension_numbers<[1], [0], [0], [1], [0, 0, 1, 1], [], []>} : vector<1x512xbf16>, vector<512x32xbf16>, vector<1x32xf32> -> vector<1x32xf32>
    %cst_48 = arith.constant 3.906250e-03 : f32
    %95 = vector.broadcast %cst_48 : f32 to vector<1x32xf32>
    %96 = arith.mulf %94, %95 : vector<1x32xf32>
    %97 = arith.truncf %96 : vector<1x32xf32> to vector<1x32xbf16>
    %c0_49 = arith.constant 0 : index
    %c0_50 = arith.constant 0 : index
    %98 = vector.load %arg9[%c0_49, %c0_50] : memref<32x16xbf16, #tpu.memory_space<vmem>>, vector<32x16xbf16>
    %cst_51 = arith.constant dense<0.000000e+00> : vector<1x16xf32>
    %99 = tpu.matmul %97, %98, %cst_51 {dimension_numbers = #tpu.dot_dimension_numbers<[1], [0], [0], [1], [0, 0, 1, 1], [], []>} : vector<1x32xbf16>, vector<32x16xbf16>, vector<1x16xf32> -> vector<1x16xf32>
    %100 = arith.negf %99 : vector<1x16xf32>
    %101 = math.exp %100 : vector<1x16xf32>
    %cst_52 = arith.constant 1.000000e+00 : f32
    %102 = vector.broadcast %cst_52 : f32 to vector<1x16xf32>
    %103 = arith.addf %102, %101 : vector<1x16xf32>
    %104 = arith.divf %102, %103 : vector<1x16xf32>
    %105 = arith.mulf %99, %104 : vector<1x16xf32>
    %106 = arith.truncf %105 : vector<1x16xf32> to vector<1x16xbf16>
    %c0_53 = arith.constant 0 : index
    %c0_54 = arith.constant 0 : index
    %107 = vector.load %arg10[%c0_53, %c0_54] : memref<16x32xbf16, #tpu.memory_space<vmem>>, vector<16x32xbf16>
    %cst_55 = arith.constant dense<0.000000e+00> : vector<1x32xf32>
    %108 = tpu.matmul %106, %107, %cst_55 {dimension_numbers = #tpu.dot_dimension_numbers<[1], [0], [0], [1], [0, 0, 1, 1], [], []>} : vector<1x16xbf16>, vector<16x32xbf16>, vector<1x32xf32> -> vector<1x32xf32>
    %c0_56 = arith.constant 0 : index
    %c0_57 = arith.constant 0 : index
    %109 = vector.load %arg11[%c0_56, %c0_57] : memref<1x32xf32, #tpu.memory_space<vmem>>, vector<1x32xf32>
    %110 = arith.addf %108, %109 : vector<1x32xf32>
    %111 = arith.negf %110 : vector<1x32xf32>
    %112 = math.exp %111 : vector<1x32xf32>
    %cst_58 = arith.constant 1.000000e+00 : f32
    %113 = vector.broadcast %cst_58 : f32 to vector<1x32xf32>
    %114 = arith.addf %113, %112 : vector<1x32xf32>
    %115 = arith.divf %113, %114 : vector<1x32xf32>
    %116 = arith.truncf %115 : vector<1x32xf32> to vector<1x32xbf16>
    %c0_59 = arith.constant 0 : index
    %c0_60 = arith.constant 0 : index
    %117 = vector.load %arg12[%c0_59, %c0_60] : memref<32x512xbf16, #tpu.memory_space<vmem>>, vector<32x512xbf16>
    %cst_61 = arith.constant dense<0.000000e+00> : vector<1x512xf32>
    %118 = tpu.matmul %116, %117, %cst_61 {dimension_numbers = #tpu.dot_dimension_numbers<[1], [0], [0], [1], [0, 0, 1, 1], [], []>} : vector<1x32xbf16>, vector<32x512xbf16>, vector<1x512xf32> -> vector<1x512xf32>
    %119 = vector.broadcast %118 : vector<1x512xf32> to vector<16x512xf32>
    %120 = arith.mulf %88, %119 : vector<16x512xf32>
    %121 = arith.truncf %120 : vector<16x512xf32> to vector<16x512xbf16>
    %c0_62 = arith.constant 0 : index
    %c0_63 = arith.constant 0 : index
    %122 = vector.load %arg14[%c0_62, %c0_63] : memref<512x128xbf16, #tpu.memory_space<vmem>>, vector<512x128xbf16>
    %cst_64 = arith.constant dense<0.000000e+00> : vector<16x128xf32>
    %123 = tpu.matmul %121, %122, %cst_64 {dimension_numbers = #tpu.dot_dimension_numbers<[1], [0], [0], [1], [0, 0, 1, 1], [], []>} : vector<16x512xbf16>, vector<512x128xbf16>, vector<16x128xf32> -> vector<16x128xf32>
    %c0_65 = arith.constant 0 : index
    %c0_66 = arith.constant 0 : index
    %124 = vector.load %arg15[%c0_65, %c0_66] : memref<1x128xf32, #tpu.memory_space<vmem>>, vector<1x128xf32>
    %125 = vector.broadcast %124 : vector<1x128xf32> to vector<16x128xf32>
    %126 = arith.mulf %123, %125 : vector<16x128xf32>
    %c0_67 = arith.constant 0 : index
    %c0_68 = arith.constant 0 : index
    %127 = vector.load %arg16[%c0_67, %c0_68] : memref<1x128xf32, #tpu.memory_space<vmem>>, vector<1x128xf32>
    %128 = vector.broadcast %127 : vector<1x128xf32> to vector<16x128xf32>
    %129 = arith.addf %126, %128 : vector<16x128xf32>
    %c0_69 = arith.constant 0 : index
    %c0_70 = arith.constant 0 : index
    %c0_71 = arith.constant 0 : index
    %130 = vector.load %arg17[%c0_69, %c0_70, %c0_71] : memref<1x16x128xf32, #tpu.memory_space<vmem>>, vector<1x16x128xf32>
    %131 = vector.shape_cast %130 : vector<1x16x128xf32> to vector<16x128xf32>
    %132 = vector.shape_cast %129 : vector<16x128xf32> to vector<1x16x128xf32>
    tpu.vector_store %arg17[%c0_69, %c0_70, %c0_71], %132 {strides = array<i32>} : memref<1x16x128xf32, #tpu.memory_space<vmem>>, vector<1x16x128xf32>,
    return
  }
  func.func @transform_0(%arg0: i32) -> (i32, i32, i32) {
    %c0_i32 = arith.constant 0 : i32
    %c0_i32_0 = arith.constant 0 : i32
    %c0_i32_1 = arith.constant 0 : i32
    return %arg0, %c0_i32, %c0_i32_0 : i32, i32, i32
  }
  func.func @transform_1(%arg0: i32) -> (i32, i32) {
    %c0_i32 = arith.constant 0 : i32
    %c0_i32_0 = arith.constant 0 : i32
    %c0_i32_1 = arith.constant 0 : i32
    return %c0_i32, %c0_i32_0 : i32, i32
  }
  func.func @transform_2(%arg0: i32) -> (i32, i32) {
    %c0_i32 = arith.constant 0 : i32
    %c0_i32_0 = arith.constant 0 : i32
    %c0_i32_1 = arith.constant 0 : i32
    return %c0_i32, %c0_i32_0 : i32, i32
  }
  func.func @transform_3(%arg0: i32) -> (i32, i32) {
    %c0_i32 = arith.constant 0 : i32
    %c0_i32_0 = arith.constant 0 : i32
    %c0_i32_1 = arith.constant 0 : i32
    return %c0_i32, %c0_i32_0 : i32, i32
  }
  func.func @transform_4(%arg0: i32) -> (i32, i32, i32) {
    %c0_i32 = arith.constant 0 : i32
    %c0_i32_0 = arith.constant 0 : i32
    %c0_i32_1 = arith.constant 0 : i32
    %c0_i32_2 = arith.constant 0 : i32
    return %c0_i32, %c0_i32_0, %c0_i32_1 : i32, i32, i32
  }
  func.func @transform_5(%arg0: i32) -> (i32, i32) {
    %c0_i32 = arith.constant 0 : i32
    %c0_i32_0 = arith.constant 0 : i32
    %c0_i32_1 = arith.constant 0 : i32
    return %c0_i32, %c0_i32_0 : i32, i32
  }
  func.func @transform_6(%arg0: i32) -> (i32, i32) {
    %c0_i32 = arith.constant 0 : i32
    %c0_i32_0 = arith.constant 0 : i32
    %c0_i32_1 = arith.constant 0 : i32
    return %c0_i32, %c0_i32_0 : i32, i32
  }
  func.func @transform_7(%arg0: i32) -> (i32, i32) {
    %c0_i32 = arith.constant 0 : i32
    %c0_i32_0 = arith.constant 0 : i32
    %c0_i32_1 = arith.constant 0 : i32
    return %c0_i32, %c0_i32_0 : i32, i32
  }
  func.func @transform_8(%arg0: i32) -> (i32, i32) {
    %c0_i32 = arith.constant 0 : i32
    %c0_i32_0 = arith.constant 0 : i32
    %c0_i32_1 = arith.constant 0 : i32
    return %c0_i32, %c0_i32_0 : i32, i32
  }
  func.func @transform_9(%arg0: i32) -> (i32, i32) {
    %c0_i32 = arith.constant 0 : i32
    %c0_i32_0 = arith.constant 0 : i32
    %c0_i32_1 = arith.constant 0 : i32
    return %c0_i32, %c0_i32_0 : i32, i32
  }
  func.func @transform_10(%arg0: i32) -> (i32, i32) {
    %c0_i32 = arith.constant 0 : i32
    %c0_i32_0 = arith.constant 0 : i32
    %c0_i32_1 = arith.constant 0 : i32
    return %c0_i32, %c0_i32_0 : i32, i32
  }
  func.func @transform_11(%arg0: i32) -> (i32, i32) {
    %c0_i32 = arith.constant 0 : i32
    %c0_i32_0 = arith.constant 0 : i32
    %c0_i32_1 = arith.constant 0 : i32
    return %c0_i32, %c0_i32_0 : i32, i32
  }
  func.func @transform_12(%arg0: i32) -> (i32, i32) {
    %c0_i32 = arith.constant 0 : i32
    %c0_i32_0 = arith.constant 0 : i32
    %c0_i32_1 = arith.constant 0 : i32
    return %c0_i32, %c0_i32_0 : i32, i32
  }
  func.func @transform_13(%arg0: i32) -> (i32, i32) {
    %c0_i32 = arith.constant 0 : i32
    %c0_i32_0 = arith.constant 0 : i32
    %c0_i32_1 = arith.constant 0 : i32
    return %c0_i32, %c0_i32_0 : i32, i32
  }
  func.func @transform_14(%arg0: i32) -> (i32, i32) {
    %c0_i32 = arith.constant 0 : i32
    %c0_i32_0 = arith.constant 0 : i32
    %c0_i32_1 = arith.constant 0 : i32
    return %c0_i32, %c0_i32_0 : i32, i32
  }
  func.func @transform_15(%arg0: i32) -> (i32, i32) {
    %c0_i32 = arith.constant 0 : i32
    %c0_i32_0 = arith.constant 0 : i32
    %c0_i32_1 = arith.constant 0 : i32
    return %c0_i32, %c0_i32_0 : i32, i32
  }
  func.func @transform_16(%arg0: i32) -> (i32, i32, i32) {
    %c0_i32 = arith.constant 0 : i32
    %c0_i32_0 = arith.constant 0 : i32
    %c0_i32_1 = arith.constant 0 : i32
    return %arg0, %c0_i32, %c0_i32_0 : i32, i32, i32
  }
}

</mosaic_0001>

<llo_original>
// kernel: tpu_custom_call.1
$region0: #{tpu_custom_call.1}
  #allocation0 [shape = 'u32[]', space=smem, size = 0x4, offset = 0x4, fixed_abs, tag = 'smem constant byte address 0x4 - core index']
  #allocation1 [shape = 'u32[144,128]{1,0:T(1,128)}', space=vmem, size = 0x12000, scoped, tag = 'internal scratch']
  %s0 = inlined_call_operand.vmem [shape: bf16[2,18,128], index: 0, kind: input, shape index: {}]
  %s1 = inlined_call_operand.vmem [shape: bf16[384,576], index: 1, kind: input, shape index: {}]
  %s2 = inlined_call_operand.vmem [shape: f32[1,576], index: 2, kind: input, shape index: {}]
  %s3 = inlined_call_operand.vmem [shape: f32[1,576], index: 3, kind: input, shape index: {}]
  %s4 = inlined_call_operand.vmem [shape: bf16[3,16,16], index: 4, kind: input, shape index: {}]
  %s5 = inlined_call_operand.vmem [shape: f32[9,512], index: 5, kind: input, shape index: {}]
  %s6 = inlined_call_operand.vmem [shape: f32[1,512], index: 6, kind: input, shape index: {}]
  %s7 = inlined_call_operand.vmem [shape: f32[1,512], index: 7, kind: input, shape index: {}]
  %s8 = inlined_call_operand.vmem [shape: bf16[32,16], index: 8, kind: input, shape index: {}]
  %s9 = inlined_call_operand.vmem [shape: bf16[16,32], index: 9, kind: input, shape index: {}]
  %s10 = inlined_call_operand.vmem [shape: f32[1,32], index: 10, kind: input, shape index: {}]
  %s11 = inlined_call_operand.vmem [shape: bf16[32,512], index: 11, kind: input, shape index: {}]
  %s12 = inlined_call_operand.vmem [shape: bf16[512,32], index: 12, kind: input, shape index: {}]
  %s13 = inlined_call_operand.vmem [shape: bf16[512,128], index: 13, kind: input, shape index: {}]
  %s14 = inlined_call_operand.vmem [shape: f32[1,128], index: 14, kind: input, shape index: {}]
  %s15 = inlined_call_operand.vmem [shape: f32[1,128], index: 15, kind: input, shape index: {}]
  %s16 = inlined_call_operand.hbm [shape: f32[2,16,128], index: 16, kind: output, shape index: {}]
  %s17 = sld [smem:[#allocation0]]
  $region97: #{tpu_custom_call.1} parent=0
    _
  %s19 = ssub.s32 1, %s17
  %s20 = scalar_select 0, %s19, %s17
  $region1: #{tpu_custom_call.1} parent=0
    #allocation2 [shape = 'u8[16384]{0}', space=vmem, size = 0x4000, scoped, tag = 'output window, operand 0']
    #allocation3 [shape = 's32[2]{0}', space=sflag, size = 0x8, scoped, tag = 'scoped memory for tpu_custom_call.1']
    %21 = vsyncpa [#allocation3], 0
    %s22 = scalar_lea.sflag [#allocation3], 1
    %23 = vsyncpa %s22, 0
    loop: start=0, step=1, limit=4
    $region2: #{tpu_custom_call.1} parent=1 // loop_pre_header
      _
    $region3: #{tpu_custom_call.1} parent=1 // loop_header
      %s25 = sphi 0, %s29
      %p26 = scmp.ge.s32.totalorder %s25, 4
      %s35 = sphi 0, %s37
      %s38 = sphi 0, %s35
      %s39 = sphi 0, %s38
      %s55 = sphi 0, %s39
      %s59 = sphi 0, %s59
      %s61 = sphi 0, %s59
      %s62 = sphi 0, %s61
      %s76 = sphi 0, %s62
      %s80 = sphi 0, %s80
      %s82 = sphi 0, %s80
      %s83 = sphi 0, %s82
      %s97 = sphi 0, %s83
      %s101 = sphi 0, %s101
      %s103 = sphi 0, %s101
      %s104 = sphi 0, %s103
      %s118 = sphi 0, %s104
      %s122 = sphi 0, %s122
      %s124 = sphi 0, %s122
      %s125 = sphi 0, %s124
      %s139 = sphi 0, %s125
      %s143 = sphi 0, %s143
      %s145 = sphi 0, %s143
      %s146 = sphi 0, %s145
      %s160 = sphi 0, %s146
      %s164 = sphi 0, %s164
      %s166 = sphi 0, %s164
      %s167 = sphi 0, %s166
      %s181 = sphi 0, %s167
      %s185 = sphi 0, %s185
      %s187 = sphi 0, %s185
      %s188 = sphi 0, %s187
      %s202 = sphi 0, %s188
      %s206 = sphi 0, %s206
      %s208 = sphi 0, %s206
      %s209 = sphi 0, %s208
      %s223 = sphi 0, %s209
      %s227 = sphi 0, %s227
      %s229 = sphi 0, %s227
      %s230 = sphi 0, %s229
      %s244 = sphi 0, %s230
      %s248 = sphi 0, %s248
      %s250 = sphi 0, %s248
      %s251 = sphi 0, %s250
      %s265 = sphi 0, %s251
      %s269 = sphi 0, %s269
      %s271 = sphi 0, %s269
      %s272 = sphi 0, %s271
      %s286 = sphi 0, %s272
      %s290 = sphi 0, %s290
      %s292 = sphi 0, %s290
      %s293 = sphi 0, %s292
      %s307 = sphi 0, %s293
      %s311 = sphi 0, %s311
      %s313 = sphi 0, %s311
      %s314 = sphi 0, %s313
      %s328 = sphi 0, %s314
      %s332 = sphi 0, %s332
      %s334 = sphi 0, %s332
      %s335 = sphi 0, %s334
      %s349 = sphi 0, %s335
      %s353 = sphi 0, %s353
      %s355 = sphi 0, %s353
      %s356 = sphi 0, %s355
      %s370 = sphi 0, %s356
      %s376 = sphi 0, %s378
      %s379 = sphi 0, %s376
      %s380 = sphi 0, %s379
      %s396 = sphi 0, %s380
    $region4: #{tpu_custom_call.1} parent=1 // loop_header_branch
      %28 = sbr.rel (%p26) target = $region8
    $region5: #{tpu_custom_call.1} parent=1 // loop_body
      %s30 = ssub.s32 %s25, 1
      %s31 = ssub.s32 %s25, 2
      %s32 = sadd.s32 %s25, 1
      %s33 = ssub.s32 %s25, %s32
      %p34 = scmp.eq.s32.totalorder %s33, 0
      %s36 = sadd.s32 %s35, 1
      %s37 = scalar_select %p34, %s35, %s36
      %p40 = pneg %p34
      %p41 = scmp.eq.s32.totalorder %s25, 1
      %p42 = por %p40, %p41
      %p43 = scmp.ne.s32.totalorder %s35, %s38
      %p44 = scmp.eq.s32.totalorder %s25, 0
      %p45 = por %p43, %p44
      %p46 = scmp.ne.s32.totalorder %s35, %s38
      %p47 = scmp.eq.s32.totalorder %s30, 1
      %p48 = por %p46, %p47
      %p49 = scmp.ne.s32.totalorder %s38, %s39
      %p50 = scmp.eq.s32.totalorder %s30, 0
      %p51 = por %p49, %p50
      %p52 = scmp.ne.s32.totalorder %s38, %s39
      %p53 = scmp.eq.s32.totalorder %s31, 1
      %p54 = por %p52, %p53
      %p56 = scmp.ne.s32.totalorder %s39, %s55
      %p57 = scmp.eq.s32.totalorder %s31, 0
      %p58 = por %p56, %p57
      %s60 = sadd.s32 %s59, 1
      %p63 = scmp.eq.s32.totalorder %s25, 1
      %p64 = scmp.ne.s32.totalorder %s59, %s61
      %p65 = scmp.eq.s32.totalorder %s25, 0
      %p66 = por %p64, %p65
      %p67 = scmp.ne.s32.totalorder %s59, %s61
      %p68 = scmp.eq.s32.totalorder %s30, 1
      %p69 = por %p67, %p68
      %p70 = scmp.ne.s32.totalorder %s61, %s62
      %p71 = scmp.eq.s32.totalorder %s30, 0
      %p72 = por %p70, %p71
      %p73 = scmp.ne.s32.totalorder %s61, %s62
      %p74 = scmp.eq.s32.totalorder %s31, 1
      %p75 = por %p73, %p74
      %p77 = scmp.ne.s32.totalorder %s62, %s76
      %p78 = scmp.eq.s32.totalorder %s31, 0
      %p79 = por %p77, %p78
      %s81 = sadd.s32 %s80, 1
      %p84 = scmp.eq.s32.totalorder %s25, 1
      %p85 = scmp.ne.s32.totalorder %s80, %s82
      %p86 = scmp.eq.s32.totalorder %s25, 0
      %p87 = por %p85, %p86
      %p88 = scmp.ne.s32.totalorder %s80, %s82
      %p89 = scmp.eq.s32.totalorder %s30, 1
      %p90 = por %p88, %p89
      %p91 = scmp.ne.s32.totalorder %s82, %s83
      %p92 = scmp.eq.s32.totalorder %s30, 0
      %p93 = por %p91, %p92
      %p94 = scmp.ne.s32.totalorder %s82, %s83
      %p95 = scmp.eq.s32.totalorder %s31, 1
      %p96 = por %p94, %p95
      %p98 = scmp.ne.s32.totalorder %s83, %s97
      %p99 = scmp.eq.s32.totalorder %s31, 0
      %p100 = por %p98, %p99
      %s102 = sadd.s32 %s101, 1
      %p105 = scmp.eq.s32.totalorder %s25, 1
      %p106 = scmp.ne.s32.totalorder %s101, %s103
      %p107 = scmp.eq.s32.totalorder %s25, 0
      %p108 = por %p106, %p107
      %p109 = scmp.ne.s32.totalorder %s101, %s103
      %p110 = scmp.eq.s32.totalorder %s30, 1
      %p111 = por %p109, %p110
      %p112 = scmp.ne.s32.totalorder %s103, %s104
      %p113 = scmp.eq.s32.totalorder %s30, 0
      %p114 = por %p112, %p113
      %p115 = scmp.ne.s32.totalorder %s103, %s104
      %p116 = scmp.eq.s32.totalorder %s31, 1
      %p117 = por %p115, %p116
      %p119 = scmp.ne.s32.totalorder %s104, %s118
      %p120 = scmp.eq.s32.totalorder %s31, 0
      %p121 = por %p119, %p120
      %s123 = sadd.s32 %s122, 1
      %p126 = scmp.eq.s32.totalorder %s25, 1
      %p127 = scmp.ne.s32.totalorder %s122, %s124
      %p128 = scmp.eq.s32.totalorder %s25, 0
      %p129 = por %p127, %p128
      %p130 = scmp.ne.s32.totalorder %s122, %s124
      %p131 = scmp.eq.s32.totalorder %s30, 1
      %p132 = por %p130, %p131
      %p133 = scmp.ne.s32.totalorder %s124, %s125
      %p134 = scmp.eq.s32.totalorder %s30, 0
      %p135 = por %p133, %p134
      %p136 = scmp.ne.s32.totalorder %s124, %s125
      %p137 = scmp.eq.s32.totalorder %s31, 1
      %p138 = por %p136, %p137
      %p140 = scmp.ne.s32.totalorder %s125, %s139
      %p141 = scmp.eq.s32.totalorder %s31, 0
      %p142 = por %p140, %p141
      %s144 = sadd.s32 %s143, 1
      %p147 = scmp.eq.s32.totalorder %s25, 1
      %p148 = scmp.ne.s32.totalorder %s143, %s145
      %p149 = scmp.eq.s32.totalorder %s25, 0
      %p150 = por %p148, %p149
      %p151 = scmp.ne.s32.totalorder %s143, %s145
      %p152 = scmp.eq.s32.totalorder %s30, 1
      %p153 = por %p151, %p152
      %p154 = scmp.ne.s32.totalorder %s145, %s146
      %p155 = scmp.eq.s32.totalorder %s30, 0
      %p156 = por %p154, %p155
      %p157 = scmp.ne.s32.totalorder %s145, %s146
      %p158 = scmp.eq.s32.totalorder %s31, 1
      %p159 = por %p157, %p158
      %p161 = scmp.ne.s32.totalorder %s146, %s160
      %p162 = scmp.eq.s32.totalorder %s31, 0
      %p163 = por %p161, %p162
      %s165 = sadd.s32 %s164, 1
      %p168 = scmp.eq.s32.totalorder %s25, 1
      %p169 = scmp.ne.s32.totalorder %s164, %s166
      %p170 = scmp.eq.s32.totalorder %s25, 0
      %p171 = por %p169, %p170
      %p172 = scmp.ne.s32.totalorder %s164, %s166
      %p173 = scmp.eq.s32.totalorder %s30, 1
      %p174 = por %p172, %p173
      %p175 = scmp.ne.s32.totalorder %s166, %s167
      %p176 = scmp.eq.s32.totalorder %s30, 0
      %p177 = por %p175, %p176
      %p178 = scmp.ne.s32.totalorder %s166, %s167
      %p179 = scmp.eq.s32.totalorder %s31, 1
      %p180 = por %p178, %p179
      %p182 = scmp.ne.s32.totalorder %s167, %s181
      %p183 = scmp.eq.s32.totalorder %s31, 0
      %p184 = por %p182, %p183
      %s186 = sadd.s32 %s185, 1
      %p189 = scmp.eq.s32.totalorder %s25, 1
      %p190 = scmp.ne.s32.totalorder %s185, %s187
      %p191 = scmp.eq.s32.totalorder %s25, 0
      %p192 = por %p190, %p191
      %p193 = scmp.ne.s32.totalorder %s185, %s187
      %p194 = scmp.eq.s32.totalorder %s30, 1
      %p195 = por %p193, %p194
      %p196 = scmp.ne.s32.totalorder %s187, %s188
      %p197 = scmp.eq.s32.totalorder %s30, 0
      %p198 = por %p196, %p197
      %p199 = scmp.ne.s32.totalorder %s187, %s188
      %p200 = scmp.eq.s32.totalorder %s31, 1
      %p201 = por %p199, %p200
      %p203 = scmp.ne.s32.totalorder %s188, %s202
      %p204 = scmp.eq.s32.totalorder %s31, 0
      %p205 = por %p203, %p204
      %s207 = sadd.s32 %s206, 1
      %p210 = scmp.eq.s32.totalorder %s25, 1
      %p211 = scmp.ne.s32.totalorder %s206, %s208
      %p212 = scmp.eq.s32.totalorder %s25, 0
      %p213 = por %p211, %p212
      %p214 = scmp.ne.s32.totalorder %s206, %s208
      %p215 = scmp.eq.s32.totalorder %s30, 1
      %p216 = por %p214, %p215
      %p217 = scmp.ne.s32.totalorder %s208, %s209
      %p218 = scmp.eq.s32.totalorder %s30, 0
      %p219 = por %p217, %p218
      %p220 = scmp.ne.s32.totalorder %s208, %s209
      %p221 = scmp.eq.s32.totalorder %s31, 1
      %p222 = por %p220, %p221
      %p224 = scmp.ne.s32.totalorder %s209, %s223
      %p225 = scmp.eq.s32.totalorder %s31, 0
      %p226 = por %p224, %p225
      %s228 = sadd.s32 %s227, 1
      %p231 = scmp.eq.s32.totalorder %s25, 1
      %p232 = scmp.ne.s32.totalorder %s227, %s229
      %p233 = scmp.eq.s32.totalorder %s25, 0
      %p234 = por %p232, %p233
      %p235 = scmp.ne.s32.totalorder %s227, %s229
      %p236 = scmp.eq.s32.totalorder %s30, 1
      %p237 = por %p235, %p236
      %p238 = scmp.ne.s32.totalorder %s229, %s230
      %p239 = scmp.eq.s32.totalorder %s30, 0
      %p240 = por %p238, %p239
      %p241 = scmp.ne.s32.totalorder %s229, %s230
      %p242 = scmp.eq.s32.totalorder %s31, 1
      %p243 = por %p241, %p242
      %p245 = scmp.ne.s32.totalorder %s230, %s244
      %p246 = scmp.eq.s32.totalorder %s31, 0
      %p247 = por %p245, %p246
      %s249 = sadd.s32 %s248, 1
      %p252 = scmp.eq.s32.totalorder %s25, 1
      %p253 = scmp.ne.s32.totalorder %s248, %s250
      %p254 = scmp.eq.s32.totalorder %s25, 0
      %p255 = por %p253, %p254
      %p256 = scmp.ne.s32.totalorder %s248, %s250
      %p257 = scmp.eq.s32.totalorder %s30, 1
      %p258 = por %p256, %p257
      %p259 = scmp.ne.s32.totalorder %s250, %s251
      %p260 = scmp.eq.s32.totalorder %s30, 0
      %p261 = por %p259, %p260
      %p262 = scmp.ne.s32.totalorder %s250, %s251
      %p263 = scmp.eq.s32.totalorder %s31, 1
      %p264 = por %p262, %p263
      %p266 = scmp.ne.s32.totalorder %s251, %s265
      %p267 = scmp.eq.s32.totalorder %s31, 0
      %p268 = por %p266, %p267
      %s270 = sadd.s32 %s269, 1
      %p273 = scmp.eq.s32.totalorder %s25, 1
      %p274 = scmp.ne.s32.totalorder %s269, %s271
      %p275 = scmp.eq.s32.totalorder %s25, 0
      %p276 = por %p274, %p275
      %p277 = scmp.ne.s32.totalorder %s269, %s271
      %p278 = scmp.eq.s32.totalorder %s30, 1
      %p279 = por %p277, %p278
      %p280 = scmp.ne.s32.totalorder %s271, %s272
      %p281 = scmp.eq.s32.totalorder %s30, 0
      %p282 = por %p280, %p281
      %p283 = scmp.ne.s32.totalorder %s271, %s272
      %p284 = scmp.eq.s32.totalorder %s31, 1
      %p285 = por %p283, %p284
      %p287 = scmp.ne.s32.totalorder %s272, %s286
      %p288 = scmp.eq.s32.totalorder %s31, 0
      %p289 = por %p287, %p288
      %s291 = sadd.s32 %s290, 1
      %p294 = scmp.eq.s32.totalorder %s25, 1
      %p295 = scmp.ne.s32.totalorder %s290, %s292
      %p296 = scmp.eq.s32.totalorder %s25, 0
      %p297 = por %p295, %p296
      %p298 = scmp.ne.s32.totalorder %s290, %s292
      %p299 = scmp.eq.s32.totalorder %s30, 1
      %p300 = por %p298, %p299
      %p301 = scmp.ne.s32.totalorder %s292, %s293
      %p302 = scmp.eq.s32.totalorder %s30, 0
      %p303 = por %p301, %p302
      %p304 = scmp.ne.s32.totalorder %s292, %s293
      %p305 = scmp.eq.s32.totalorder %s31, 1
      %p306 = por %p304, %p305
      %p308 = scmp.ne.s32.totalorder %s293, %s307
      %p309 = scmp.eq.s32.totalorder %s31, 0
      %p310 = por %p308, %p309
      %s312 = sadd.s32 %s311, 1
      %p315 = scmp.eq.s32.totalorder %s25, 1
      %p316 = scmp.ne.s32.totalorder %s311, %s313
      %p317 = scmp.eq.s32.totalorder %s25, 0
      %p318 = por %p316, %p317
      %p319 = scmp.ne.s32.totalorder %s311, %s313
      %p320 = scmp.eq.s32.totalorder %s30, 1
      %p321 = por %p319, %p320
      %p322 = scmp.ne.s32.totalorder %s313, %s314
      %p323 = scmp.eq.s32.totalorder %s30, 0
      %p324 = por %p322, %p323
      %p325 = scmp.ne.s32.totalorder %s313, %s314
      %p326 = scmp.eq.s32.totalorder %s31, 1
      %p327 = por %p325, %p326
      %p329 = scmp.ne.s32.totalorder %s314, %s328
      %p330 = scmp.eq.s32.totalorder %s31, 0
      %p331 = por %p329, %p330
      %s333 = sadd.s32 %s332, 1
      %p336 = scmp.eq.s32.totalorder %s25, 1
      %p337 = scmp.ne.s32.totalorder %s332, %s334
      %p338 = scmp.eq.s32.totalorder %s25, 0
      %p339 = por %p337, %p338
      %p340 = scmp.ne.s32.totalorder %s332, %s334
      %p341 = scmp.eq.s32.totalorder %s30, 1
      %p342 = por %p340, %p341
      %p343 = scmp.ne.s32.totalorder %s334, %s335
      %p344 = scmp.eq.s32.totalorder %s30, 0
      %p345 = por %p343, %p344
      %p346 = scmp.ne.s32.totalorder %s334, %s335
      %p347 = scmp.eq.s32.totalorder %s31, 1
      %p348 = por %p346, %p347
      %p350 = scmp.ne.s32.totalorder %s335, %s349
      %p351 = scmp.eq.s32.totalorder %s31, 0
      %p352 = por %p350, %p351
      %s354 = sadd.s32 %s353, 1
      %p357 = scmp.eq.s32.totalorder %s25, 1
      %p358 = scmp.ne.s32.totalorder %s353, %s355
      %p359 = scmp.eq.s32.totalorder %s25, 0
      %p360 = por %p358, %p359
      %p361 = scmp.ne.s32.totalorder %s353, %s355
      %p362 = scmp.eq.s32.totalorder %s30, 1
      %p363 = por %p361, %p362
      %p364 = scmp.ne.s32.totalorder %s355, %s356
      %p365 = scmp.eq.s32.totalorder %s30, 0
      %p366 = por %p364, %p365
      %p367 = scmp.ne.s32.totalorder %s355, %s356
      %p368 = scmp.eq.s32.totalorder %s31, 1
      %p369 = por %p367, %p368
      %p371 = scmp.ne.s32.totalorder %s356, %s370
      %p372 = scmp.eq.s32.totalorder %s31, 0
      %p373 = por %p371, %p372
      %s374 = ssub.s32 %s25, %s32
      %p375 = scmp.eq.s32.totalorder %s374, 0
      %s377 = sadd.s32 %s376, 1
      %s378 = scalar_select %p375, %s376, %s377
      %p381 = pneg %p375
      %p382 = scmp.eq.s32.totalorder %s25, 1
      %p383 = por %p381, %p382
      %p384 = scmp.ne.s32.totalorder %s376, %s379
      %p385 = scmp.eq.s32.totalorder %s25, 0
      %p386 = por %p384, %p385
      %p387 = scmp.ne.s32.totalorder %s376, %s379
      %p388 = scmp.eq.s32.totalorder %s30, 1
      %p389 = por %p387, %p388
      %p390 = scmp.ne.s32.totalorder %s379, %s380
      %p391 = scmp.eq.s32.totalorder %s30, 0
      %p392 = por %p390, %p391
      %p393 = scmp.ne.s32.totalorder %s379, %s380
      %p394 = scmp.eq.s32.totalorder %s31, 1
      %p395 = por %p393, %p394
      %p397 = scmp.ne.s32.totalorder %s380, %s396
      %p398 = scmp.eq.s32.totalorder %s31, 0
      %p399 = por %p397, %p398
      %p400 = scmp.le.s32.totalorder 1, %s25
      %p401 = scmp.lt.s32.totalorder %s25, 3
      %p402 = pnand %p400, %p401
      %p403 = pneg %p402
      // Predicated region
      $region9: #{tpu_custom_call.1} parent=5 // pred_check
        _
      $region10: #{tpu_custom_call.1} parent=5 // pred_check_branch
        %405 = sbr.rel (%p402) target = $region12
      $region11: #{tpu_custom_call.1} parent=5 // pred_region
        %s406 = ssub.s32 %s25, 1
        // Predicated region
        $region13: #{tpu_custom_call.1} parent=11 // pred_check
          %p407 = pneg %p72
        $region14: #{tpu_custom_call.1} parent=11 // pred_check_branch
          %409 = sbr.rel (%p407) target = $region16
        $region15: #{tpu_custom_call.1} parent=11 // pred_region
          _
        $region16: #{tpu_custom_call.1} parent=11 // pred_fallthru
          _
        // Predicated region
        $region17: #{tpu_custom_call.1} parent=11 // pred_check
          %p410 = pneg %p93
        $region18: #{tpu_custom_call.1} parent=11 // pred_check_branch
          %412 = sbr.rel (%p410) target = $region20
        $region19: #{tpu_custom_call.1} parent=11 // pred_region
          _
        $region20: #{tpu_custom_call.1} parent=11 // pred_fallthru
          _
        // Predicated region
        $region21: #{tpu_custom_call.1} parent=11 // pred_check
          %p413 = pneg %p114
        $region22: #{tpu_custom_call.1} parent=11 // pred_check_branch
          %415 = sbr.rel (%p413) target = $region24
        $region23: #{tpu_custom_call.1} parent=11 // pred_region
          _
        $region24: #{tpu_custom_call.1} parent=11 // pred_fallthru
          _
        // Predicated region
        $region25: #{tpu_custom_call.1} parent=11 // pred_check
          %p416 = pneg %p135
        $region26: #{tpu_custom_call.1} parent=11 // pred_check_branch
          %418 = sbr.rel (%p416) target = $region28
        $region27: #{tpu_custom_call.1} parent=11 // pred_region
          _
        $region28: #{tpu_custom_call.1} parent=11 // pred_fallthru
          _
        // Predicated region
        $region29: #{tpu_custom_call.1} parent=11 // pred_check
          %p419 = pneg %p156
        $region30: #{tpu_custom_call.1} parent=11 // pred_check_branch
          %421 = sbr.rel (%p419) target = $region32
        $region31: #{tpu_custom_call.1} parent=11 // pred_region
          _
        $region32: #{tpu_custom_call.1} parent=11 // pred_fallthru
          _
        // Predicated region
        $region33: #{tpu_custom_call.1} parent=11 // pred_check
          %p422 = pneg %p177
        $region34: #{tpu_custom_call.1} parent=11 // pred_check_branch
          %424 = sbr.rel (%p422) target = $region36
        $region35: #{tpu_custom_call.1} parent=11 // pred_region
          _
        $region36: #{tpu_custom_call.1} parent=11 // pred_fallthru
          _
        // Predicated region
        $region37: #{tpu_custom_call.1} parent=11 // pred_check
          %p425 = pneg %p198
        $region38: #{tpu_custom_call.1} parent=11 // pred_check_branch
          %427 = sbr.rel (%p425) target = $region40
        $region39: #{tpu_custom_call.1} parent=11 // pred_region
          _
        $region40: #{tpu_custom_call.1} parent=11 // pred_fallthru
          _
        // Predicated region
        $region41: #{tpu_custom_call.1} parent=11 // pred_check
          %p428 = pneg %p219
        $region42: #{tpu_custom_call.1} parent=11 // pred_check_branch
          %430 = sbr.rel (%p428) target = $region44
        $region43: #{tpu_custom_call.1} parent=11 // pred_region
          _
        $region44: #{tpu_custom_call.1} parent=11 // pred_fallthru
          _
        // Predicated region
        $region45: #{tpu_custom_call.1} parent=11 // pred_check
          %p431 = pneg %p240
        $region46: #{tpu_custom_call.1} parent=11 // pred_check_branch
          %433 = sbr.rel (%p431) target = $region48
        $region47: #{tpu_custom_call.1} parent=11 // pred_region
          _
        $region48: #{tpu_custom_call.1} parent=11 // pred_fallthru
          _
        // Predicated region
        $region49: #{tpu_custom_call.1} parent=11 // pred_check
          %p434 = pneg %p261
        $region50: #{tpu_custom_call.1} parent=11 // pred_check_branch
          %436 = sbr.rel (%p434) target = $region52
        $region51: #{tpu_custom_call.1} parent=11 // pred_region
          _
        $region52: #{tpu_custom_call.1} parent=11 // pred_fallthru
          _
        // Predicated region
        $region53: #{tpu_custom_call.1} parent=11 // pred_check
          %p437 = pneg %p282
        $region54: #{tpu_custom_call.1} parent=11 // pred_check_branch
          %439 = sbr.rel (%p437) target = $region56
        $region55: #{tpu_custom_call.1} parent=11 // pred_region
          _
        $region56: #{tpu_custom_call.1} parent=11 // pred_fallthru
          _
        // Predicated region
        $region57: #{tpu_custom_call.1} parent=11 // pred_check
          %p440 = pneg %p303
        $region58: #{tpu_custom_call.1} parent=11 // pred_check_branch
          %442 = sbr.rel (%p440) target = $region60
        $region59: #{tpu_custom_call.1} parent=11 // pred_region
          _
        $region60: #{tpu_custom_call.1} parent=11 // pred_fallthru
          _
        // Predicated region
        $region61: #{tpu_custom_call.1} parent=11 // pred_check
          %p443 = pneg %p324
        $region62: #{tpu_custom_call.1} parent=11 // pred_check_branch
          %445 = sbr.rel (%p443) target = $region64
        $region63: #{tpu_custom_call.1} parent=11 // pred_region
          _
        $region64: #{tpu_custom_call.1} parent=11 // pred_fallthru
          _
        // Predicated region
        $region65: #{tpu_custom_call.1} parent=11 // pred_check
          %p446 = pneg %p345
        $region66: #{tpu_custom_call.1} parent=11 // pred_check_branch
          %448 = sbr.rel (%p446) target = $region68
        $region67: #{tpu_custom_call.1} parent=11 // pred_region
          _
        $region68: #{tpu_custom_call.1} parent=11 // pred_fallthru
          _
        // Predicated region
        $region69: #{tpu_custom_call.1} parent=11 // pred_check
          %p449 = pneg %p366
        $region70: #{tpu_custom_call.1} parent=11 // pred_check_branch
          %451 = sbr.rel (%p449) target = $region72
        $region71: #{tpu_custom_call.1} parent=11 // pred_region
          _
        $region72: #{tpu_custom_call.1} parent=11 // pred_fallthru
          _
      $region12: #{tpu_custom_call.1} parent=5 // pred_fallthru
        _
      %p452 = scmp.lt.s32.totalorder %s25, 2
      // Predicated region
      $region73: #{tpu_custom_call.1} parent=5 // pred_check
        %p453 = pneg %p452
      $region74: #{tpu_custom_call.1} parent=5 // pred_check_branch
        %455 = sbr.rel (%p453) target = $region76
      $region75: #{tpu_custom_call.1} parent=5 // pred_region
        // Predicated region
        $region77: #{tpu_custom_call.1} parent=75 // pred_check
          %p456 = pneg %p45
        $region78: #{tpu_custom_call.1} parent=75 // pred_check_branch
          %458 = sbr.rel (%p456) target = $region80
        $region79: #{tpu_custom_call.1} parent=75 // pred_region
          %p459 = scmp.lt.s32.totalorder %s25, 1
          %s460 = scalar_select %p459, %s25, 1
          %s461 = smul.addr %s460, 3
          %s462 = smul.addr %s461, 4
          %s463 = scalar_lea.vmem %s0, %s462
        $region80: #{tpu_custom_call.1} parent=75 // pred_fallthru
          _
      $region76: #{tpu_custom_call.1} parent=5 // pred_fallthru
        _
      %p464 = scmp.le.s32.totalorder 1, %s25
      %p465 = scmp.lt.s32.totalorder %s25, 3
      %p466 = pnand %p464, %p465
      %p467 = pneg %p466
      // Predicated region
      $region81: #{tpu_custom_call.1} parent=5 // pred_check
        _
      $region82: #{tpu_custom_call.1} parent=5 // pred_check_branch
        %469 = sbr.rel (%p466) target = $region84
      $region83: #{tpu_custom_call.1} parent=5 // pred_region
        %s470 = ssub.s32 %s25, 1
        %p471 = scmp.lt.s32.totalorder %s30, 1
        %s472 = scalar_select %p471, %s30, 1
        %s473 = smul.addr %s472, 3
        %s474 = smul.addr %s473, 4
        %s475 = scalar_lea.vmem %s0, %s474
        %p476 = pneg %p51
        %p477 = pneg %p48
        %p478 = pneg %p72
        %p479 = pneg %p69
        %p480 = pneg %p93
        %p481 = pneg %p90
        %p482 = pneg %p114
        %p483 = pneg %p111
        %p484 = pneg %p135
        %p485 = pneg %p132
        %p486 = pneg %p156
        %p487 = pneg %p153
        %p488 = pneg %p177
        %p489 = pneg %p174
        %p490 = pneg %p198
        %p491 = pneg %p195
        %p492 = pneg %p219
        %p493 = pneg %p216
        %p494 = pneg %p240
        %p495 = pneg %p237
        %p496 = pneg %p261
        %p497 = pneg %p258
        %p498 = pneg %p282
        %p499 = pneg %p279
        %p500 = pneg %p303
        %p501 = pneg %p300
        %p502 = pneg %p324
        %p503 = pneg %p321
        %p504 = pneg %p345
        %p505 = pneg %p342
        %p506 = pneg %p366
        %p507 = pneg %p363
        %p508 = pneg %p392
        %p509 = pneg %p389
        %s510 = sand.u32 %s379, 1
        %s511 = scalar_lea.sflag [#allocation3], %s510
        %s512 = sand.u32 %s379, 1
        %s513 = smul.addr %s512, 16
        %s514 = scalar_lea.vmem [#allocation2], %s513
        %p515 = scmp.lt.s32.totalorder %s30, 1
        %s516 = scalar_select %p515, %s30, 1
        %s517 = smul.addr %s516, 3
        %s518 = smul.addr %s517, 4
        %s519 = scalar_lea.vmem %s0, %s518
        %v522 = vld [vmem:[%s519] sm:$0xf]
        %v523 = vld [vmem:[%s519 + $0x4] sm:$0xf]
        %v524 = vld [vmem:[%s519 + $0x8] sm:$0x1]
        %v525 = vld [vmem:[%s519] sm:$0xe]
        %v528 = vunpack.c.l.b16 %v522
        %v529 = vunpack.c.l.b16 %v523
        %v530 = vpack.c.b16 %v529, %v528
        %v533 = vunpack.c.l.b16 %v524
        %v534 = vpack.c.b16 %v533, %v533
        %vm535 = vsmask.f32 7424
        %v537 = vshrl.u32 %v530, 16
        %v539 = vshll.u32 %v530, 16
        %v541 = vrot.slane %v539, 1
        %v542 = vor.u32 %v537, %v541
        %v544 = vshll.u32 %v534, 16
        %v546 = vrot.slane %v544, 1
        %v547 = vsel %vm535, %v542, %v546
        %v550 = vunpack.c.l.b16 %v525
        %v551 = vpack.c.b16 %v529, %v550
        %vm552 = vcmask 1046528
        %v553 = vrot.slane %v551, 1
        %v554 = vrot.slane %v534, 1
        %v555 = vsel %vm552, %v553, %v554
        %v557 = vld [vmem:[%s1] sm:$0xff]
        %v558 = vld [vmem:[%s1 + $0x8] sm:$0xff]
        %v559 = vld [vmem:[%s1 + $0x10] sm:$0xf]
        %v560 = vld [vmem:[%s1 + $0x14] sm:$0xff]
        %v561 = vld [vmem:[%s1 + $0x1c] sm:$0xff]
        %v562 = vld [vmem:[%s1 + $0x24] sm:$0xf]
        %v563 = vld [vmem:[%s1 + $0x28] sm:$0xff]
        %v564 = vld [vmem:[%s1 + $0x30] sm:$0xff]
        %v565 = vld [vmem:[%s1 + $0x38] sm:$0xf]
        %v566 = vld [vmem:[%s1 + $0x3c] sm:$0xff]
        %v567 = vld [vmem:[%s1 + $0x44] sm:$0xff]
        %v568 = vld [vmem:[%s1 + $0x4c] sm:$0xf]
        %v569 = vld [vmem:[%s1 + $0x50] sm:$0xff]
        %v570 = vld [vmem:[%s1 + $0x58] sm:$0xff]
        %v571 = vld [vmem:[%s1 + $0x60] sm:$0xf]
        %v572 = vld [vmem:[%s1 + $0x64] sm:$0xff]
        %v573 = vld [vmem:[%s1 + $0x6c] sm:$0xff]
        %v574 = vld [vmem:[%s1 + $0x74] sm:$0xf]
        %v575 = vld [vmem:[%s1 + $0x78] sm:$0xff]
        %v576 = vld [vmem:[%s1 + $0x80] sm:$0xff]
        %v577 = vld [vmem:[%s1 + $0x88] sm:$0xf]
        %v578 = vld [vmem:[%s1 + $0x8c] sm:$0xff]
        %v579 = vld [vmem:[%s1 + $0x94] sm:$0xff]
        %v580 = vld [vmem:[%s1 + $0x9c] sm:$0xf]
        %v581 = vld [vmem:[%s1 + $0xa0] sm:$0xff]
        %v582 = vld [vmem:[%s1 + $0xa8] sm:$0xff]
        %v583 = vld [vmem:[%s1 + $0xb0] sm:$0xf]
        %v584 = vld [vmem:[%s1 + $0xb4] sm:$0xff]
        %v585 = vld [vmem:[%s1 + $0xbc] sm:$0xff]
        %v586 = vld [vmem:[%s1 + $0xc4] sm:$0xf]
        %v587 = vld [vmem:[%s1 + $0xc8] sm:$0xff]
        %v588 = vld [vmem:[%s1 + $0xd0] sm:$0xff]
        %v589 = vld [vmem:[%s1 + $0xd8] sm:$0xf]
        %v590 = vld [vmem:[%s1 + $0xdc] sm:$0xff]
        %v591 = vld [vmem:[%s1 + $0xe4] sm:$0xff]
        %v592 = vld [vmem:[%s1 + $0xec] sm:$0xf]
        %v593 = vld [vmem:[%s1 + $0xf0] sm:$0xff]
        %v594 = vld [vmem:[%s1 + $0xf8] sm:$0xff]
        %v595 = vld [vmem:[%s1 + $0x100] sm:$0xf]
        %v596 = vld [vmem:[%s1 + $0x104] sm:$0xff]
        %v597 = vld [vmem:[%s1 + $0x10c] sm:$0xff]
        %v598 = vld [vmem:[%s1 + $0x114] sm:$0xf]
        %v599 = vld [vmem:[%s1 + $0x118] sm:$0xff]
        %v600 = vld [vmem:[%s1 + $0x120] sm:$0xff]
        %v601 = vld [vmem:[%s1 + $0x128] sm:$0xf]
        %v602 = vld [vmem:[%s1 + $0x12c] sm:$0xff]
        %v603 = vld [vmem:[%s1 + $0x134] sm:$0xff]
        %v604 = vld [vmem:[%s1 + $0x13c] sm:$0xf]
        %v605 = vld [vmem:[%s1 + $0x140] sm:$0xff]
        %v606 = vld [vmem:[%s1 + $0x148] sm:$0xff]
        %v607 = vld [vmem:[%s1 + $0x150] sm:$0xf]
        %v608 = vld [vmem:[%s1 + $0x154] sm:$0xff]
        %v609 = vld [vmem:[%s1 + $0x15c] sm:$0xff]
        %v610 = vld [vmem:[%s1 + $0x164] sm:$0xf]
        %v611 = vld [vmem:[%s1 + $0x168] sm:$0xff]
        %v612 = vld [vmem:[%s1 + $0x170] sm:$0xff]
        %v613 = vld [vmem:[%s1 + $0x178] sm:$0xf]
        %v614 = vld [vmem:[%s1 + $0x17c] sm:$0xff]
        %v615 = vld [vmem:[%s1 + $0x184] sm:$0xff]
        %v616 = vld [vmem:[%s1 + $0x18c] sm:$0xf]
        %v617 = vld [vmem:[%s1 + $0x190] sm:$0xff]
        %v618 = vld [vmem:[%s1 + $0x198] sm:$0xff]
        %v619 = vld [vmem:[%s1 + $0x1a0] sm:$0xf]
        %v620 = vld [vmem:[%s1 + $0x1a4] sm:$0xff]
        %v621 = vld [vmem:[%s1 + $0x1ac] sm:$0xff]
        %v622 = vld [vmem:[%s1 + $0x1b4] sm:$0xf]
        %v623 = vld [vmem:[%s1 + $0x1b8] sm:$0xff]
        %v624 = vld [vmem:[%s1 + $0x1c0] sm:$0xff]
        %v625 = vld [vmem:[%s1 + $0x1c8] sm:$0xf]
        %v626 = vld [vmem:[%s1 + $0x1cc] sm:$0xff]
        %v627 = vld [vmem:[%s1 + $0x1d4] sm:$0xff]
        %v628 = vld [vmem:[%s1 + $0x1dc] sm:$0xf]
        %v629 = vld [vmem:[%s1 + $0x1e0] sm:$0xff]
        %v630 = vld [vmem:[%s1 + $0x1e8] sm:$0xff]
        %v631 = vld [vmem:[%s1 + $0x1f0] sm:$0xf]
        %v632 = vld [vmem:[%s1 + $0x1f4] sm:$0xff]
        %v633 = vld [vmem:[%s1 + $0x1fc] sm:$0xff]
        %v634 = vld [vmem:[%s1 + $0x204] sm:$0xf]
        %v635 = vld [vmem:[%s1 + $0x208] sm:$0xff]
        %v636 = vld [vmem:[%s1 + $0x210] sm:$0xff]
        %v637 = vld [vmem:[%s1 + $0x218] sm:$0xf]
        %v638 = vld [vmem:[%s1 + $0x21c] sm:$0xff]
        %v639 = vld [vmem:[%s1 + $0x224] sm:$0xff]
        %v640 = vld [vmem:[%s1 + $0x22c] sm:$0xf]
        %v641 = vld [vmem:[%s1 + $0x230] sm:$0xff]
        %v642 = vld [vmem:[%s1 + $0x238] sm:$0xff]
        %v643 = vld [vmem:[%s1 + $0x240] sm:$0xf]
        %v644 = vld [vmem:[%s1 + $0x244] sm:$0xff]
        %v645 = vld [vmem:[%s1 + $0x24c] sm:$0xff]
        %v646 = vld [vmem:[%s1 + $0x254] sm:$0xf]
        %v647 = vld [vmem:[%s1 + $0x258] sm:$0xff]
        %v648 = vld [vmem:[%s1 + $0x260] sm:$0xff]
        %v649 = vld [vmem:[%s1 + $0x268] sm:$0xf]
        %v650 = vld [vmem:[%s1 + $0x26c] sm:$0xff]
        %v651 = vld [vmem:[%s1 + $0x274] sm:$0xff]
        %v652 = vld [vmem:[%s1 + $0x27c] sm:$0xf]
        %v653 = vld [vmem:[%s1 + $0x280] sm:$0xff]
        %v654 = vld [vmem:[%s1 + $0x288] sm:$0xff]
        %v655 = vld [vmem:[%s1 + $0x290] sm:$0xf]
        %v656 = vld [vmem:[%s1 + $0x294] sm:$0xff]
        %v657 = vld [vmem:[%s1 + $0x29c] sm:$0xff]
        %v658 = vld [vmem:[%s1 + $0x2a4] sm:$0xf]
        %v659 = vld [vmem:[%s1 + $0x2a8] sm:$0xff]
        %v660 = vld [vmem:[%s1 + $0x2b0] sm:$0xff]
        %v661 = vld [vmem:[%s1 + $0x2b8] sm:$0xf]
        %v662 = vld [vmem:[%s1 + $0x2bc] sm:$0xff]
        %v663 = vld [vmem:[%s1 + $0x2c4] sm:$0xff]
        %v664 = vld [vmem:[%s1 + $0x2cc] sm:$0xf]
        %v665 = vld [vmem:[%s1 + $0x2d0] sm:$0xff]
        %v666 = vld [vmem:[%s1 + $0x2d8] sm:$0xff]
        %v667 = vld [vmem:[%s1 + $0x2e0] sm:$0xf]
        %v668 = vld [vmem:[%s1 + $0x2e4] sm:$0xff]
        %v669 = vld [vmem:[%s1 + $0x2ec] sm:$0xff]
        %v670 = vld [vmem:[%s1 + $0x2f4] sm:$0xf]
        %v671 = vld [vmem:[%s1 + $0x2f8] sm:$0xff]
        %v672 = vld [vmem:[%s1 + $0x300] sm:$0xff]
        %v673 = vld [vmem:[%s1 + $0x308] sm:$0xf]
        %v674 = vld [vmem:[%s1 + $0x30c] sm:$0xff]
        %v675 = vld [vmem:[%s1 + $0x314] sm:$0xff]
        %v676 = vld [vmem:[%s1 + $0x31c] sm:$0xf]
        %v677 = vld [vmem:[%s1 + $0x320] sm:$0xff]
        %v678 = vld [vmem:[%s1 + $0x328] sm:$0xff]
        %v679 = vld [vmem:[%s1 + $0x330] sm:$0xf]
        %v680 = vld [vmem:[%s1 + $0x334] sm:$0xff]
        %v681 = vld [vmem:[%s1 + $0x33c] sm:$0xff]
        %v682 = vld [vmem:[%s1 + $0x344] sm:$0xf]
        %v683 = vld [vmem:[%s1 + $0x348] sm:$0xff]
        %v684 = vld [vmem:[%s1 + $0x350] sm:$0xff]
        %v685 = vld [vmem:[%s1 + $0x358] sm:$0xf]
        %v686 = vld [vmem:[%s1 + $0x35c] sm:$0xff]
        %v687 = vld [vmem:[%s1 + $0x364] sm:$0xff]
        %v688 = vld [vmem:[%s1 + $0x36c] sm:$0xf]
        %v689 = vld [vmem:[%s1 + $0x370] sm:$0xff]
        %v690 = vld [vmem:[%s1 + $0x378] sm:$0xff]
        %v691 = vld [vmem:[%s1 + $0x380] sm:$0xf]
        %v692 = vld [vmem:[%s1 + $0x384] sm:$0xff]
        %v693 = vld [vmem:[%s1 + $0x38c] sm:$0xff]
        %v694 = vld [vmem:[%s1 + $0x394] sm:$0xf]
        %v695 = vld [vmem:[%s1 + $0x398] sm:$0xff]
        %v696 = vld [vmem:[%s1 + $0x3a0] sm:$0xff]
        %v697 = vld [vmem:[%s1 + $0x3a8] sm:$0xf]
        %v698 = vld [vmem:[%s1 + $0x3ac] sm:$0xff]
        %v699 = vld [vmem:[%s1 + $0x3b4] sm:$0xff]
        %v700 = vld [vmem:[%s1 + $0x3bc] sm:$0xf]
        %v845 = vunpack.c.l.b16 %v557
        %v846 = vunpack.c.h.b16 %v557
        %v847 = vunpack.c.l.b16 %v558
        %v848 = vunpack.c.h.b16 %v558
        %v849 = vunpack.c.l.b16 %v559
        %v850 = vunpack.c.l.b16 %v560
        %v851 = vunpack.c.h.b16 %v560
        %v852 = vunpack.c.l.b16 %v561
        %v853 = vunpack.c.h.b16 %v561
        %v854 = vunpack.c.l.b16 %v562
        %v855 = vunpack.c.l.b16 %v563
        %v856 = vunpack.c.h.b16 %v563
        %v857 = vunpack.c.l.b16 %v564
        %v858 = vunpack.c.h.b16 %v564
        %v859 = vunpack.c.l.b16 %v565
        %v860 = vunpack.c.l.b16 %v566
        %v861 = vunpack.c.h.b16 %v566
        %v862 = vunpack.c.l.b16 %v567
        %v863 = vunpack.c.h.b16 %v567
        %v864 = vunpack.c.l.b16 %v568
        %v865 = vunpack.c.l.b16 %v569
        %v866 = vunpack.c.h.b16 %v569
        %v867 = vunpack.c.l.b16 %v570
        %v868 = vunpack.c.h.b16 %v570
        %v869 = vunpack.c.l.b16 %v571
        %v870 = vunpack.c.l.b16 %v572
        %v871 = vunpack.c.h.b16 %v572
        %v872 = vunpack.c.l.b16 %v573
        %v873 = vunpack.c.h.b16 %v573
        %v874 = vunpack.c.l.b16 %v574
        %v875 = vunpack.c.l.b16 %v575
        %v876 = vunpack.c.h.b16 %v575
        %v877 = vunpack.c.l.b16 %v576
        %v878 = vunpack.c.h.b16 %v576
        %v879 = vunpack.c.l.b16 %v577
        %v880 = vunpack.c.l.b16 %v578
        %v881 = vunpack.c.h.b16 %v578
        %v882 = vunpack.c.l.b16 %v579
        %v883 = vunpack.c.h.b16 %v579
        %v884 = vunpack.c.l.b16 %v580
        %v885 = vunpack.c.l.b16 %v581
        %v886 = vunpack.c.h.b16 %v581
        %v887 = vunpack.c.l.b16 %v582
        %v888 = vunpack.c.h.b16 %v582
        %v889 = vunpack.c.l.b16 %v583
        %v890 = vunpack.c.l.b16 %v584
        %v891 = vunpack.c.h.b16 %v584
        %v892 = vunpack.c.l.b16 %v585
        %v893 = vunpack.c.h.b16 %v585
        %v894 = vunpack.c.l.b16 %v586
        %v895 = vunpack.c.l.b16 %v587
        %v896 = vunpack.c.h.b16 %v587
        %v897 = vunpack.c.l.b16 %v588
        %v898 = vunpack.c.h.b16 %v588
        %v899 = vunpack.c.l.b16 %v589
        %v900 = vunpack.c.l.b16 %v590
        %v901 = vunpack.c.h.b16 %v590
        %v902 = vunpack.c.l.b16 %v591
        %v903 = vunpack.c.h.b16 %v591
        %v904 = vunpack.c.l.b16 %v592
        %v905 = vunpack.c.l.b16 %v593
        %v906 = vunpack.c.h.b16 %v593
        %v907 = vunpack.c.l.b16 %v594
        %v908 = vunpack.c.h.b16 %v594
        %v909 = vunpack.c.l.b16 %v595
        %v910 = vunpack.c.l.b16 %v596
        %v911 = vunpack.c.h.b16 %v596
        %v912 = vunpack.c.l.b16 %v597
        %v913 = vunpack.c.h.b16 %v597
        %v914 = vunpack.c.l.b16 %v598
        %v915 = vunpack.c.l.b16 %v599
        %v916 = vunpack.c.h.b16 %v599
        %v917 = vunpack.c.l.b16 %v600
        %v918 = vunpack.c.h.b16 %v600
        %v919 = vunpack.c.l.b16 %v601
        %v920 = vunpack.c.l.b16 %v602
        %v921 = vunpack.c.h.b16 %v602
        %v922 = vunpack.c.l.b16 %v603
        %v923 = vunpack.c.h.b16 %v603
        %v924 = vunpack.c.l.b16 %v604
        %v925 = vunpack.c.l.b16 %v605
        %v926 = vunpack.c.h.b16 %v605
        %v927 = vunpack.c.l.b16 %v606
        %v928 = vunpack.c.h.b16 %v606
        %v929 = vunpack.c.l.b16 %v607
        %v930 = vunpack.c.l.b16 %v608
        %v931 = vunpack.c.h.b16 %v608
        %v932 = vunpack.c.l.b16 %v609
        %v933 = vunpack.c.h.b16 %v609
        %v934 = vunpack.c.l.b16 %v610
        %v935 = vunpack.c.l.b16 %v611
        %v936 = vunpack.c.h.b16 %v611
        %v937 = vunpack.c.l.b16 %v612
        %v938 = vunpack.c.h.b16 %v612
        %v939 = vunpack.c.l.b16 %v613
        %v940 = vunpack.c.l.b16 %v614
        %v941 = vunpack.c.h.b16 %v614
        %v942 = vunpack.c.l.b16 %v615
        %v943 = vunpack.c.h.b16 %v615
        %v944 = vunpack.c.l.b16 %v616
        %v945 = vunpack.c.l.b16 %v617
        %v946 = vunpack.c.h.b16 %v617
        %v947 = vunpack.c.l.b16 %v618
        %v948 = vunpack.c.h.b16 %v618
        %v949 = vunpack.c.l.b16 %v619
        %v950 = vunpack.c.l.b16 %v620
        %v951 = vunpack.c.h.b16 %v620
        %v952 = vunpack.c.l.b16 %v621
        %v953 = vunpack.c.h.b16 %v621
        %v954 = vunpack.c.l.b16 %v622
        %v955 = vunpack.c.l.b16 %v623
        %v956 = vunpack.c.h.b16 %v623
        %v957 = vunpack.c.l.b16 %v624
        %v958 = vunpack.c.h.b16 %v624
        %v959 = vunpack.c.l.b16 %v625
        %v960 = vunpack.c.l.b16 %v626
        %v961 = vunpack.c.h.b16 %v626
        %v962 = vunpack.c.l.b16 %v627
        %v963 = vunpack.c.h.b16 %v627
        %v964 = vunpack.c.l.b16 %v628
        %v965 = vunpack.c.l.b16 %v629
        %v966 = vunpack.c.h.b16 %v629
        %v967 = vunpack.c.l.b16 %v630
        %v968 = vunpack.c.h.b16 %v630
        %v969 = vunpack.c.l.b16 %v631
        %v970 = vunpack.c.l.b16 %v632
        %v971 = vunpack.c.h.b16 %v632
        %v972 = vunpack.c.l.b16 %v633
        %v973 = vunpack.c.h.b16 %v633
        %v974 = vunpack.c.l.b16 %v634
        %v975 = vunpack.c.l.b16 %v635
        %v976 = vunpack.c.h.b16 %v635
        %v977 = vunpack.c.l.b16 %v636
        %v978 = vunpack.c.h.b16 %v636
        %v979 = vunpack.c.l.b16 %v637
        %v980 = vunpack.c.l.b16 %v638
        %v981 = vunpack.c.h.b16 %v638
        %v982 = vunpack.c.l.b16 %v639
        %v983 = vunpack.c.h.b16 %v639
        %v984 = vunpack.c.l.b16 %v640
        %v985 = vunpack.c.l.b16 %v641
        %v986 = vunpack.c.h.b16 %v641
        %v987 = vunpack.c.l.b16 %v642
        %v988 = vunpack.c.h.b16 %v642
        %v989 = vunpack.c.l.b16 %v643
        %v990 = vunpack.c.l.b16 %v644
        %v991 = vunpack.c.h.b16 %v644
        %v992 = vunpack.c.l.b16 %v645
        %v993 = vunpack.c.h.b16 %v645
        %v994 = vunpack.c.l.b16 %v646
        %v995 = vunpack.c.l.b16 %v647
        %v996 = vunpack.c.h.b16 %v647
        %v997 = vunpack.c.l.b16 %v648
        %v998 = vunpack.c.h.b16 %v648
        %v999 = vunpack.c.l.b16 %v649
        %v1000 = vunpack.c.l.b16 %v650
        %v1001 = vunpack.c.h.b16 %v650
        %v1002 = vunpack.c.l.b16 %v651
        %v1003 = vunpack.c.h.b16 %v651
        %v1004 = vunpack.c.l.b16 %v652
        %v1005 = vunpack.c.l.b16 %v653
        %v1006 = vunpack.c.h.b16 %v653
        %v1007 = vunpack.c.l.b16 %v654
        %v1008 = vunpack.c.h.b16 %v654
        %v1009 = vunpack.c.l.b16 %v655
        %v1010 = vunpack.c.l.b16 %v656
        %v1011 = vunpack.c.h.b16 %v656
        %v1012 = vunpack.c.l.b16 %v657
        %v1013 = vunpack.c.h.b16 %v657
        %v1014 = vunpack.c.l.b16 %v658
        %v1015 = vunpack.c.l.b16 %v659
        %v1016 = vunpack.c.h.b16 %v659
        %v1017 = vunpack.c.l.b16 %v660
        %v1018 = vunpack.c.h.b16 %v660
        %v1019 = vunpack.c.l.b16 %v661
        %v1020 = vunpack.c.l.b16 %v662
        %v1021 = vunpack.c.h.b16 %v662
        %v1022 = vunpack.c.l.b16 %v663
        %v1023 = vunpack.c.h.b16 %v663
        %v1024 = vunpack.c.l.b16 %v664
        %v1025 = vunpack.c.l.b16 %v665
        %v1026 = vunpack.c.h.b16 %v665
        %v1027 = vunpack.c.l.b16 %v666
        %v1028 = vunpack.c.h.b16 %v666
        %v1029 = vunpack.c.l.b16 %v667
        %v1030 = vunpack.c.l.b16 %v668
        %v1031 = vunpack.c.h.b16 %v668
        %v1032 = vunpack.c.l.b16 %v669
        %v1033 = vunpack.c.h.b16 %v669
        %v1034 = vunpack.c.l.b16 %v670
        %v1035 = vunpack.c.l.b16 %v671
        %v1036 = vunpack.c.h.b16 %v671
        %v1037 = vunpack.c.l.b16 %v672
        %v1038 = vunpack.c.h.b16 %v672
        %v1039 = vunpack.c.l.b16 %v673
        %v1040 = vunpack.c.l.b16 %v674
        %v1041 = vunpack.c.h.b16 %v674
        %v1042 = vunpack.c.l.b16 %v675
        %v1043 = vunpack.c.h.b16 %v675
        %v1044 = vunpack.c.l.b16 %v676
        %v1045 = vunpack.c.l.b16 %v677
        %v1046 = vunpack.c.h.b16 %v677
        %v1047 = vunpack.c.l.b16 %v678
        %v1048 = vunpack.c.h.b16 %v678
        %v1049 = vunpack.c.l.b16 %v679
        %v1050 = vunpack.c.l.b16 %v680
        %v1051 = vunpack.c.h.b16 %v680
        %v1052 = vunpack.c.l.b16 %v681
        %v1053 = vunpack.c.h.b16 %v681
        %v1054 = vunpack.c.l.b16 %v682
        %v1055 = vunpack.c.l.b16 %v683
        %v1056 = vunpack.c.h.b16 %v683
        %v1057 = vunpack.c.l.b16 %v684
        %v1058 = vunpack.c.h.b16 %v684
        %v1059 = vunpack.c.l.b16 %v685
        %v1060 = vunpack.c.l.b16 %v686
        %v1061 = vunpack.c.h.b16 %v686
        %v1062 = vunpack.c.l.b16 %v687
        %v1063 = vunpack.c.h.b16 %v687
        %v1064 = vunpack.c.l.b16 %v688
        %v1065 = vunpack.c.l.b16 %v689
        %v1066 = vunpack.c.h.b16 %v689
        %v1067 = vunpack.c.l.b16 %v690
        %v1068 = vunpack.c.h.b16 %v690
        %v1069 = vunpack.c.l.b16 %v691
        %v1070 = vunpack.c.l.b16 %v692
        %v1071 = vunpack.c.h.b16 %v692
        %v1072 = vunpack.c.l.b16 %v693
        %v1073 = vunpack.c.h.b16 %v693
        %v1074 = vunpack.c.l.b16 %v694
        %v1075 = vunpack.c.l.b16 %v695
        %v1076 = vunpack.c.h.b16 %v695
        %v1077 = vunpack.c.l.b16 %v696
        %v1078 = vunpack.c.h.b16 %v696
        %v1079 = vunpack.c.l.b16 %v697
        %v1080 = vunpack.c.l.b16 %v698
        %v1081 = vunpack.c.h.b16 %v698
        %v1082 = vunpack.c.l.b16 %v699
        %v1083 = vunpack.c.h.b16 %v699
        %v1084 = vunpack.c.l.b16 %v700
        %v1085 = vpack.c.b16 %v850, %v845
        %v1086 = vpack.c.b16 %v851, %v846
        %v1087 = vpack.c.b16 %v852, %v847
        %v1088 = vpack.c.b16 %v853, %v848
        %v1089 = vpack.c.b16 %v854, %v849
        %v1090 = vpack.c.b16 %v860, %v855
        %v1091 = vpack.c.b16 %v861, %v856
        %v1092 = vpack.c.b16 %v862, %v857
        %v1093 = vpack.c.b16 %v863, %v858
        %v1094 = vpack.c.b16 %v864, %v859
        %v1095 = vpack.c.b16 %v870, %v865
        %v1096 = vpack.c.b16 %v871, %v866
        %v1097 = vpack.c.b16 %v872, %v867
        %v1098 = vpack.c.b16 %v873, %v868
        %v1099 = vpack.c.b16 %v874, %v869
        %v1100 = vpack.c.b16 %v880, %v875
        %v1101 = vpack.c.b16 %v881, %v876
        %v1102 = vpack.c.b16 %v882, %v877
        %v1103 = vpack.c.b16 %v883, %v878
        %v1104 = vpack.c.b16 %v884, %v879
        %v1105 = vpack.c.b16 %v890, %v885
        %v1106 = vpack.c.b16 %v891, %v886
        %v1107 = vpack.c.b16 %v892, %v887
        %v1108 = vpack.c.b16 %v893, %v888
        %v1109 = vpack.c.b16 %v894, %v889
        %v1110 = vpack.c.b16 %v900, %v895
        %v1111 = vpack.c.b16 %v901, %v896
        %v1112 = vpack.c.b16 %v902, %v897
        %v1113 = vpack.c.b16 %v903, %v898
        %v1114 = vpack.c.b16 %v904, %v899
        %v1115 = vpack.c.b16 %v910, %v905
        %v1116 = vpack.c.b16 %v911, %v906
        %v1117 = vpack.c.b16 %v912, %v907
        %v1118 = vpack.c.b16 %v913, %v908
        %v1119 = vpack.c.b16 %v914, %v909
        %v1120 = vpack.c.b16 %v920, %v915
        %v1121 = vpack.c.b16 %v921, %v916
        %v1122 = vpack.c.b16 %v922, %v917
        %v1123 = vpack.c.b16 %v923, %v918
        %v1124 = vpack.c.b16 %v924, %v919
        %v1125 = vpack.c.b16 %v930, %v925
        %v1126 = vpack.c.b16 %v931, %v926
        %v1127 = vpack.c.b16 %v932, %v927
        %v1128 = vpack.c.b16 %v933, %v928
        %v1129 = vpack.c.b16 %v934, %v929
        %v1130 = vpack.c.b16 %v940, %v935
        %v1131 = vpack.c.b16 %v941, %v936
        %v1132 = vpack.c.b16 %v942, %v937
        %v1133 = vpack.c.b16 %v943, %v938
        %v1134 = vpack.c.b16 %v944, %v939
        %v1135 = vpack.c.b16 %v950, %v945
        %v1136 = vpack.c.b16 %v951, %v946
        %v1137 = vpack.c.b16 %v952, %v947
        %v1138 = vpack.c.b16 %v953, %v948
        %v1139 = vpack.c.b16 %v954, %v949
        %v1140 = vpack.c.b16 %v960, %v955
        %v1141 = vpack.c.b16 %v961, %v956
        %v1142 = vpack.c.b16 %v962, %v957
        %v1143 = vpack.c.b16 %v963, %v958
        %v1144 = vpack.c.b16 %v964, %v959
        %v1145 = vpack.c.b16 %v970, %v965
        %v1146 = vpack.c.b16 %v971, %v966
        %v1147 = vpack.c.b16 %v972, %v967
        %v1148 = vpack.c.b16 %v973, %v968
        %v1149 = vpack.c.b16 %v974, %v969
        %v1150 = vpack.c.b16 %v980, %v975
        %v1151 = vpack.c.b16 %v981, %v976
        %v1152 = vpack.c.b16 %v982, %v977
        %v1153 = vpack.c.b16 %v983, %v978
        %v1154 = vpack.c.b16 %v984, %v979
        %v1155 = vpack.c.b16 %v990, %v985
        %v1156 = vpack.c.b16 %v991, %v986
        %v1157 = vpack.c.b16 %v992, %v987
        %v1158 = vpack.c.b16 %v993, %v988
        %v1159 = vpack.c.b16 %v994, %v989
        %v1160 = vpack.c.b16 %v1000, %v995
        %v1161 = vpack.c.b16 %v1001, %v996
        %v1162 = vpack.c.b16 %v1002, %v997
        %v1163 = vpack.c.b16 %v1003, %v998
        %v1164 = vpack.c.b16 %v1004, %v999
        %v1165 = vpack.c.b16 %v1010, %v1005
        %v1166 = vpack.c.b16 %v1011, %v1006
        %v1167 = vpack.c.b16 %v1012, %v1007
        %v1168 = vpack.c.b16 %v1013, %v1008
        %v1169 = vpack.c.b16 %v1014, %v1009
        %v1170 = vpack.c.b16 %v1020, %v1015
        %v1171 = vpack.c.b16 %v1021, %v1016
        %v1172 = vpack.c.b16 %v1022, %v1017
        %v1173 = vpack.c.b16 %v1023, %v1018
        %v1174 = vpack.c.b16 %v1024, %v1019
        %v1175 = vpack.c.b16 %v1030, %v1025
        %v1176 = vpack.c.b16 %v1031, %v1026
        %v1177 = vpack.c.b16 %v1032, %v1027
        %v1178 = vpack.c.b16 %v1033, %v1028
        %v1179 = vpack.c.b16 %v1034, %v1029
        %v1180 = vpack.c.b16 %v1040, %v1035
        %v1181 = vpack.c.b16 %v1041, %v1036
        %v1182 = vpack.c.b16 %v1042, %v1037
        %v1183 = vpack.c.b16 %v1043, %v1038
        %v1184 = vpack.c.b16 %v1044, %v1039
        %v1185 = vpack.c.b16 %v1050, %v1045
        %v1186 = vpack.c.b16 %v1051, %v1046
        %v1187 = vpack.c.b16 %v1052, %v1047
        %v1188 = vpack.c.b16 %v1053, %v1048
        %v1189 = vpack.c.b16 %v1054, %v1049
        %v1190 = vpack.c.b16 %v1060, %v1055
        %v1191 = vpack.c.b16 %v1061, %v1056
        %v1192 = vpack.c.b16 %v1062, %v1057
        %v1193 = vpack.c.b16 %v1063, %v1058
        %v1194 = vpack.c.b16 %v1064, %v1059
        %v1195 = vpack.c.b16 %v1070, %v1065
        %v1196 = vpack.c.b16 %v1071, %v1066
        %v1197 = vpack.c.b16 %v1072, %v1067
        %v1198 = vpack.c.b16 %v1073, %v1068
        %v1199 = vpack.c.b16 %v1074, %v1069
        %v1200 = vpack.c.b16 %v1080, %v1075
        %v1201 = vpack.c.b16 %v1081, %v1076
        %v1202 = vpack.c.b16 %v1082, %v1077
        %v1203 = vpack.c.b16 %v1083, %v1078
        %v1204 = vpack.c.b16 %v1084, %v1079
        %1325 = vmatprep.subr.bf16.mxu0 %v1086
        %1326 = vmatpush1.bf16.msra.mxu0 %v1085
        %1327 = vmatprep.subr.bf16.mxu0 %v1091
        %1328 = vmatpush1.bf16.msra.mxu0 %v1090
        %1329 = vmatprep.subr.bf16.mxu0 %v1096
        %1330 = vmatpush1.bf16.msra.mxu0 %v1095
        %1331 = vmatprep.subr.bf16.mxu0 %v1101
        %1332 = vmatpush1.bf16.msra.mxu0 %v1100
        %1333 = vmatprep.subr.bf16.mxu0 %v1106
        %1334 = vmatpush1.bf16.msra.mxu0 %v1105
        %1335 = vmatprep.subr.bf16.mxu0 %v1111
        %1336 = vmatpush1.bf16.msra.mxu0 %v1110
        %1337 = vmatprep.subr.bf16.mxu0 %v1116
        %1338 = vmatpush1.bf16.msra.mxu0 %v1115
        %1339 = vmatprep.subr.bf16.mxu0 %v1121
        %1340 = vmatpush1.bf16.msra.mxu0 %v1120
        %1341 = vmatprep.subr.bf16.mxu0 %v1126
        %1342 = vmatpush1.bf16.msra.mxu0 %v1125
        %1343 = vmatprep.subr.bf16.mxu0 %v1131
        %1344 = vmatpush1.bf16.msra.mxu0 %v1130
        %1345 = vmatprep.subr.bf16.mxu0 %v1136
        %1346 = vmatpush1.bf16.msra.mxu0 %v1135
        %1347 = vmatprep.subr.bf16.mxu0 %v1141
        %1348 = vmatpush1.bf16.msra.mxu0 %v1140
        %1349 = vmatprep.subr.bf16.mxu0 %v1146
        %1350 = vmatpush1.bf16.msra.mxu0 %v1145
        %1351 = vmatprep.subr.bf16.mxu0 %v1151
        %1352 = vmatpush1.bf16.msra.mxu0 %v1150
        %1353 = vmatprep.subr.bf16.mxu0 %v1156
        %1354 = vmatpush1.bf16.msra.mxu0 %v1155
        %1355 = vmatprep.subr.bf16.mxu0 %v1161
        %1356 = vmatpush1.bf16.msra.mxu0 %v1160
        %1357 = vmatprep.mubr.bf16.mxu0 %v547
        %1358 = vmatmul.mubr.bf16.gmra.mrb[0].mxu0 %v530
        %v1359 = vpop.f32.mrb[0].mxu0
        %v1360 = vadd.f32 0.0, %v1359
        %v1361 = vpop.f32.mrb[0].mxu0
        %v1362 = vadd.f32 0.0, %v1361
        %v1363 = vpop.f32.mrb[0].mxu0
        %v1364 = vadd.f32 0.0, %v1363
        %v1365 = vpop.f32.mrb[0].mxu0
        %v1366 = vadd.f32 0.0, %v1365
        %1367 = vdwg.mxu0
        %1368 = vmatprep.subr.bf16.mxu0 %v1166
        %1369 = vmatpush1.bf16.msra.mxu0 %v1165
        %1370 = vmatprep.subr.bf16.mxu0 %v1171
        %1371 = vmatpush1.bf16.msra.mxu0 %v1170
        %1372 = vmatprep.subr.bf16.mxu0 %v1176
        %1373 = vmatpush1.bf16.msra.mxu0 %v1175
        %1374 = vmatprep.subr.bf16.mxu0 %v1181
        %1375 = vmatpush1.bf16.msra.mxu0 %v1180
        %1376 = vmatprep.subr.bf16.mxu0 %v1186
        %1377 = vmatpush1.bf16.msra.mxu0 %v1185
        %1378 = vmatprep.subr.bf16.mxu0 %v1191
        %1379 = vmatpush1.bf16.msra.mxu0 %v1190
        %1380 = vmatprep.subr.bf16.mxu0 %v1196
        %1381 = vmatpush1.bf16.msra.mxu0 %v1195
        %1382 = vmatprep.subr.bf16.mxu0 %v1201
        %1383 = vmatpush1.bf16.msra.mxu0 %v1200
        %1384 = vmatprep.subr.bf16.mxu0 0
        %1385 = vmatpush1.bf16.msra.mxu0 0
        %1386 = vmatprep.subr.bf16.mxu0 0
        %1387 = vmatpush1.bf16.msra.mxu0 0
        %1388 = vmatprep.subr.bf16.mxu0 0
        %1389 = vmatpush1.bf16.msra.mxu0 0
        %1390 = vmatprep.subr.bf16.mxu0 0
        %1391 = vmatpush1.bf16.msra.mxu0 0
        %1392 = vmatprep.subr.bf16.mxu0 0
        %1393 = vmatpush1.bf16.msra.mxu0 0
        %1394 = vmatprep.subr.bf16.mxu0 0
        %1395 = vmatpush1.bf16.msra.mxu0 0
        %1396 = vmatprep.subr.bf16.mxu0 0
        %1397 = vmatpush1.bf16.msra.mxu0 0
        %1398 = vmatprep.subr.bf16.mxu0 0
        %1399 = vmatpush1.bf16.msra.mxu0 0
        %1400 = vmatprep.mubr.bf16.mxu0 0
        %1401 = vmatmul.mubr.bf16.gmra.mrb[0].mxu0 %v555
        %v1402 = vpop.f32.mrb[0].mxu0
        %v1403 = vadd.f32 %v1360, %v1402
        %v1404 = vpop.f32.mrb[0].mxu0
        %v1405 = vadd.f32 %v1362, %v1404
        %v1406 = vpop.f32.mrb[0].mxu0
        %v1407 = vadd.f32 %v1364, %v1406
        %v1408 = vpop.f32.mrb[0].mxu0
        %v1409 = vadd.f32 %v1366, %v1408
        %1410 = vdwg.mxu0
        %1411 = vmatprep.subr.bf16.mxu0 %v1088
        %1412 = vmatpush1.bf16.msra.mxu0 %v1087
        %1413 = vmatprep.subr.bf16.mxu0 %v1093
        %1414 = vmatpush1.bf16.msra.mxu0 %v1092
        %1415 = vmatprep.subr.bf16.mxu0 %v1098
        %1416 = vmatpush1.bf16.msra.mxu0 %v1097
        %1417 = vmatprep.subr.bf16.mxu0 %v1103
        %1418 = vmatpush1.bf16.msra.mxu0 %v1102
        %1419 = vmatprep.subr.bf16.mxu0 %v1108
        %1420 = vmatpush1.bf16.msra.mxu0 %v1107
        %1421 = vmatprep.subr.bf16.mxu0 %v1113
        %1422 = vmatpush1.bf16.msra.mxu0 %v1112
        %1423 = vmatprep.subr.bf16.mxu0 %v1118
        %1424 = vmatpush1.bf16.msra.mxu0 %v1117
        %1425 = vmatprep.subr.bf16.mxu0 %v1123
        %1426 = vmatpush1.bf16.msra.mxu0 %v1122
        %1427 = vmatprep.subr.bf16.mxu0 %v1128
        %1428 = vmatpush1.bf16.msra.mxu0 %v1127
        %1429 = vmatprep.subr.bf16.mxu0 %v1133
        %1430 = vmatpush1.bf16.msra.mxu0 %v1132
        %1431 = vmatprep.subr.bf16.mxu0 %v1138
        %1432 = vmatpush1.bf16.msra.mxu0 %v1137
        %1433 = vmatprep.subr.bf16.mxu0 %v1143
        %1434 = vmatpush1.bf16.msra.mxu0 %v1142
        %1435 = vmatprep.subr.bf16.mxu0 %v1148
        %1436 = vmatpush1.bf16.msra.mxu0 %v1147
        %1437 = vmatprep.subr.bf16.mxu0 %v1153
        %1438 = vmatpush1.bf16.msra.mxu0 %v1152
        %1439 = vmatprep.subr.bf16.mxu0 %v1158
        %1440 = vmatpush1.bf16.msra.mxu0 %v1157
        %1441 = vmatprep.subr.bf16.mxu0 %v1163
        %1442 = vmatpush1.bf16.msra.mxu0 %v1162
        %1443 = vmatprep.mubr.bf16.mxu0 %v547
        %1444 = vmatmul.mubr.bf16.gmra.mrb[0].mxu0 %v530
        %v1445 = vpop.f32.mrb[0].mxu0
        %v1446 = vadd.f32 0.0, %v1445
        %v1447 = vpop.f32.mrb[0].mxu0
        %v1448 = vadd.f32 0.0, %v1447
        %v1449 = vpop.f32.mrb[0].mxu0
        %v1450 = vadd.f32 0.0, %v1449
        %v1451 = vpop.f32.mrb[0].mxu0
        %v1452 = vadd.f32 0.0, %v1451
        %1453 = vdwg.mxu0
        %1454 = vmatprep.subr.bf16.mxu0 %v1168
        %1455 = vmatpush1.bf16.msra.mxu0 %v1167
        %1456 = vmatprep.subr.bf16.mxu0 %v1173
        %1457 = vmatpush1.bf16.msra.mxu0 %v1172
        %1458 = vmatprep.subr.bf16.mxu0 %v1178
        %1459 = vmatpush1.bf16.msra.mxu0 %v1177
        %1460 = vmatprep.subr.bf16.mxu0 %v1183
        %1461 = vmatpush1.bf16.msra.mxu0 %v1182
        %1462 = vmatprep.subr.bf16.mxu0 %v1188
        %1463 = vmatpush1.bf16.msra.mxu0 %v1187
        %1464 = vmatprep.subr.bf16.mxu0 %v1193
        %1465 = vmatpush1.bf16.msra.mxu0 %v1192
        %1466 = vmatprep.subr.bf16.mxu0 %v1198
        %1467 = vmatpush1.bf16.msra.mxu0 %v1197
        %1468 = vmatprep.subr.bf16.mxu0 %v1203
        %1469 = vmatpush1.bf16.msra.mxu0 %v1202
        %1470 = vmatprep.subr.bf16.mxu0 0
        %1471 = vmatpush1.bf16.msra.mxu0 0
        %1472 = vmatprep.subr.bf16.mxu0 0
        %1473 = vmatpush1.bf16.msra.mxu0 0
        %1474 = vmatprep.subr.bf16.mxu0 0
        %1475 = vmatpush1.bf16.msra.mxu0 0
        %1476 = vmatprep.subr.bf16.mxu0 0
        %1477 = vmatpush1.bf16.msra.mxu0 0
        %1478 = vmatprep.subr.bf16.mxu0 0
        %1479 = vmatpush1.bf16.msra.mxu0 0
        %1480 = vmatprep.subr.bf16.mxu0 0
        %1481 = vmatpush1.bf16.msra.mxu0 0
        %1482 = vmatprep.subr.bf16.mxu0 0
        %1483 = vmatpush1.bf16.msra.mxu0 0
        %1484 = vmatprep.subr.bf16.mxu0 0
        %1485 = vmatpush1.bf16.msra.mxu0 0
        %1486 = vmatprep.mubr.bf16.mxu0 0
        %1487 = vmatmul.mubr.bf16.gmra.mrb[0].mxu0 %v555
        %v1488 = vpop.f32.mrb[0].mxu0
        %v1489 = vadd.f32 %v1446, %v1488
        %v1490 = vpop.f32.mrb[0].mxu0
        %v1491 = vadd.f32 %v1448, %v1490
        %v1492 = vpop.f32.mrb[0].mxu0
        %v1493 = vadd.f32 %v1450, %v1492
        %v1494 = vpop.f32.mrb[0].mxu0
        %v1495 = vadd.f32 %v1452, %v1494
        %1496 = vdwg.mxu0
        %1497 = vmatprep.subr.bf16.mxu0 0
        %1498 = vmatpush1.bf16.msra.mxu0 %v1089
        %1499 = vmatprep.subr.bf16.mxu0 0
        %1500 = vmatpush1.bf16.msra.mxu0 %v1094
        %1501 = vmatprep.subr.bf16.mxu0 0
        %1502 = vmatpush1.bf16.msra.mxu0 %v1099
        %1503 = vmatprep.subr.bf16.mxu0 0
        %1504 = vmatpush1.bf16.msra.mxu0 %v1104
        %1505 = vmatprep.subr.bf16.mxu0 0
        %1506 = vmatpush1.bf16.msra.mxu0 %v1109
        %1507 = vmatprep.subr.bf16.mxu0 0
        %1508 = vmatpush1.bf16.msra.mxu0 %v1114
        %1509 = vmatprep.subr.bf16.mxu0 0
        %1510 = vmatpush1.bf16.msra.mxu0 %v1119
        %1511 = vmatprep.subr.bf16.mxu0 0
        %1512 = vmatpush1.bf16.msra.mxu0 %v1124
        %1513 = vmatprep.subr.bf16.mxu0 0
        %1514 = vmatpush1.bf16.msra.mxu0 %v1129
        %1515 = vmatprep.subr.bf16.mxu0 0
        %1516 = vmatpush1.bf16.msra.mxu0 %v1134
        %1517 = vmatprep.subr.bf16.mxu0 0
        %1518 = vmatpush1.bf16.msra.mxu0 %v1139
        %1519 = vmatprep.subr.bf16.mxu0 0
        %1520 = vmatpush1.bf16.msra.mxu0 %v1144
        %1521 = vmatprep.subr.bf16.mxu0 0
        %1522 = vmatpush1.bf16.msra.mxu0 %v1149
        %1523 = vmatprep.subr.bf16.mxu0 0
        %1524 = vmatpush1.bf16.msra.mxu0 %v1154
        %1525 = vmatprep.subr.bf16.mxu0 0
        %1526 = vmatpush1.bf16.msra.mxu0 %v1159
        %1527 = vmatprep.subr.bf16.mxu0 0
        %1528 = vmatpush1.bf16.msra.mxu0 %v1164
        %1529 = vmatprep.mubr.bf16.mxu0 %v547
        %1530 = vmatmul.mubr.bf16.gmra.mrb[0].mxu0 %v530
        %v1531 = vpop.f32.mrb[0].mxu0
        %v1532 = vadd.f32 0.0, %v1531
        %v1533 = vpop.f32.mrb[0].mxu0
        %v1534 = vpop.f32.mrb[0].mxu0
        %v1535 = vadd.f32 0.0, %v1534
        %v1536 = vpop.f32.mrb[0].mxu0
        %1537 = vdwg.mxu0
        %1538 = vmatprep.subr.bf16.mxu0 0
        %1539 = vmatpush1.bf16.msra.mxu0 %v1169
        %1540 = vmatprep.subr.bf16.mxu0 0
        %1541 = vmatpush1.bf16.msra.mxu0 %v1174
        %1542 = vmatprep.subr.bf16.mxu0 0
        %1543 = vmatpush1.bf16.msra.mxu0 %v1179
        %1544 = vmatprep.subr.bf16.mxu0 0
        %1545 = vmatpush1.bf16.msra.mxu0 %v1184
        %1546 = vmatprep.subr.bf16.mxu0 0
        %1547 = vmatpush1.bf16.msra.mxu0 %v1189
        %1548 = vmatprep.subr.bf16.mxu0 0
        %1549 = vmatpush1.bf16.msra.mxu0 %v1194
        %1550 = vmatprep.subr.bf16.mxu0 0
        %1551 = vmatpush1.bf16.msra.mxu0 %v1199
        %1552 = vmatprep.subr.bf16.mxu0 0
        %1553 = vmatpush1.bf16.msra.mxu0 %v1204
        %1554 = vmatprep.subr.bf16.mxu0 0
        %1555 = vmatpush1.bf16.msra.mxu0 0
        %1556 = vmatprep.subr.bf16.mxu0 0
        %1557 = vmatpush1.bf16.msra.mxu0 0
        %1558 = vmatprep.subr.bf16.mxu0 0
        %1559 = vmatpush1.bf16.msra.mxu0 0
        %1560 = vmatprep.subr.bf16.mxu0 0
        %1561 = vmatpush1.bf16.msra.mxu0 0
        %1562 = vmatprep.subr.bf16.mxu0 0
        %1563 = vmatpush1.bf16.msra.mxu0 0
        %1564 = vmatprep.subr.bf16.mxu0 0
        %1565 = vmatpush1.bf16.msra.mxu0 0
        %1566 = vmatprep.subr.bf16.mxu0 0
        %1567 = vmatpush1.bf16.msra.mxu0 0
        %1568 = vmatprep.subr.bf16.mxu0 0
        %1569 = vmatpush1.bf16.msra.mxu0 0
        %1570 = vmatprep.mubr.bf16.mxu0 0
        %1571 = vmatmul.mubr.bf16.gmra.mrb[0].mxu0 %v555
        %v1572 = vpop.f32.mrb[0].mxu0
        %v1573 = vadd.f32 %v1532, %v1572
        %v1574 = vpop.f32.mrb[0].mxu0
        %v1575 = vpop.f32.mrb[0].mxu0
        %v1576 = vadd.f32 %v1535, %v1575
        %v1577 = vpop.f32.mrb[0].mxu0
        %1578 = vdwg.mxu0
        %v1579 = vld [vmem:[%s2] sm:$0x1f]
        %v1581 = vlaneseq
        %v1582 = vshrl.u32 %v1581, 7
        %v1583 = vsub.s32 0, %v1582
        %v1584 = vrot.slane %v1579, %v1583
        %v1585 = vlaneseq
        %v1586 = vshrl.u32 %v1585, 7
        %v1587 = vsub.s32 1, %v1586
        %v1588 = vrot.slane %v1579, %v1587
        %v1589 = vlaneseq
        %v1590 = vshrl.u32 %v1589, 7
        %v1591 = vsub.s32 2, %v1590
        %v1592 = vrot.slane %v1579, %v1591
        %v1593 = vlaneseq
        %v1594 = vshrl.u32 %v1593, 7
        %v1595 = vsub.s32 3, %v1594
        %v1596 = vrot.slane %v1579, %v1595
        %v1597 = vlaneseq
        %v1598 = vshrl.u32 %v1597, 7
        %v1599 = vsub.s32 4, %v1598
        %v1600 = vrot.slane %v1579, %v1599
        %v1606 = vmul.f32 %v1403, %v1584
        %v1607 = vmul.f32 %v1405, %v1588
        %v1608 = vmul.f32 %v1489, %v1592
        %v1609 = vmul.f32 %v1491, %v1596
        %v1610 = vmul.f32 %v1573, %v1600
        %v1611 = vmul.f32 %v1407, %v1584
        %v1612 = vmul.f32 %v1409, %v1588
        %v1613 = vmul.f32 %v1493, %v1592
        %v1614 = vmul.f32 %v1495, %v1596
        %v1615 = vmul.f32 %v1576, %v1600
        %v1616 = vld [vmem:[%s3] sm:$0x1f]
        %v1618 = vlaneseq
        %v1619 = vshrl.u32 %v1618, 7
        %v1620 = vsub.s32 0, %v1619
        %v1621 = vrot.slane %v1616, %v1620
        %v1622 = vlaneseq
        %v1623 = vshrl.u32 %v1622, 7
        %v1624 = vsub.s32 1, %v1623
        %v1625 = vrot.slane %v1616, %v1624
        %v1626 = vlaneseq
        %v1627 = vshrl.u32 %v1626, 7
        %v1628 = vsub.s32 2, %v1627
        %v1629 = vrot.slane %v1616, %v1628
        %v1630 = vlaneseq
        %v1631 = vshrl.u32 %v1630, 7
        %v1632 = vsub.s32 3, %v1631
        %v1633 = vrot.slane %v1616, %v1632
        %v1634 = vlaneseq
        %v1635 = vshrl.u32 %v1634, 7
        %v1636 = vsub.s32 4, %v1635
        %v1637 = vrot.slane %v1616, %v1636
        %v1643 = vadd.f32 %v1606, %v1621
        %v1644 = vadd.f32 %v1607, %v1625
        %v1645 = vadd.f32 %v1608, %v1629
        %v1646 = vadd.f32 %v1609, %v1633
        %v1647 = vadd.f32 %v1610, %v1637
        %v1648 = vadd.f32 %v1611, %v1621
        %v1649 = vadd.f32 %v1612, %v1625
        %v1650 = vadd.f32 %v1613, %v1629
        %v1651 = vadd.f32 %v1614, %v1633
        %v1652 = vadd.f32 %v1615, %v1637
        %v1653 = vxor.u32 %v1643, 2147483648
        %v1654 = vxor.u32 %v1644, 2147483648
        %v1655 = vxor.u32 %v1645, 2147483648
        %v1656 = vxor.u32 %v1646, 2147483648
        %v1657 = vxor.u32 %v1647, 2147483648
        %v1658 = vxor.u32 %v1648, 2147483648
        %v1659 = vxor.u32 %v1649, 2147483648
        %v1660 = vxor.u32 %v1650, 2147483648
        %v1661 = vxor.u32 %v1651, 2147483648
        %v1662 = vxor.u32 %v1652, 2147483648
        %v1663 = vmul.f32 %v1653, 1.442695
        %v1664 = vpow.pop %v1663
        %v1665 = vmul.f32 %v1654, 1.442695
        %v1666 = vpow.pop %v1665
        %v1667 = vmul.f32 %v1655, 1.442695
        %v1668 = vpow.pop %v1667
        %v1669 = vmul.f32 %v1656, 1.442695
        %v1670 = vpow.pop %v1669
        %v1671 = vmul.f32 %v1657, 1.442695
        %v1672 = vpow.pop %v1671
        %v1673 = vmul.f32 %v1658, 1.442695
        %v1674 = vpow.pop %v1673
        %v1675 = vmul.f32 %v1659, 1.442695
        %v1676 = vpow.pop %v1675
        %v1677 = vmul.f32 %v1660, 1.442695
        %v1678 = vpow.pop %v1677
        %v1679 = vmul.f32 %v1661, 1.442695
        %v1680 = vpow.pop %v1679
        %v1681 = vmul.f32 %v1662, 1.442695
        %v1682 = vpow.pop %v1681
        %v1683 = vadd.f32 %v1664, 1.0
        %v1684 = vadd.f32 %v1666, 1.0
        %v1685 = vadd.f32 %v1668, 1.0
        %v1686 = vadd.f32 %v1670, 1.0
        %v1687 = vadd.f32 %v1672, 1.0
        %v1688 = vadd.f32 %v1674, 1.0
        %v1689 = vadd.f32 %v1676, 1.0
        %v1690 = vadd.f32 %v1678, 1.0
        %v1691 = vadd.f32 %v1680, 1.0
        %v1692 = vadd.f32 %v1682, 1.0
        %v1693 = vrcp.pop %v1683
        %v1694 = vmul.f32 1.0, %v1693
        %v1695 = vrcp.pop %v1684
        %v1696 = vmul.f32 1.0, %v1695
        %v1697 = vrcp.pop %v1685
        %v1698 = vmul.f32 1.0, %v1697
        %v1699 = vrcp.pop %v1686
        %v1700 = vmul.f32 1.0, %v1699
        %v1701 = vrcp.pop %v1687
        %v1702 = vmul.f32 1.0, %v1701
        %v1703 = vrcp.pop %v1688
        %v1704 = vmul.f32 1.0, %v1703
        %v1705 = vrcp.pop %v1689
        %v1706 = vmul.f32 1.0, %v1705
        %v1707 = vrcp.pop %v1690
        %v1708 = vmul.f32 1.0, %v1707
        %v1709 = vrcp.pop %v1691
        %v1710 = vmul.f32 1.0, %v1709
        %v1711 = vrcp.pop %v1692
        %v1712 = vmul.f32 1.0, %v1711
        %v1713 = vmul.f32 %v1643, %v1694
        %v1714 = vmul.f32 %v1644, %v1696
        %v1715 = vmul.f32 %v1645, %v1698
        %v1716 = vmul.f32 %v1646, %v1700
        %v1717 = vmul.f32 %v1647, %v1702
        %v1718 = vmul.f32 %v1648, %v1704
        %v1719 = vmul.f32 %v1649, %v1706
        %v1720 = vmul.f32 %v1650, %v1708
        %v1721 = vmul.f32 %v1651, %v1710
        %v1722 = vmul.f32 %v1652, %v1712
        %v1723 = vpack.c.bf16 %v1718, %v1713
        %v1724 = vpack.c.bf16 %v1719, %v1714
        %v1725 = vpack.c.bf16 %v1720, %v1715
        %v1726 = vpack.c.bf16 %v1721, %v1716
        %v1727 = vpack.c.bf16 %v1722, %v1717
        %v1728 = vld [vmem:[%s4] sm:$0xf]
        %v1729 = vld [vmem:[%s4 + $0x4] sm:$0xf]
        %v1732 = vunpack.c.l.b16 %v1728
        %v1733 = vunpack.c.l.b16 %v1729
        %v1734 = vpack.c.b16 %v1733, %v1732
        %vm1735 = vcmask 130048
        %v1737 = vsel %vm1735, %v1734, 0
        %1739 = vmatprep.subr.bf16.mxu0 %v1724
        %1740 = vmatpush1.bf16.msra.mxu0 %v1723
        %1741 = vmatprep.subr.bf16.mxu0 0
        %1742 = vmatpush1.bf16.msra.mxu0 0
        %1743 = vmatprep.subr.bf16.mxu0 0
        %1744 = vmatpush1.bf16.msra.mxu0 0
        %1745 = vmatprep.subr.bf16.mxu0 0
        %1746 = vmatpush1.bf16.msra.mxu0 0
        %1747 = vmatprep.subr.bf16.mxu0 0
        %1748 = vmatpush1.bf16.msra.mxu0 0
        %1749 = vmatprep.subr.bf16.mxu0 0
        %1750 = vmatpush1.bf16.msra.mxu0 0
        %1751 = vmatprep.subr.bf16.mxu0 0
        %1752 = vmatpush1.bf16.msra.mxu0 0
        %1753 = vmatprep.subr.bf16.mxu0 0
        %1754 = vmatpush1.bf16.msra.mxu0 0
        %1755 = vmatprep.subr.bf16.mxu0 0
        %1756 = vmatpush1.bf16.msra.mxu0 0
        %1757 = vmatprep.subr.bf16.mxu0 0
        %1758 = vmatpush1.bf16.msra.mxu0 0
        %1759 = vmatprep.subr.bf16.mxu0 0
        %1760 = vmatpush1.bf16.msra.mxu0 0
        %1761 = vmatprep.subr.bf16.mxu0 0
        %1762 = vmatpush1.bf16.msra.mxu0 0
        %1763 = vmatprep.subr.bf16.mxu0 0
        %1764 = vmatpush1.bf16.msra.mxu0 0
        %1765 = vmatprep.subr.bf16.mxu0 0
        %1766 = vmatpush1.bf16.msra.mxu0 0
        %1767 = vmatprep.subr.bf16.mxu0 0
        %1768 = vmatpush1.bf16.msra.mxu0 0
        %1769 = vmatprep.subr.bf16.mxu0 0
        %1770 = vmatpush1.bf16.msra.mxu0 0
        %1771 = vmatprep.mubr.bf16.mxu0 0
        %1772 = vmatmul.mubr.bf16.gmra.mrb[0].mxu0 %v1737
        %v1773 = vpop.f32.mrb[0].mxu0
        %v1774 = vadd.f32 0.0, %v1773
        %v1775 = vpop.f32.mrb[0].mxu0
        %v1776 = vadd.f32 0.0, %v1775
        %v1777 = vpop.f32.mrb[0].mxu0
        %v1778 = vadd.f32 0.0, %v1777
        %v1779 = vpop.f32.mrb[0].mxu0
        %v1780 = vadd.f32 0.0, %v1779
        %1781 = vdwg.mxu0
        %1782 = vmatprep.subr.bf16.mxu0 %v1726
        %1783 = vmatpush1.bf16.msra.mxu0 %v1725
        %1784 = vmatprep.subr.bf16.mxu0 0
        %1785 = vmatpush1.bf16.msra.mxu0 0
        %1786 = vmatprep.subr.bf16.mxu0 0
        %1787 = vmatpush1.bf16.msra.mxu0 0
        %1788 = vmatprep.subr.bf16.mxu0 0
        %1789 = vmatpush1.bf16.msra.mxu0 0
        %1790 = vmatprep.subr.bf16.mxu0 0
        %1791 = vmatpush1.bf16.msra.mxu0 0
        %1792 = vmatprep.subr.bf16.mxu0 0
        %1793 = vmatpush1.bf16.msra.mxu0 0
        %1794 = vmatprep.subr.bf16.mxu0 0
        %1795 = vmatpush1.bf16.msra.mxu0 0
        %1796 = vmatprep.subr.bf16.mxu0 0
        %1797 = vmatpush1.bf16.msra.mxu0 0
        %1798 = vmatprep.subr.bf16.mxu0 0
        %1799 = vmatpush1.bf16.msra.mxu0 0
        %1800 = vmatprep.subr.bf16.mxu0 0
        %1801 = vmatpush1.bf16.msra.mxu0 0
        %1802 = vmatprep.subr.bf16.mxu0 0
        %1803 = vmatpush1.bf16.msra.mxu0 0
        %1804 = vmatprep.subr.bf16.mxu0 0
        %1805 = vmatpush1.bf16.msra.mxu0 0
        %1806 = vmatprep.subr.bf16.mxu0 0
        %1807 = vmatpush1.bf16.msra.mxu0 0
        %1808 = vmatprep.subr.bf16.mxu0 0
        %1809 = vmatpush1.bf16.msra.mxu0 0
        %1810 = vmatprep.subr.bf16.mxu0 0
        %1811 = vmatpush1.bf16.msra.mxu0 0
        %1812 = vmatprep.subr.bf16.mxu0 0
        %1813 = vmatpush1.bf16.msra.mxu0 0
        %1814 = vmatprep.mubr.bf16.mxu0 0
        %1815 = vmatmul.mubr.bf16.gmra.mrb[0].mxu0 %v1737
        %v1816 = vpop.f32.mrb[0].mxu0
        %v1817 = vadd.f32 0.0, %v1816
        %v1818 = vpop.f32.mrb[0].mxu0
        %v1819 = vadd.f32 0.0, %v1818
        %v1820 = vpop.f32.mrb[0].mxu0
        %v1821 = vadd.f32 0.0, %v1820
        %v1822 = vpop.f32.mrb[0].mxu0
        %v1823 = vadd.f32 0.0, %v1822
        %1824 = vdwg.mxu0
        %1825 = vmatprep.subr.bf16.mxu0 0
        %1826 = vmatpush1.bf16.msra.mxu0 %v1727
        %1827 = vmatprep.subr.bf16.mxu0 0
        %1828 = vmatpush1.bf16.msra.mxu0 0
        %1829 = vmatprep.subr.bf16.mxu0 0
        %1830 = vmatpush1.bf16.msra.mxu0 0
        %1831 = vmatprep.subr.bf16.mxu0 0
        %1832 = vmatpush1.bf16.msra.mxu0 0
        %1833 = vmatprep.subr.bf16.mxu0 0
        %1834 = vmatpush1.bf16.msra.mxu0 0
        %1835 = vmatprep.subr.bf16.mxu0 0
        %1836 = vmatpush1.bf16.msra.mxu0 0
        %1837 = vmatprep.subr.bf16.mxu0 0
        %1838 = vmatpush1.bf16.msra.mxu0 0
        %1839 = vmatprep.subr.bf16.mxu0 0
        %1840 = vmatpush1.bf16.msra.mxu0 0
        %1841 = vmatprep.subr.bf16.mxu0 0
        %1842 = vmatpush1.bf16.msra.mxu0 0
        %1843 = vmatprep.subr.bf16.mxu0 0
        %1844 = vmatpush1.bf16.msra.mxu0 0
        %1845 = vmatprep.subr.bf16.mxu0 0
        %1846 = vmatpush1.bf16.msra.mxu0 0
        %1847 = vmatprep.subr.bf16.mxu0 0
        %1848 = vmatpush1.bf16.msra.mxu0 0
        %1849 = vmatprep.subr.bf16.mxu0 0
        %1850 = vmatpush1.bf16.msra.mxu0 0
        %1851 = vmatprep.subr.bf16.mxu0 0
        %1852 = vmatpush1.bf16.msra.mxu0 0
        %1853 = vmatprep.subr.bf16.mxu0 0
        %1854 = vmatpush1.bf16.msra.mxu0 0
        %1855 = vmatprep.subr.bf16.mxu0 0
        %1856 = vmatpush1.bf16.msra.mxu0 0
        %1857 = vmatprep.mubr.bf16.mxu0 0
        %1858 = vmatmul.mubr.bf16.gmra.mrb[0].mxu0 %v1737
        %v1859 = vpop.f32.mrb[0].mxu0
        %v1860 = vadd.f32 0.0, %v1859
        %v1861 = vpop.f32.mrb[0].mxu0
        %v1862 = vpop.f32.mrb[0].mxu0
        %v1863 = vadd.f32 0.0, %v1862
        %v1864 = vpop.f32.mrb[0].mxu0
        %1865 = vdwg.mxu0
        %v1866 = vld [vmem:[%s5] ss:$8 sm:$0xf]
        %v1868 = vlaneseq
        %v1869 = vshrl.u32 %v1868, 7
        %v1870 = vsub.s32 0, %v1869
        %v1871 = vrot.slane %v1866, %v1870
        %v1872 = vlaneseq
        %v1873 = vshrl.u32 %v1872, 7
        %v1874 = vsub.s32 1, %v1873
        %v1875 = vrot.slane %v1866, %v1874
        %v1876 = vlaneseq
        %v1877 = vshrl.u32 %v1876, 7
        %v1878 = vsub.s32 2, %v1877
        %v1879 = vrot.slane %v1866, %v1878
        %v1880 = vlaneseq
        %v1881 = vshrl.u32 %v1880, 7
        %v1882 = vsub.s32 3, %v1881
        %v1883 = vrot.slane %v1866, %v1882
        %v1888 = vmul.f32 %v1774, %v1871
        %v1889 = vmul.f32 %v1776, %v1875
        %v1890 = vmul.f32 %v1817, %v1879
        %v1891 = vmul.f32 %v1819, %v1883
        %v1892 = vmul.f32 %v1778, %v1871
        %v1893 = vmul.f32 %v1780, %v1875
        %v1894 = vmul.f32 %v1821, %v1879
        %v1895 = vmul.f32 %v1823, %v1883
        %v1896 = vadd.f32 %v1888, 0.0
        %v1897 = vadd.f32 %v1889, 0.0
        %v1898 = vadd.f32 %v1890, 0.0
        %v1899 = vadd.f32 %v1891, 0.0
        %v1900 = vadd.f32 %v1892, 0.0
        %v1901 = vadd.f32 %v1893, 0.0
        %v1902 = vadd.f32 %v1894, 0.0
        %v1903 = vadd.f32 %v1895, 0.0
        %s1904 = scalar_lea.vmem %s5, 1
        %v1905 = vld [vmem:[%s1904] ss:$8 sm:$0xf]
        %v1907 = vlaneseq
        %v1908 = vshrl.u32 %v1907, 7
        %v1909 = vsub.s32 0, %v1908
        %v1910 = vrot.slane %v1905, %v1909
        %v1911 = vlaneseq
        %v1912 = vshrl.u32 %v1911, 7
        %v1913 = vsub.s32 1, %v1912
        %v1914 = vrot.slane %v1905, %v1913
        %v1915 = vlaneseq
        %v1916 = vshrl.u32 %v1915, 7
        %v1917 = vsub.s32 2, %v1916
        %v1918 = vrot.slane %v1905, %v1917
        %v1919 = vlaneseq
        %v1920 = vshrl.u32 %v1919, 7
        %v1921 = vsub.s32 3, %v1920
        %v1922 = vrot.slane %v1905, %v1921
        %1923 = vrot.lane.b32.xlu0 %v1910, 32
        %v1924 = vpop.permute.xlu0 %1923
        %1925 = vrot.lane.b32.xlu0 %v1914, 32
        %v1926 = vpop.permute.xlu0 %1925
        %1927 = vrot.lane.b32.xlu0 %v1918, 32
        %v1928 = vpop.permute.xlu0 %1927
        %1929 = vrot.lane.b32.xlu0 %v1922, 32
        %v1930 = vpop.permute.xlu0 %1929
        %vm1931 = vcmask 261120
        %v1932 = vsel %vm1931, %v1924, %v1926
        %v1933 = vsel %vm1931, %v1926, %v1928
        %v1934 = vsel %vm1931, %v1928, %v1930
        %v1940 = vmul.f32 %v1774, %v1924
        %v1941 = vmul.f32 %v1776, %v1932
        %v1942 = vmul.f32 %v1817, %v1933
        %v1943 = vmul.f32 %v1819, %v1934
        %v1944 = vmul.f32 %v1860, %v1930
        %v1945 = vmul.f32 %v1778, %v1924
        %v1946 = vmul.f32 %v1780, %v1932
        %v1947 = vmul.f32 %v1821, %v1933
        %v1948 = vmul.f32 %v1823, %v1934
        %v1949 = vmul.f32 %v1863, %v1930
        %1960 = vrot.lane.b32.xlu0 %v1940, 96
        %v1961 = vpop.permute.xlu0 %1960
        %1962 = vrot.lane.b32.xlu0 %v1941, 96
        %v1963 = vpop.permute.xlu0 %1962
        %1964 = vrot.lane.b32.xlu0 %v1942, 96
        %v1965 = vpop.permute.xlu0 %1964
        %1966 = vrot.lane.b32.xlu0 %v1943, 96
        %v1967 = vpop.permute.xlu0 %1966
        %1968 = vrot.lane.b32.xlu0 %v1944, 96
        %v1969 = vpop.permute.xlu0 %1968
        %1970 = vrot.lane.b32.xlu0 %v1945, 96
        %v1971 = vpop.permute.xlu0 %1970
        %1972 = vrot.lane.b32.xlu0 %v1946, 96
        %v1973 = vpop.permute.xlu0 %1972
        %1974 = vrot.lane.b32.xlu0 %v1947, 96
        %v1975 = vpop.permute.xlu0 %1974
        %1976 = vrot.lane.b32.xlu0 %v1948, 96
        %v1977 = vpop.permute.xlu0 %1976
        %1978 = vrot.lane.b32.xlu0 %v1949, 96
        %v1979 = vpop.permute.xlu0 %1978
        %vm1980 = vcmask 785408
        %v1981 = vsel %vm1980, %v1961, %v1963
        %v1982 = vsel %vm1980, %v1963, %v1965
        %v1983 = vsel %vm1980, %v1965, %v1967
        %v1984 = vsel %vm1980, %v1967, %v1969
        %v1985 = vsel %vm1980, %v1971, %v1973
        %v1986 = vsel %vm1980, %v1973, %v1975
        %v1987 = vsel %vm1980, %v1975, %v1977
        %v1988 = vsel %vm1980, %v1977, %v1979
        %v1997 = vadd.f32 %v1896, %v1981
        %v1998 = vadd.f32 %v1897, %v1982
        %v1999 = vadd.f32 %v1898, %v1983
        %v2000 = vadd.f32 %v1899, %v1984
        %v2001 = vadd.f32 %v1900, %v1985
        %v2002 = vadd.f32 %v1901, %v1986
        %v2003 = vadd.f32 %v1902, %v1987
        %v2004 = vadd.f32 %v1903, %v1988
        %s2005 = scalar_lea.vmem %s5, 2
        %v2006 = vld [vmem:[%s2005] ss:$8 sm:$0xf]
        %v2008 = vlaneseq
        %v2009 = vshrl.u32 %v2008, 7
        %v2010 = vsub.s32 0, %v2009
        %v2011 = vrot.slane %v2006, %v2010
        %v2012 = vlaneseq
        %v2013 = vshrl.u32 %v2012, 7
        %v2014 = vsub.s32 1, %v2013
        %v2015 = vrot.slane %v2006, %v2014
        %v2016 = vlaneseq
        %v2017 = vshrl.u32 %v2016, 7
        %v2018 = vsub.s32 2, %v2017
        %v2019 = vrot.slane %v2006, %v2018
        %v2020 = vlaneseq
        %v2021 = vshrl.u32 %v2020, 7
        %v2022 = vsub.s32 3, %v2021
        %v2023 = vrot.slane %v2006, %v2022
        %2024 = vrot.lane.b32.xlu0 %v2011, 64
        %v2025 = vpop.permute.xlu0 %2024
        %2026 = vrot.lane.b32.xlu0 %v2015, 64
        %v2027 = vpop.permute.xlu0 %2026
        %2028 = vrot.lane.b32.xlu0 %v2019, 64
        %v2029 = vpop.permute.xlu0 %2028
        %2030 = vrot.lane.b32.xlu0 %v2023, 64
        %v2031 = vpop.permute.xlu0 %2030
        %vm2032 = vcmask 523264
        %v2033 = vsel %vm2032, %v2025, %v2027
        %v2034 = vsel %vm2032, %v2027, %v2029
        %v2035 = vsel %vm2032, %v2029, %v2031
        %v2041 = vmul.f32 %v1774, %v2025
        %v2042 = vmul.f32 %v1776, %v2033
        %v2043 = vmul.f32 %v1817, %v2034
        %v2044 = vmul.f32 %v1819, %v2035
        %v2045 = vmul.f32 %v1860, %v2031
        %v2046 = vmul.f32 %v1778, %v2025
        %v2047 = vmul.f32 %v1780, %v2033
        %v2048 = vmul.f32 %v1821, %v2034
        %v2049 = vmul.f32 %v1823, %v2035
        %v2050 = vmul.f32 %v1863, %v2031
        %2061 = vrot.lane.b32.xlu0 %v2041, 64
        %v2062 = vpop.permute.xlu0 %2061
        %2063 = vrot.lane.b32.xlu0 %v2042, 64
        %v2064 = vpop.permute.xlu0 %2063
        %2065 = vrot.lane.b32.xlu0 %v2043, 64
        %v2066 = vpop.permute.xlu0 %2065
        %2067 = vrot.lane.b32.xlu0 %v2044, 64
        %v2068 = vpop.permute.xlu0 %2067
        %2069 = vrot.lane.b32.xlu0 %v2045, 64
        %v2070 = vpop.permute.xlu0 %2069
        %2071 = vrot.lane.b32.xlu0 %v2046, 64
        %v2072 = vpop.permute.xlu0 %2071
        %2073 = vrot.lane.b32.xlu0 %v2047, 64
        %v2074 = vpop.permute.xlu0 %2073
        %2075 = vrot.lane.b32.xlu0 %v2048, 64
        %v2076 = vpop.permute.xlu0 %2075
        %2077 = vrot.lane.b32.xlu0 %v2049, 64
        %v2078 = vpop.permute.xlu0 %2077
        %2079 = vrot.lane.b32.xlu0 %v2050, 64
        %v2080 = vpop.permute.xlu0 %2079
        %v2081 = vsel %vm2032, %v2062, %v2064
        %v2082 = vsel %vm2032, %v2064, %v2066
        %v2083 = vsel %vm2032, %v2066, %v2068
        %v2084 = vsel %vm2032, %v2068, %v2070
        %v2085 = vsel %vm2032, %v2072, %v2074
        %v2086 = vsel %vm2032, %v2074, %v2076
        %v2087 = vsel %vm2032, %v2076, %v2078
        %v2088 = vsel %vm2032, %v2078, %v2080
        %v2097 = vadd.f32 %v1997, %v2081
        %v2098 = vadd.f32 %v1998, %v2082
        %v2099 = vadd.f32 %v1999, %v2083
        %v2100 = vadd.f32 %v2000, %v2084
        %v2101 = vadd.f32 %v2001, %v2085
        %v2102 = vadd.f32 %v2002, %v2086
        %v2103 = vadd.f32 %v2003, %v2087
        %v2104 = vadd.f32 %v2004, %v2088
        %s2105 = scalar_lea.vmem %s4, 8
        %v2106 = vld [vmem:[%s2105] sm:$0xf]
        %v2107 = vld [vmem:[%s2105 + $0x4] sm:$0xf]
        %v2110 = vunpack.c.l.b16 %v2106
        %v2111 = vunpack.c.l.b16 %v2107
        %v2112 = vpack.c.b16 %v2111, %v2110
        %v2114 = vsel %vm1735, %v2112, 0
        %2116 = vmatprep.subr.bf16.mxu0 %v1724
        %2117 = vmatpush1.bf16.msra.mxu0 %v1723
        %2118 = vmatprep.subr.bf16.mxu0 0
        %2119 = vmatpush1.bf16.msra.mxu0 0
        %2120 = vmatprep.subr.bf16.mxu0 0
        %2121 = vmatpush1.bf16.msra.mxu0 0
        %2122 = vmatprep.subr.bf16.mxu0 0
        %2123 = vmatpush1.bf16.msra.mxu0 0
        %2124 = vmatprep.subr.bf16.mxu0 0
        %2125 = vmatpush1.bf16.msra.mxu0 0
        %2126 = vmatprep.subr.bf16.mxu0 0
        %2127 = vmatpush1.bf16.msra.mxu0 0
        %2128 = vmatprep.subr.bf16.mxu0 0
        %2129 = vmatpush1.bf16.msra.mxu0 0
        %2130 = vmatprep.subr.bf16.mxu0 0
        %2131 = vmatpush1.bf16.msra.mxu0 0
        %2132 = vmatprep.subr.bf16.mxu0 0
        %2133 = vmatpush1.bf16.msra.mxu0 0
        %2134 = vmatprep.subr.bf16.mxu0 0
        %2135 = vmatpush1.bf16.msra.mxu0 0
        %2136 = vmatprep.subr.bf16.mxu0 0
        %2137 = vmatpush1.bf16.msra.mxu0 0
        %2138 = vmatprep.subr.bf16.mxu0 0
        %2139 = vmatpush1.bf16.msra.mxu0 0
        %2140 = vmatprep.subr.bf16.mxu0 0
        %2141 = vmatpush1.bf16.msra.mxu0 0
        %2142 = vmatprep.subr.bf16.mxu0 0
        %2143 = vmatpush1.bf16.msra.mxu0 0
        %2144 = vmatprep.subr.bf16.mxu0 0
        %2145 = vmatpush1.bf16.msra.mxu0 0
        %2146 = vmatprep.subr.bf16.mxu0 0
        %2147 = vmatpush1.bf16.msra.mxu0 0
        %2148 = vmatprep.mubr.bf16.mxu0 0
        %2149 = vmatmul.mubr.bf16.gmra.mrb[0].mxu0 %v2114
        %v2150 = vpop.f32.mrb[0].mxu0
        %v2151 = vadd.f32 0.0, %v2150
        %v2152 = vpop.f32.mrb[0].mxu0
        %v2153 = vadd.f32 0.0, %v2152
        %v2154 = vpop.f32.mrb[0].mxu0
        %v2155 = vadd.f32 0.0, %v2154
        %v2156 = vpop.f32.mrb[0].mxu0
        %v2157 = vadd.f32 0.0, %v2156
        %2158 = vdwg.mxu0
        %2159 = vmatprep.subr.bf16.mxu0 %v1726
        %2160 = vmatpush1.bf16.msra.mxu0 %v1725
        %2161 = vmatprep.subr.bf16.mxu0 0
        %2162 = vmatpush1.bf16.msra.mxu0 0
        %2163 = vmatprep.subr.bf16.mxu0 0
        %2164 = vmatpush1.bf16.msra.mxu0 0
        %2165 = vmatprep.subr.bf16.mxu0 0
        %2166 = vmatpush1.bf16.msra.mxu0 0
        %2167 = vmatprep.subr.bf16.mxu0 0
        %2168 = vmatpush1.bf16.msra.mxu0 0
        %2169 = vmatprep.subr.bf16.mxu0 0
        %2170 = vmatpush1.bf16.msra.mxu0 0
        %2171 = vmatprep.subr.bf16.mxu0 0
        %2172 = vmatpush1.bf16.msra.mxu0 0
        %2173 = vmatprep.subr.bf16.mxu0 0
        %2174 = vmatpush1.bf16.msra.mxu0 0
        %2175 = vmatprep.subr.bf16.mxu0 0
        %2176 = vmatpush1.bf16.msra.mxu0 0
        %2177 = vmatprep.subr.bf16.mxu0 0
        %2178 = vmatpush1.bf16.msra.mxu0 0
        %2179 = vmatprep.subr.bf16.mxu0 0
        %2180 = vmatpush1.bf16.msra.mxu0 0
        %2181 = vmatprep.subr.bf16.mxu0 0
        %2182 = vmatpush1.bf16.msra.mxu0 0
        %2183 = vmatprep.subr.bf16.mxu0 0
        %2184 = vmatpush1.bf16.msra.mxu0 0
        %2185 = vmatprep.subr.bf16.mxu0 0
        %2186 = vmatpush1.bf16.msra.mxu0 0
        %2187 = vmatprep.subr.bf16.mxu0 0
        %2188 = vmatpush1.bf16.msra.mxu0 0
        %2189 = vmatprep.subr.bf16.mxu0 0
        %2190 = vmatpush1.bf16.msra.mxu0 0
        %2191 = vmatprep.mubr.bf16.mxu0 0
        %2192 = vmatmul.mubr.bf16.gmra.mrb[0].mxu0 %v2114
        %v2193 = vpop.f32.mrb[0].mxu0
        %v2194 = vadd.f32 0.0, %v2193
        %v2195 = vpop.f32.mrb[0].mxu0
        %v2196 = vadd.f32 0.0, %v2195
        %v2197 = vpop.f32.mrb[0].mxu0
        %v2198 = vadd.f32 0.0, %v2197
        %v2199 = vpop.f32.mrb[0].mxu0
        %v2200 = vadd.f32 0.0, %v2199
        %2201 = vdwg.mxu0
        %2202 = vmatprep.subr.bf16.mxu0 0
        %2203 = vmatpush1.bf16.msra.mxu0 %v1727
        %2204 = vmatprep.subr.bf16.mxu0 0
        %2205 = vmatpush1.bf16.msra.mxu0 0
        %2206 = vmatprep.subr.bf16.mxu0 0
        %2207 = vmatpush1.bf16.msra.mxu0 0
        %2208 = vmatprep.subr.bf16.mxu0 0
        %2209 = vmatpush1.bf16.msra.mxu0 0
        %2210 = vmatprep.subr.bf16.mxu0 0
        %2211 = vmatpush1.bf16.msra.mxu0 0
        %2212 = vmatprep.subr.bf16.mxu0 0
        %2213 = vmatpush1.bf16.msra.mxu0 0
        %2214 = vmatprep.subr.bf16.mxu0 0
        %2215 = vmatpush1.bf16.msra.mxu0 0
        %2216 = vmatprep.subr.bf16.mxu0 0
        %2217 = vmatpush1.bf16.msra.mxu0 0
        %2218 = vmatprep.subr.bf16.mxu0 0
        %2219 = vmatpush1.bf16.msra.mxu0 0
        %2220 = vmatprep.subr.bf16.mxu0 0
        %2221 = vmatpush1.bf16.msra.mxu0 0
        %2222 = vmatprep.subr.bf16.mxu0 0
        %2223 = vmatpush1.bf16.msra.mxu0 0
        %2224 = vmatprep.subr.bf16.mxu0 0
        %2225 = vmatpush1.bf16.msra.mxu0 0
        %2226 = vmatprep.subr.bf16.mxu0 0
        %2227 = vmatpush1.bf16.msra.mxu0 0
        %2228 = vmatprep.subr.bf16.mxu0 0
        %2229 = vmatpush1.bf16.msra.mxu0 0
        %2230 = vmatprep.subr.bf16.mxu0 0
        %2231 = vmatpush1.bf16.msra.mxu0 0
        %2232 = vmatprep.subr.bf16.mxu0 0
        %2233 = vmatpush1.bf16.msra.mxu0 0
        %2234 = vmatprep.mubr.bf16.mxu0 0
        %2235 = vmatmul.mubr.bf16.gmra.mrb[0].mxu0 %v2114
        %v2236 = vpop.f32.mrb[0].mxu0
        %v2237 = vadd.f32 0.0, %v2236
        %v2238 = vpop.f32.mrb[0].mxu0
        %v2239 = vpop.f32.mrb[0].mxu0
        %v2240 = vadd.f32 0.0, %v2239
        %v2241 = vpop.f32.mrb[0].mxu0
        %2242 = vdwg.mxu0
        %s2243 = scalar_lea.vmem %s5, 3
        %v2244 = vld [vmem:[%s2243] ss:$8 sm:$0xf]
        %v2246 = vlaneseq
        %v2247 = vshrl.u32 %v2246, 7
        %v2248 = vsub.s32 0, %v2247
        %v2249 = vrot.slane %v2244, %v2248
        %v2250 = vlaneseq
        %v2251 = vshrl.u32 %v2250, 7
        %v2252 = vsub.s32 1, %v2251
        %v2253 = vrot.slane %v2244, %v2252
        %v2254 = vlaneseq
        %v2255 = vshrl.u32 %v2254, 7
        %v2256 = vsub.s32 2, %v2255
        %v2257 = vrot.slane %v2244, %v2256
        %v2258 = vlaneseq
        %v2259 = vshrl.u32 %v2258, 7
        %v2260 = vsub.s32 3, %v2259
        %v2261 = vrot.slane %v2244, %v2260
        %v2266 = vmul.f32 %v2151, %v2249
        %v2267 = vmul.f32 %v2153, %v2253
        %v2268 = vmul.f32 %v2194, %v2257
        %v2269 = vmul.f32 %v2196, %v2261
        %v2270 = vmul.f32 %v2155, %v2249
        %v2271 = vmul.f32 %v2157, %v2253
        %v2272 = vmul.f32 %v2198, %v2257
        %v2273 = vmul.f32 %v2200, %v2261
        %v2274 = vadd.f32 %v2097, %v2266
        %v2275 = vadd.f32 %v2098, %v2267
        %v2276 = vadd.f32 %v2099, %v2268
        %v2277 = vadd.f32 %v2100, %v2269
        %v2278 = vadd.f32 %v2101, %v2270
        %v2279 = vadd.f32 %v2102, %v2271
        %v2280 = vadd.f32 %v2103, %v2272
        %v2281 = vadd.f32 %v2104, %v2273
        %s2282 = scalar_lea.vmem %s5, 4
        %v2283 = vld [vmem:[%s2282] ss:$8 sm:$0xf]
        %v2285 = vlaneseq
        %v2286 = vshrl.u32 %v2285, 7
        %v2287 = vsub.s32 0, %v2286
        %v2288 = vrot.slane %v2283, %v2287
        %v2289 = vlaneseq
        %v2290 = vshrl.u32 %v2289, 7
        %v2291 = vsub.s32 1, %v2290
        %v2292 = vrot.slane %v2283, %v2291
        %v2293 = vlaneseq
        %v2294 = vshrl.u32 %v2293, 7
        %v2295 = vsub.s32 2, %v2294
        %v2296 = vrot.slane %v2283, %v2295
        %v2297 = vlaneseq
        %v2298 = vshrl.u32 %v2297, 7
        %v2299 = vsub.s32 3, %v2298
        %v2300 = vrot.slane %v2283, %v2299
        %2301 = vrot.lane.b32.xlu0 %v2288, 32
        %v2302 = vpop.permute.xlu0 %2301
        %2303 = vrot.lane.b32.xlu0 %v2292, 32
        %v2304 = vpop.permute.xlu0 %2303
        %2305 = vrot.lane.b32.xlu0 %v2296, 32
        %v2306 = vpop.permute.xlu0 %2305
        %2307 = vrot.lane.b32.xlu0 %v2300, 32
        %v2308 = vpop.permute.xlu0 %2307
        %v2309 = vsel %vm1931, %v2302, %v2304
        %v2310 = vsel %vm1931, %v2304, %v2306
        %v2311 = vsel %vm1931, %v2306, %v2308
        %v2317 = vmul.f32 %v2151, %v2302
        %v2318 = vmul.f32 %v2153, %v2309
        %v2319 = vmul.f32 %v2194, %v2310
        %v2320 = vmul.f32 %v2196, %v2311
        %v2321 = vmul.f32 %v2237, %v2308
        %v2322 = vmul.f32 %v2155, %v2302
        %v2323 = vmul.f32 %v2157, %v2309
        %v2324 = vmul.f32 %v2198, %v2310
        %v2325 = vmul.f32 %v2200, %v2311
        %v2326 = vmul.f32 %v2240, %v2308
        %2337 = vrot.lane.b32.xlu0 %v2317, 96
        %v2338 = vpop.permute.xlu0 %2337
        %2339 = vrot.lane.b32.xlu0 %v2318, 96
        %v2340 = vpop.permute.xlu0 %2339
        %2341 = vrot.lane.b32.xlu0 %v2319, 96
        %v2342 = vpop.permute.xlu0 %2341
        %2343 = vrot.lane.b32.xlu0 %v2320, 96
        %v2344 = vpop.permute.xlu0 %2343
        %2345 = vrot.lane.b32.xlu0 %v2321, 96
        %v2346 = vpop.permute.xlu0 %2345
        %2347 = vrot.lane.b32.xlu0 %v2322, 96
        %v2348 = vpop.permute.xlu0 %2347
        %2349 = vrot.lane.b32.xlu0 %v2323, 96
        %v2350 = vpop.permute.xlu0 %2349
        %2351 = vrot.lane.b32.xlu0 %v2324, 96
        %v2352 = vpop.permute.xlu0 %2351
        %2353 = vrot.lane.b32.xlu0 %v2325, 96
        %v2354 = vpop.permute.xlu0 %2353
        %2355 = vrot.lane.b32.xlu0 %v2326, 96
        %v2356 = vpop.permute.xlu0 %2355
        %v2357 = vsel %vm1980, %v2338, %v2340
        %v2358 = vsel %vm1980, %v2340, %v2342
        %v2359 = vsel %vm1980, %v2342, %v2344
        %v2360 = vsel %vm1980, %v2344, %v2346
        %v2361 = vsel %vm1980, %v2348, %v2350
        %v2362 = vsel %vm1980, %v2350, %v2352
        %v2363 = vsel %vm1980, %v2352, %v2354
        %v2364 = vsel %vm1980, %v2354, %v2356
        %v2373 = vadd.f32 %v2274, %v2357
        %v2374 = vadd.f32 %v2275, %v2358
        %v2375 = vadd.f32 %v2276, %v2359
        %v2376 = vadd.f32 %v2277, %v2360
        %v2377 = vadd.f32 %v2278, %v2361
        %v2378 = vadd.f32 %v2279, %v2362
        %v2379 = vadd.f32 %v2280, %v2363
        %v2380 = vadd.f32 %v2281, %v2364
        %s2381 = scalar_lea.vmem %s5, 5
        %v2382 = vld [vmem:[%s2381] ss:$8 sm:$0xf]
        %v2384 = vlaneseq
        %v2385 = vshrl.u32 %v2384, 7
        %v2386 = vsub.s32 0, %v2385
        %v2387 = vrot.slane %v2382, %v2386
        %v2388 = vlaneseq
        %v2389 = vshrl.u32 %v2388, 7
        %v2390 = vsub.s32 1, %v2389
        %v2391 = vrot.slane %v2382, %v2390
        %v2392 = vlaneseq
        %v2393 = vshrl.u32 %v2392, 7
        %v2394 = vsub.s32 2, %v2393
        %v2395 = vrot.slane %v2382, %v2394
        %v2396 = vlaneseq
        %v2397 = vshrl.u32 %v2396, 7
        %v2398 = vsub.s32 3, %v2397
        %v2399 = vrot.slane %v2382, %v2398
        %2400 = vrot.lane.b32.xlu0 %v2387, 64
        %v2401 = vpop.permute.xlu0 %2400
        %2402 = vrot.lane.b32.xlu0 %v2391, 64
        %v2403 = vpop.permute.xlu0 %2402
        %2404 = vrot.lane.b32.xlu0 %v2395, 64
        %v2405 = vpop.permute.xlu0 %2404
        %2406 = vrot.lane.b32.xlu0 %v2399, 64
        %v2407 = vpop.permute.xlu0 %2406
        %v2408 = vsel %vm2032, %v2401, %v2403
        %v2409 = vsel %vm2032, %v2403, %v2405
        %v2410 = vsel %vm2032, %v2405, %v2407
        %v2416 = vmul.f32 %v2151, %v2401
        %v2417 = vmul.f32 %v2153, %v2408
        %v2418 = vmul.f32 %v2194, %v2409
        %v2419 = vmul.f32 %v2196, %v2410
        %v2420 = vmul.f32 %v2237, %v2407
        %v2421 = vmul.f32 %v2155, %v2401
        %v2422 = vmul.f32 %v2157, %v2408
        %v2423 = vmul.f32 %v2198, %v2409
        %v2424 = vmul.f32 %v2200, %v2410
        %v2425 = vmul.f32 %v2240, %v2407
        %2436 = vrot.lane.b32.xlu0 %v2416, 64
        %v2437 = vpop.permute.xlu0 %2436
        %2438 = vrot.lane.b32.xlu0 %v2417, 64
        %v2439 = vpop.permute.xlu0 %2438
        %2440 = vrot.lane.b32.xlu0 %v2418, 64
        %v2441 = vpop.permute.xlu0 %2440
        %2442 = vrot.lane.b32.xlu0 %v2419, 64
        %v2443 = vpop.permute.xlu0 %2442
        %2444 = vrot.lane.b32.xlu0 %v2420, 64
        %v2445 = vpop.permute.xlu0 %2444
        %2446 = vrot.lane.b32.xlu0 %v2421, 64
        %v2447 = vpop.permute.xlu0 %2446
        %2448 = vrot.lane.b32.xlu0 %v2422, 64
        %v2449 = vpop.permute.xlu0 %2448
        %2450 = vrot.lane.b32.xlu0 %v2423, 64
        %v2451 = vpop.permute.xlu0 %2450
        %2452 = vrot.lane.b32.xlu0 %v2424, 64
        %v2453 = vpop.permute.xlu0 %2452
        %2454 = vrot.lane.b32.xlu0 %v2425, 64
        %v2455 = vpop.permute.xlu0 %2454
        %v2456 = vsel %vm2032, %v2437, %v2439
        %v2457 = vsel %vm2032, %v2439, %v2441
        %v2458 = vsel %vm2032, %v2441, %v2443
        %v2459 = vsel %vm2032, %v2443, %v2445
        %v2460 = vsel %vm2032, %v2447, %v2449
        %v2461 = vsel %vm2032, %v2449, %v2451
        %v2462 = vsel %vm2032, %v2451, %v2453
        %v2463 = vsel %vm2032, %v2453, %v2455
        %v2472 = vadd.f32 %v2373, %v2456
        %v2473 = vadd.f32 %v2374, %v2457
        %v2474 = vadd.f32 %v2375, %v2458
        %v2475 = vadd.f32 %v2376, %v2459
        %v2476 = vadd.f32 %v2377, %v2460
        %v2477 = vadd.f32 %v2378, %v2461
        %v2478 = vadd.f32 %v2379, %v2462
        %v2479 = vadd.f32 %v2380, %v2463
        %s2480 = scalar_lea.vmem %s4, 16
        %v2481 = vld [vmem:[%s2480] sm:$0xf]
        %v2482 = vld [vmem:[%s2480 + $0x4] sm:$0xf]
        %v2485 = vunpack.c.l.b16 %v2481
        %v2486 = vunpack.c.l.b16 %v2482
        %v2487 = vpack.c.b16 %v2486, %v2485
        %v2489 = vsel %vm1735, %v2487, 0
        %2491 = vmatprep.subr.bf16.mxu0 %v1724
        %2492 = vmatpush1.bf16.msra.mxu0 %v1723
        %2493 = vmatprep.subr.bf16.mxu0 0
        %2494 = vmatpush1.bf16.msra.mxu0 0
        %2495 = vmatprep.subr.bf16.mxu0 0
        %2496 = vmatpush1.bf16.msra.mxu0 0
        %2497 = vmatprep.subr.bf16.mxu0 0
        %2498 = vmatpush1.bf16.msra.mxu0 0
        %2499 = vmatprep.subr.bf16.mxu0 0
        %2500 = vmatpush1.bf16.msra.mxu0 0
        %2501 = vmatprep.subr.bf16.mxu0 0
        %2502 = vmatpush1.bf16.msra.mxu0 0
        %2503 = vmatprep.subr.bf16.mxu0 0
        %2504 = vmatpush1.bf16.msra.mxu0 0
        %2505 = vmatprep.subr.bf16.mxu0 0
        %2506 = vmatpush1.bf16.msra.mxu0 0
        %2507 = vmatprep.subr.bf16.mxu0 0
        %2508 = vmatpush1.bf16.msra.mxu0 0
        %2509 = vmatprep.subr.bf16.mxu0 0
        %2510 = vmatpush1.bf16.msra.mxu0 0
        %2511 = vmatprep.subr.bf16.mxu0 0
        %2512 = vmatpush1.bf16.msra.mxu0 0
        %2513 = vmatprep.subr.bf16.mxu0 0
        %2514 = vmatpush1.bf16.msra.mxu0 0
        %2515 = vmatprep.subr.bf16.mxu0 0
        %2516 = vmatpush1.bf16.msra.mxu0 0
        %2517 = vmatprep.subr.bf16.mxu0 0
        %2518 = vmatpush1.bf16.msra.mxu0 0
        %2519 = vmatprep.subr.bf16.mxu0 0
        %2520 = vmatpush1.bf16.msra.mxu0 0
        %2521 = vmatprep.subr.bf16.mxu0 0
        %2522 = vmatpush1.bf16.msra.mxu0 0
        %2523 = vmatprep.mubr.bf16.mxu0 0
        %2524 = vmatmul.mubr.bf16.gmra.mrb[0].mxu0 %v2489
        %v2525 = vpop.f32.mrb[0].mxu0
        %v2526 = vadd.f32 0.0, %v2525
        %v2527 = vpop.f32.mrb[0].mxu0
        %v2528 = vadd.f32 0.0, %v2527
        %v2529 = vpop.f32.mrb[0].mxu0
        %v2530 = vadd.f32 0.0, %v2529
        %v2531 = vpop.f32.mrb[0].mxu0
        %v2532 = vadd.f32 0.0, %v2531
        %2533 = vdwg.mxu0
        %2534 = vmatprep.subr.bf16.mxu0 %v1726
        %2535 = vmatpush1.bf16.msra.mxu0 %v1725
        %2536 = vmatprep.subr.bf16.mxu0 0
        %2537 = vmatpush1.bf16.msra.mxu0 0
        %2538 = vmatprep.subr.bf16.mxu0 0
        %2539 = vmatpush1.bf16.msra.mxu0 0
        %2540 = vmatprep.subr.bf16.mxu0 0
        %2541 = vmatpush1.bf16.msra.mxu0 0
        %2542 = vmatprep.subr.bf16.mxu0 0
        %2543 = vmatpush1.bf16.msra.mxu0 0
        %2544 = vmatprep.subr.bf16.mxu0 0
        %2545 = vmatpush1.bf16.msra.mxu0 0
        %2546 = vmatprep.subr.bf16.mxu0 0
        %2547 = vmatpush1.bf16.msra.mxu0 0
        %2548 = vmatprep.subr.bf16.mxu0 0
        %2549 = vmatpush1.bf16.msra.mxu0 0
        %2550 = vmatprep.subr.bf16.mxu0 0
        %2551 = vmatpush1.bf16.msra.mxu0 0
        %2552 = vmatprep.subr.bf16.mxu0 0
        %2553 = vmatpush1.bf16.msra.mxu0 0
        %2554 = vmatprep.subr.bf16.mxu0 0
        %2555 = vmatpush1.bf16.msra.mxu0 0
        %2556 = vmatprep.subr.bf16.mxu0 0
        %2557 = vmatpush1.bf16.msra.mxu0 0
        %2558 = vmatprep.subr.bf16.mxu0 0
        %2559 = vmatpush1.bf16.msra.mxu0 0
        %2560 = vmatprep.subr.bf16.mxu0 0
        %2561 = vmatpush1.bf16.msra.mxu0 0
        %2562 = vmatprep.subr.bf16.mxu0 0
        %2563 = vmatpush1.bf16.msra.mxu0 0
        %2564 = vmatprep.subr.bf16.mxu0 0
        %2565 = vmatpush1.bf16.msra.mxu0 0
        %2566 = vmatprep.mubr.bf16.mxu0 0
        %2567 = vmatmul.mubr.bf16.gmra.mrb[0].mxu0 %v2489
        %v2568 = vpop.f32.mrb[0].mxu0
        %v2569 = vadd.f32 0.0, %v2568
        %v2570 = vpop.f32.mrb[0].mxu0
        %v2571 = vadd.f32 0.0, %v2570
        %v2572 = vpop.f32.mrb[0].mxu0
        %v2573 = vadd.f32 0.0, %v2572
        %v2574 = vpop.f32.mrb[0].mxu0
        %v2575 = vadd.f32 0.0, %v2574
        %2576 = vdwg.mxu0
        %2577 = vmatprep.subr.bf16.mxu0 0
        %2578 = vmatpush1.bf16.msra.mxu0 %v1727
        %2579 = vmatprep.subr.bf16.mxu0 0
        %2580 = vmatpush1.bf16.msra.mxu0 0
        %2581 = vmatprep.subr.bf16.mxu0 0
        %2582 = vmatpush1.bf16.msra.mxu0 0
        %2583 = vmatprep.subr.bf16.mxu0 0
        %2584 = vmatpush1.bf16.msra.mxu0 0
        %2585 = vmatprep.subr.bf16.mxu0 0
        %2586 = vmatpush1.bf16.msra.mxu0 0
        %2587 = vmatprep.subr.bf16.mxu0 0
        %2588 = vmatpush1.bf16.msra.mxu0 0
        %2589 = vmatprep.subr.bf16.mxu0 0
        %2590 = vmatpush1.bf16.msra.mxu0 0
        %2591 = vmatprep.subr.bf16.mxu0 0
        %2592 = vmatpush1.bf16.msra.mxu0 0
        %2593 = vmatprep.subr.bf16.mxu0 0
        %2594 = vmatpush1.bf16.msra.mxu0 0
        %2595 = vmatprep.subr.bf16.mxu0 0
        %2596 = vmatpush1.bf16.msra.mxu0 0
        %2597 = vmatprep.subr.bf16.mxu0 0
        %2598 = vmatpush1.bf16.msra.mxu0 0
        %2599 = vmatprep.subr.bf16.mxu0 0
        %2600 = vmatpush1.bf16.msra.mxu0 0
        %2601 = vmatprep.subr.bf16.mxu0 0
        %2602 = vmatpush1.bf16.msra.mxu0 0
        %2603 = vmatprep.subr.bf16.mxu0 0
        %2604 = vmatpush1.bf16.msra.mxu0 0
        %2605 = vmatprep.subr.bf16.mxu0 0
        %2606 = vmatpush1.bf16.msra.mxu0 0
        %2607 = vmatprep.subr.bf16.mxu0 0
        %2608 = vmatpush1.bf16.msra.mxu0 0
        %2609 = vmatprep.mubr.bf16.mxu0 0
        %2610 = vmatmul.mubr.bf16.gmra.mrb[0].mxu0 %v2489
        %v2611 = vpop.f32.mrb[0].mxu0
        %v2612 = vadd.f32 0.0, %v2611
        %v2613 = vpop.f32.mrb[0].mxu0
        %v2614 = vpop.f32.mrb[0].mxu0
        %v2615 = vadd.f32 0.0, %v2614
        %v2616 = vpop.f32.mrb[0].mxu0
        %2617 = vdwg.mxu0
        %s2618 = scalar_lea.vmem %s5, 6
        %v2619 = vld [vmem:[%s2618] ss:$8 sm:$0xf]
        %v2621 = vlaneseq
        %v2622 = vshrl.u32 %v2621, 7
        %v2623 = vsub.s32 0, %v2622
        %v2624 = vrot.slane %v2619, %v2623
        %v2625 = vlaneseq
        %v2626 = vshrl.u32 %v2625, 7
        %v2627 = vsub.s32 1, %v2626
        %v2628 = vrot.slane %v2619, %v2627
        %v2629 = vlaneseq
        %v2630 = vshrl.u32 %v2629, 7
        %v2631 = vsub.s32 2, %v2630
        %v2632 = vrot.slane %v2619, %v2631
        %v2633 = vlaneseq
        %v2634 = vshrl.u32 %v2633, 7
        %v2635 = vsub.s32 3, %v2634
        %v2636 = vrot.slane %v2619, %v2635
        %v2641 = vmul.f32 %v2526, %v2624
        %v2642 = vmul.f32 %v2528, %v2628
        %v2643 = vmul.f32 %v2569, %v2632
        %v2644 = vmul.f32 %v2571, %v2636
        %v2645 = vmul.f32 %v2530, %v2624
        %v2646 = vmul.f32 %v2532, %v2628
        %v2647 = vmul.f32 %v2573, %v2632
        %v2648 = vmul.f32 %v2575, %v2636
        %v2649 = vadd.f32 %v2472, %v2641
        %v2650 = vadd.f32 %v2473, %v2642
        %v2651 = vadd.f32 %v2474, %v2643
        %v2652 = vadd.f32 %v2475, %v2644
        %v2653 = vadd.f32 %v2476, %v2645
        %v2654 = vadd.f32 %v2477, %v2646
        %v2655 = vadd.f32 %v2478, %v2647
        %v2656 = vadd.f32 %v2479, %v2648
        %s2657 = scalar_lea.vmem %s5, 7
        %v2658 = vld [vmem:[%s2657] ss:$8 sm:$0xf]
        %v2660 = vlaneseq
        %v2661 = vshrl.u32 %v2660, 7
        %v2662 = vsub.s32 0, %v2661
        %v2663 = vrot.slane %v2658, %v2662
        %v2664 = vlaneseq
        %v2665 = vshrl.u32 %v2664, 7
        %v2666 = vsub.s32 1, %v2665
        %v2667 = vrot.slane %v2658, %v2666
        %v2668 = vlaneseq
        %v2669 = vshrl.u32 %v2668, 7
        %v2670 = vsub.s32 2, %v2669
        %v2671 = vrot.slane %v2658, %v2670
        %v2672 = vlaneseq
        %v2673 = vshrl.u32 %v2672, 7
        %v2674 = vsub.s32 3, %v2673
        %v2675 = vrot.slane %v2658, %v2674
        %2676 = vrot.lane.b32.xlu0 %v2663, 32
        %v2677 = vpop.permute.xlu0 %2676
        %2678 = vrot.lane.b32.xlu0 %v2667, 32
        %v2679 = vpop.permute.xlu0 %2678
        %2680 = vrot.lane.b32.xlu0 %v2671, 32
        %v2681 = vpop.permute.xlu0 %2680
        %2682 = vrot.lane.b32.xlu0 %v2675, 32
        %v2683 = vpop.permute.xlu0 %2682
        %v2684 = vsel %vm1931, %v2677, %v2679
        %v2685 = vsel %vm1931, %v2679, %v2681
        %v2686 = vsel %vm1931, %v2681, %v2683
        %v2692 = vmul.f32 %v2526, %v2677
        %v2693 = vmul.f32 %v2528, %v2684
        %v2694 = vmul.f32 %v2569, %v2685
        %v2695 = vmul.f32 %v2571, %v2686
        %v2696 = vmul.f32 %v2612, %v2683
        %v2697 = vmul.f32 %v2530, %v2677
        %v2698 = vmul.f32 %v2532, %v2684
        %v2699 = vmul.f32 %v2573, %v2685
        %v2700 = vmul.f32 %v2575, %v2686
        %v2701 = vmul.f32 %v2615, %v2683
        %2712 = vrot.lane.b32.xlu0 %v2692, 96
        %v2713 = vpop.permute.xlu0 %2712
        %2714 = vrot.lane.b32.xlu0 %v2693, 96
        %v2715 = vpop.permute.xlu0 %2714
        %2716 = vrot.lane.b32.xlu0 %v2694, 96
        %v2717 = vpop.permute.xlu0 %2716
        %2718 = vrot.lane.b32.xlu0 %v2695, 96
        %v2719 = vpop.permute.xlu0 %2718
        %2720 = vrot.lane.b32.xlu0 %v2696, 96
        %v2721 = vpop.permute.xlu0 %2720
        %2722 = vrot.lane.b32.xlu0 %v2697, 96
        %v2723 = vpop.permute.xlu0 %2722
        %2724 = vrot.lane.b32.xlu0 %v2698, 96
        %v2725 = vpop.permute.xlu0 %2724
        %2726 = vrot.lane.b32.xlu0 %v2699, 96
        %v2727 = vpop.permute.xlu0 %2726
        %2728 = vrot.lane.b32.xlu0 %v2700, 96
        %v2729 = vpop.permute.xlu0 %2728
        %2730 = vrot.lane.b32.xlu0 %v2701, 96
        %v2731 = vpop.permute.xlu0 %2730
        %v2732 = vsel %vm1980, %v2713, %v2715
        %v2733 = vsel %vm1980, %v2715, %v2717
        %v2734 = vsel %vm1980, %v2717, %v2719
        %v2735 = vsel %vm1980, %v2719, %v2721
        %v2736 = vsel %vm1980, %v2723, %v2725
        %v2737 = vsel %vm1980, %v2725, %v2727
        %v2738 = vsel %vm1980, %v2727, %v2729
        %v2739 = vsel %vm1980, %v2729, %v2731
        %v2748 = vadd.f32 %v2649, %v2732
        %v2749 = vadd.f32 %v2650, %v2733
        %v2750 = vadd.f32 %v2651, %v2734
        %v2751 = vadd.f32 %v2652, %v2735
        %v2752 = vadd.f32 %v2653, %v2736
        %v2753 = vadd.f32 %v2654, %v2737
        %v2754 = vadd.f32 %v2655, %v2738
        %v2755 = vadd.f32 %v2656, %v2739
        %s2756 = scalar_lea.vmem %s5, 32
        %v2757 = vld [vmem:[%s2756] ss:$8 sm:$0xf]
        %v2759 = vlaneseq
        %v2760 = vshrl.u32 %v2759, 7
        %v2761 = vsub.s32 0, %v2760
        %v2762 = vrot.slane %v2757, %v2761
        %v2763 = vlaneseq
        %v2764 = vshrl.u32 %v2763, 7
        %v2765 = vsub.s32 1, %v2764
        %v2766 = vrot.slane %v2757, %v2765
        %v2767 = vlaneseq
        %v2768 = vshrl.u32 %v2767, 7
        %v2769 = vsub.s32 2, %v2768
        %v2770 = vrot.slane %v2757, %v2769
        %v2771 = vlaneseq
        %v2772 = vshrl.u32 %v2771, 7
        %v2773 = vsub.s32 3, %v2772
        %v2774 = vrot.slane %v2757, %v2773
        %2775 = vrot.lane.b32.xlu0 %v2762, 64
        %v2776 = vpop.permute.xlu0 %2775
        %2777 = vrot.lane.b32.xlu0 %v2766, 64
        %v2778 = vpop.permute.xlu0 %2777
        %2779 = vrot.lane.b32.xlu0 %v2770, 64
        %v2780 = vpop.permute.xlu0 %2779
        %2781 = vrot.lane.b32.xlu0 %v2774, 64
        %v2782 = vpop.permute.xlu0 %2781
        %v2783 = vsel %vm2032, %v2776, %v2778
        %v2784 = vsel %vm2032, %v2778, %v2780
        %v2785 = vsel %vm2032, %v2780, %v2782
        %v2791 = vmul.f32 %v2526, %v2776
        %v2792 = vmul.f32 %v2528, %v2783
        %v2793 = vmul.f32 %v2569, %v2784
        %v2794 = vmul.f32 %v2571, %v2785
        %v2795 = vmul.f32 %v2612, %v2782
        %v2796 = vmul.f32 %v2530, %v2776
        %v2797 = vmul.f32 %v2532, %v2783
        %v2798 = vmul.f32 %v2573, %v2784
        %v2799 = vmul.f32 %v2575, %v2785
        %v2800 = vmul.f32 %v2615, %v2782
        %2811 = vrot.lane.b32.xlu0 %v2791, 64
        %v2812 = vpop.permute.xlu0 %2811
        %2813 = vrot.lane.b32.xlu0 %v2792, 64
        %v2814 = vpop.permute.xlu0 %2813
        %2815 = vrot.lane.b32.xlu0 %v2793, 64
        %v2816 = vpop.permute.xlu0 %2815
        %2817 = vrot.lane.b32.xlu0 %v2794, 64
        %v2818 = vpop.permute.xlu0 %2817
        %2819 = vrot.lane.b32.xlu0 %v2795, 64
        %v2820 = vpop.permute.xlu0 %2819
        %2821 = vrot.lane.b32.xlu0 %v2796, 64
        %v2822 = vpop.permute.xlu0 %2821
        %2823 = vrot.lane.b32.xlu0 %v2797, 64
        %v2824 = vpop.permute.xlu0 %2823
        %2825 = vrot.lane.b32.xlu0 %v2798, 64
        %v2826 = vpop.permute.xlu0 %2825
        %2827 = vrot.lane.b32.xlu0 %v2799, 64
        %v2828 = vpop.permute.xlu0 %2827
        %2829 = vrot.lane.b32.xlu0 %v2800, 64
        %v2830 = vpop.permute.xlu0 %2829
        %v2831 = vsel %vm2032, %v2812, %v2814
        %v2832 = vsel %vm2032, %v2814, %v2816
        %v2833 = vsel %vm2032, %v2816, %v2818
        %v2834 = vsel %vm2032, %v2818, %v2820
        %v2835 = vsel %vm2032, %v2822, %v2824
        %v2836 = vsel %vm2032, %v2824, %v2826
        %v2837 = vsel %vm2032, %v2826, %v2828
        %v2838 = vsel %vm2032, %v2828, %v2830
        %v2847 = vadd.f32 %v2748, %v2831
        %v2848 = vadd.f32 %v2749, %v2832
        %v2849 = vadd.f32 %v2750, %v2833
        %v2850 = vadd.f32 %v2751, %v2834
        %v2851 = vadd.f32 %v2752, %v2835
        %v2852 = vadd.f32 %v2753, %v2836
        %v2853 = vadd.f32 %v2754, %v2837
        %v2854 = vadd.f32 %v2755, %v2838
        %v2855 = vld [vmem:[%s6] sm:$0xf]
        %v2857 = vlaneseq
        %v2858 = vshrl.u32 %v2857, 7
        %v2859 = vsub.s32 0, %v2858
        %v2860 = vrot.slane %v2855, %v2859
        %v2861 = vlaneseq
        %v2862 = vshrl.u32 %v2861, 7
        %v2863 = vsub.s32 1, %v2862
        %v2864 = vrot.slane %v2855, %v2863
        %v2865 = vlaneseq
        %v2866 = vshrl.u32 %v2865, 7
        %v2867 = vsub.s32 2, %v2866
        %v2868 = vrot.slane %v2855, %v2867
        %v2869 = vlaneseq
        %v2870 = vshrl.u32 %v2869, 7
        %v2871 = vsub.s32 3, %v2870
        %v2872 = vrot.slane %v2855, %v2871
        %v2877 = vmul.f32 %v2847, %v2860
        %v2878 = vmul.f32 %v2848, %v2864
        %v2879 = vmul.f32 %v2849, %v2868
        %v2880 = vmul.f32 %v2850, %v2872
        %v2881 = vmul.f32 %v2851, %v2860
        %v2882 = vmul.f32 %v2852, %v2864
        %v2883 = vmul.f32 %v2853, %v2868
        %v2884 = vmul.f32 %v2854, %v2872
        %v2885 = vld [vmem:[%s7] sm:$0xf]
        %v2887 = vlaneseq
        %v2888 = vshrl.u32 %v2887, 7
        %v2889 = vsub.s32 0, %v2888
        %v2890 = vrot.slane %v2885, %v2889
        %v2891 = vlaneseq
        %v2892 = vshrl.u32 %v2891, 7
        %v2893 = vsub.s32 1, %v2892
        %v2894 = vrot.slane %v2885, %v2893
        %v2895 = vlaneseq
        %v2896 = vshrl.u32 %v2895, 7
        %v2897 = vsub.s32 2, %v2896
        %v2898 = vrot.slane %v2885, %v2897
        %v2899 = vlaneseq
        %v2900 = vshrl.u32 %v2899, 7
        %v2901 = vsub.s32 3, %v2900
        %v2902 = vrot.slane %v2885, %v2901
        %v2907 = vadd.f32 %v2877, %v2890
        %v2908 = vadd.f32 %v2878, %v2894
        %v2909 = vadd.f32 %v2879, %v2898
        %v2910 = vadd.f32 %v2880, %v2902
        %v2911 = vadd.f32 %v2881, %v2890
        %v2912 = vadd.f32 %v2882, %v2894
        %v2913 = vadd.f32 %v2883, %v2898
        %v2914 = vadd.f32 %v2884, %v2902
        %v2915 = vxor.u32 %v2907, 2147483648
        %v2916 = vxor.u32 %v2908, 2147483648
        %v2917 = vxor.u32 %v2909, 2147483648
        %v2918 = vxor.u32 %v2910, 2147483648
        %v2919 = vxor.u32 %v2911, 2147483648
        %v2920 = vxor.u32 %v2912, 2147483648
        %v2921 = vxor.u32 %v2913, 2147483648
        %v2922 = vxor.u32 %v2914, 2147483648
        %v2923 = vmul.f32 %v2915, 1.442695
        %v2924 = vpow.pop %v2923
        %v2925 = vmul.f32 %v2916, 1.442695
        %v2926 = vpow.pop %v2925
        %v2927 = vmul.f32 %v2917, 1.442695
        %v2928 = vpow.pop %v2927
        %v2929 = vmul.f32 %v2918, 1.442695
        %v2930 = vpow.pop %v2929
        %v2931 = vmul.f32 %v2919, 1.442695
        %v2932 = vpow.pop %v2931
        %v2933 = vmul.f32 %v2920, 1.442695
        %v2934 = vpow.pop %v2933
        %v2935 = vmul.f32 %v2921, 1.442695
        %v2936 = vpow.pop %v2935
        %v2937 = vmul.f32 %v2922, 1.442695
        %v2938 = vpow.pop %v2937
        %v2939 = vadd.f32 %v2924, 1.0
        %v2940 = vadd.f32 %v2926, 1.0
        %v2941 = vadd.f32 %v2928, 1.0
        %v2942 = vadd.f32 %v2930, 1.0
        %v2943 = vadd.f32 %v2932, 1.0
        %v2944 = vadd.f32 %v2934, 1.0
        %v2945 = vadd.f32 %v2936, 1.0
        %v2946 = vadd.f32 %v2938, 1.0
        %v2947 = vrcp.pop %v2939
        %v2948 = vmul.f32 1.0, %v2947
        %v2949 = vrcp.pop %v2940
        %v2950 = vmul.f32 1.0, %v2949
        %v2951 = vrcp.pop %v2941
        %v2952 = vmul.f32 1.0, %v2951
        %v2953 = vrcp.pop %v2942
        %v2954 = vmul.f32 1.0, %v2953
        %v2955 = vrcp.pop %v2943
        %v2956 = vmul.f32 1.0, %v2955
        %v2957 = vrcp.pop %v2944
        %v2958 = vmul.f32 1.0, %v2957
        %v2959 = vrcp.pop %v2945
        %v2960 = vmul.f32 1.0, %v2959
        %v2961 = vrcp.pop %v2946
        %v2962 = vmul.f32 1.0, %v2961
        %v2963 = vmul.f32 %v2907, %v2948
        %v2964 = vmul.f32 %v2908, %v2950
        %v2965 = vmul.f32 %v2909, %v2952
        %v2966 = vmul.f32 %v2910, %v2954
        %v2967 = vmul.f32 %v2911, %v2956
        %v2968 = vmul.f32 %v2912, %v2958
        %v2969 = vmul.f32 %v2913, %v2960
        %v2970 = vmul.f32 %v2914, %v2962
        %v2971 = vpack.c.bf16 %v2967, %v2963
        %v2972 = vpack.c.bf16 %v2968, %v2964
        %v2973 = vpack.c.bf16 %v2969, %v2965
        %v2974 = vpack.c.bf16 %v2970, %v2966
        %v2976 = vsel %vm1735, 1065369472, 0
        %2978 = vmatprep.subr.bf16.mxu0 %v2972
        %2979 = vmatpush1.bf16.msra.mxu0 %v2971
        %2980 = vmatprep.subr.bf16.mxu0 0
        %2981 = vmatpush1.bf16.msra.mxu0 0
        %2982 = vmatprep.subr.bf16.mxu0 0
        %2983 = vmatpush1.bf16.msra.mxu0 0
        %2984 = vmatprep.subr.bf16.mxu0 0
        %2985 = vmatpush1.bf16.msra.mxu0 0
        %2986 = vmatprep.subr.bf16.mxu0 0
        %2987 = vmatpush1.bf16.msra.mxu0 0
        %2988 = vmatprep.subr.bf16.mxu0 0
        %2989 = vmatpush1.bf16.msra.mxu0 0
        %2990 = vmatprep.subr.bf16.mxu0 0
        %2991 = vmatpush1.bf16.msra.mxu0 0
        %2992 = vmatprep.subr.bf16.mxu0 0
        %2993 = vmatpush1.bf16.msra.mxu0 0
        %2994 = vmatprep.subr.bf16.mxu0 0
        %2995 = vmatpush1.bf16.msra.mxu0 0
        %2996 = vmatprep.subr.bf16.mxu0 0
        %2997 = vmatpush1.bf16.msra.mxu0 0
        %2998 = vmatprep.subr.bf16.mxu0 0
        %2999 = vmatpush1.bf16.msra.mxu0 0
        %3000 = vmatprep.subr.bf16.mxu0 0
        %3001 = vmatpush1.bf16.msra.mxu0 0
        %3002 = vmatprep.subr.bf16.mxu0 0
        %3003 = vmatpush1.bf16.msra.mxu0 0
        %3004 = vmatprep.subr.bf16.mxu0 0
        %3005 = vmatpush1.bf16.msra.mxu0 0
        %3006 = vmatprep.subr.bf16.mxu0 0
        %3007 = vmatpush1.bf16.msra.mxu0 0
        %3008 = vmatprep.subr.bf16.mxu0 0
        %3009 = vmatpush1.bf16.msra.mxu0 0
        %3010 = vmatprep.mubr.bf16.mxu0 0
        %3011 = vmatmul.mubr.bf16.gmra.mrb[0].mxu0 %v2976
        %v3012 = vpop.f32.mrb[0].mxu0
        %v3013 = vadd.f32 0.0, %v3012
        %v3014 = vpop.f32.mrb[0].mxu0
        %v3015 = vadd.f32 0.0, %v3014
        %v3016 = vpop.f32.mrb[0].mxu0
        %v3017 = vpop.f32.mrb[0].mxu0
        %3018 = vdwg.mxu0
        %3019 = vmatprep.subr.bf16.mxu0 %v2974
        %3020 = vmatpush1.bf16.msra.mxu0 %v2973
        %3021 = vmatprep.subr.bf16.mxu0 0
        %3022 = vmatpush1.bf16.msra.mxu0 0
        %3023 = vmatprep.subr.bf16.mxu0 0
        %3024 = vmatpush1.bf16.msra.mxu0 0
        %3025 = vmatprep.subr.bf16.mxu0 0
        %3026 = vmatpush1.bf16.msra.mxu0 0
        %3027 = vmatprep.subr.bf16.mxu0 0
        %3028 = vmatpush1.bf16.msra.mxu0 0
        %3029 = vmatprep.subr.bf16.mxu0 0
        %3030 = vmatpush1.bf16.msra.mxu0 0
        %3031 = vmatprep.subr.bf16.mxu0 0
        %3032 = vmatpush1.bf16.msra.mxu0 0
        %3033 = vmatprep.subr.bf16.mxu0 0
        %3034 = vmatpush1.bf16.msra.mxu0 0
        %3035 = vmatprep.subr.bf16.mxu0 0
        %3036 = vmatpush1.bf16.msra.mxu0 0
        %3037 = vmatprep.subr.bf16.mxu0 0
        %3038 = vmatpush1.bf16.msra.mxu0 0
        %3039 = vmatprep.subr.bf16.mxu0 0
        %3040 = vmatpush1.bf16.msra.mxu0 0
        %3041 = vmatprep.subr.bf16.mxu0 0
        %3042 = vmatpush1.bf16.msra.mxu0 0
        %3043 = vmatprep.subr.bf16.mxu0 0
        %3044 = vmatpush1.bf16.msra.mxu0 0
        %3045 = vmatprep.subr.bf16.mxu0 0
        %3046 = vmatpush1.bf16.msra.mxu0 0
        %3047 = vmatprep.subr.bf16.mxu0 0
        %3048 = vmatpush1.bf16.msra.mxu0 0
        %3049 = vmatprep.subr.bf16.mxu0 0
        %3050 = vmatpush1.bf16.msra.mxu0 0
        %3051 = vmatprep.mubr.bf16.mxu0 0
        %3052 = vmatmul.mubr.bf16.gmra.mrb[0].mxu0 %v2976
        %v3053 = vpop.f32.mrb[0].mxu0
        %v3054 = vadd.f32 0.0, %v3053
        %v3055 = vpop.f32.mrb[0].mxu0
        %v3056 = vadd.f32 0.0, %v3055
        %v3057 = vpop.f32.mrb[0].mxu0
        %v3058 = vpop.f32.mrb[0].mxu0
        %3059 = vdwg.mxu0
        %v3060 = vpack.c.bf16 %v3013, %v3013
        %v3061 = vpack.c.bf16 %v3015, %v3015
        %v3062 = vpack.c.bf16 %v3054, %v3054
        %v3063 = vpack.c.bf16 %v3056, %v3056
        %v3064 = vld [vmem:[%s12] sm:$0xf]
        %v3065 = vld [vmem:[%s12 + $0x4] sm:$0xf]
        %v3066 = vld [vmem:[%s12 + $0x8] sm:$0xf]
        %v3067 = vld [vmem:[%s12 + $0xc] sm:$0xf]
        %v3068 = vld [vmem:[%s12 + $0x10] sm:$0xf]
        %v3069 = vld [vmem:[%s12 + $0x14] sm:$0xf]
        %v3070 = vld [vmem:[%s12 + $0x18] sm:$0xf]
        %v3071 = vld [vmem:[%s12 + $0x1c] sm:$0xf]
        %v3072 = vld [vmem:[%s12 + $0x20] sm:$0xf]
        %v3073 = vld [vmem:[%s12 + $0x24] sm:$0xf]
        %v3074 = vld [vmem:[%s12 + $0x28] sm:$0xf]
        %v3075 = vld [vmem:[%s12 + $0x2c] sm:$0xf]
        %v3076 = vld [vmem:[%s12 + $0x30] sm:$0xf]
        %v3077 = vld [vmem:[%s12 + $0x34] sm:$0xf]
        %v3078 = vld [vmem:[%s12 + $0x38] sm:$0xf]
        %v3079 = vld [vmem:[%s12 + $0x3c] sm:$0xf]
        %v3080 = vld [vmem:[%s12 + $0x40] sm:$0xf]
        %v3081 = vld [vmem:[%s12 + $0x44] sm:$0xf]
        %v3082 = vld [vmem:[%s12 + $0x48] sm:$0xf]
        %v3083 = vld [vmem:[%s12 + $0x4c] sm:$0xf]
        %v3084 = vld [vmem:[%s12 + $0x50] sm:$0xf]
        %v3085 = vld [vmem:[%s12 + $0x54] sm:$0xf]
        %v3086 = vld [vmem:[%s12 + $0x58] sm:$0xf]
        %v3087 = vld [vmem:[%s12 + $0x5c] sm:$0xf]
        %v3088 = vld [vmem:[%s12 + $0x60] sm:$0xf]
        %v3089 = vld [vmem:[%s12 + $0x64] sm:$0xf]
        %v3090 = vld [vmem:[%s12 + $0x68] sm:$0xf]
        %v3091 = vld [vmem:[%s12 + $0x6c] sm:$0xf]
        %v3092 = vld [vmem:[%s12 + $0x70] sm:$0xf]
        %v3093 = vld [vmem:[%s12 + $0x74] sm:$0xf]
        %v3094 = vld [vmem:[%s12 + $0x78] sm:$0xf]
        %v3095 = vld [vmem:[%s12 + $0x7c] sm:$0xf]
        %v3096 = vld [vmem:[%s12 + $0x80] sm:$0xf]
        %v3097 = vld [vmem:[%s12 + $0x84] sm:$0xf]
        %v3098 = vld [vmem:[%s12 + $0x88] sm:$0xf]
        %v3099 = vld [vmem:[%s12 + $0x8c] sm:$0xf]
        %v3100 = vld [vmem:[%s12 + $0x90] sm:$0xf]
        %v3101 = vld [vmem:[%s12 + $0x94] sm:$0xf]
        %v3102 = vld [vmem:[%s12 + $0x98] sm:$0xf]
        %v3103 = vld [vmem:[%s12 + $0x9c] sm:$0xf]
        %v3104 = vld [vmem:[%s12 + $0xa0] sm:$0xf]
        %v3105 = vld [vmem:[%s12 + $0xa4] sm:$0xf]
        %v3106 = vld [vmem:[%s12 + $0xa8] sm:$0xf]
        %v3107 = vld [vmem:[%s12 + $0xac] sm:$0xf]
        %v3108 = vld [vmem:[%s12 + $0xb0] sm:$0xf]
        %v3109 = vld [vmem:[%s12 + $0xb4] sm:$0xf]
        %v3110 = vld [vmem:[%s12 + $0xb8] sm:$0xf]
        %v3111 = vld [vmem:[%s12 + $0xbc] sm:$0xf]
        %v3112 = vld [vmem:[%s12 + $0xc0] sm:$0xf]
        %v3113 = vld [vmem:[%s12 + $0xc4] sm:$0xf]
        %v3114 = vld [vmem:[%s12 + $0xc8] sm:$0xf]
        %v3115 = vld [vmem:[%s12 + $0xcc] sm:$0xf]
        %v3116 = vld [vmem:[%s12 + $0xd0] sm:$0xf]
        %v3117 = vld [vmem:[%s12 + $0xd4] sm:$0xf]
        %v3118 = vld [vmem:[%s12 + $0xd8] sm:$0xf]
        %v3119 = vld [vmem:[%s12 + $0xdc] sm:$0xf]
        %v3120 = vld [vmem:[%s12 + $0xe0] sm:$0xf]
        %v3121 = vld [vmem:[%s12 + $0xe4] sm:$0xf]
        %v3122 = vld [vmem:[%s12 + $0xe8] sm:$0xf]
        %v3123 = vld [vmem:[%s12 + $0xec] sm:$0xf]
        %v3124 = vld [vmem:[%s12 + $0xf0] sm:$0xf]
        %v3125 = vld [vmem:[%s12 + $0xf4] sm:$0xf]
        %v3126 = vld [vmem:[%s12 + $0xf8] sm:$0xf]
        %v3127 = vld [vmem:[%s12 + $0xfc] sm:$0xf]
        %v3192 = vunpack.c.l.b16 %v3064
        %v3193 = vunpack.c.l.b16 %v3065
        %v3194 = vunpack.c.l.b16 %v3066
        %v3195 = vunpack.c.l.b16 %v3067
        %v3196 = vunpack.c.l.b16 %v3068
        %v3197 = vunpack.c.l.b16 %v3069
        %v3198 = vunpack.c.l.b16 %v3070
        %v3199 = vunpack.c.l.b16 %v3071
        %v3200 = vunpack.c.l.b16 %v3072
        %v3201 = vunpack.c.l.b16 %v3073
        %v3202 = vunpack.c.l.b16 %v3074
        %v3203 = vunpack.c.l.b16 %v3075
        %v3204 = vunpack.c.l.b16 %v3076
        %v3205 = vunpack.c.l.b16 %v3077
        %v3206 = vunpack.c.l.b16 %v3078
        %v3207 = vunpack.c.l.b16 %v3079
        %v3208 = vunpack.c.l.b16 %v3080
        %v3209 = vunpack.c.l.b16 %v3081
        %v3210 = vunpack.c.l.b16 %v3082
        %v3211 = vunpack.c.l.b16 %v3083
        %v3212 = vunpack.c.l.b16 %v3084
        %v3213 = vunpack.c.l.b16 %v3085
        %v3214 = vunpack.c.l.b16 %v3086
        %v3215 = vunpack.c.l.b16 %v3087
        %v3216 = vunpack.c.l.b16 %v3088
        %v3217 = vunpack.c.l.b16 %v3089
        %v3218 = vunpack.c.l.b16 %v3090
        %v3219 = vunpack.c.l.b16 %v3091
        %v3220 = vunpack.c.l.b16 %v3092
        %v3221 = vunpack.c.l.b16 %v3093
        %v3222 = vunpack.c.l.b16 %v3094
        %v3223 = vunpack.c.l.b16 %v3095
        %v3224 = vunpack.c.l.b16 %v3096
        %v3225 = vunpack.c.l.b16 %v3097
        %v3226 = vunpack.c.l.b16 %v3098
        %v3227 = vunpack.c.l.b16 %v3099
        %v3228 = vunpack.c.l.b16 %v3100
        %v3229 = vunpack.c.l.b16 %v3101
        %v3230 = vunpack.c.l.b16 %v3102
        %v3231 = vunpack.c.l.b16 %v3103
        %v3232 = vunpack.c.l.b16 %v3104
        %v3233 = vunpack.c.l.b16 %v3105
        %v3234 = vunpack.c.l.b16 %v3106
        %v3235 = vunpack.c.l.b16 %v3107
        %v3236 = vunpack.c.l.b16 %v3108
        %v3237 = vunpack.c.l.b16 %v3109
        %v3238 = vunpack.c.l.b16 %v3110
        %v3239 = vunpack.c.l.b16 %v3111
        %v3240 = vunpack.c.l.b16 %v3112
        %v3241 = vunpack.c.l.b16 %v3113
        %v3242 = vunpack.c.l.b16 %v3114
        %v3243 = vunpack.c.l.b16 %v3115
        %v3244 = vunpack.c.l.b16 %v3116
        %v3245 = vunpack.c.l.b16 %v3117
        %v3246 = vunpack.c.l.b16 %v3118
        %v3247 = vunpack.c.l.b16 %v3119
        %v3248 = vunpack.c.l.b16 %v3120
        %v3249 = vunpack.c.l.b16 %v3121
        %v3250 = vunpack.c.l.b16 %v3122
        %v3251 = vunpack.c.l.b16 %v3123
        %v3252 = vunpack.c.l.b16 %v3124
        %v3253 = vunpack.c.l.b16 %v3125
        %v3254 = vunpack.c.l.b16 %v3126
        %v3255 = vunpack.c.l.b16 %v3127
        %v3256 = vpack.c.b16 %v3193, %v3192
        %v3257 = vpack.c.b16 %v3195, %v3194
        %v3258 = vpack.c.b16 %v3197, %v3196
        %v3259 = vpack.c.b16 %v3199, %v3198
        %v3260 = vpack.c.b16 %v3201, %v3200
        %v3261 = vpack.c.b16 %v3203, %v3202
        %v3262 = vpack.c.b16 %v3205, %v3204
        %v3263 = vpack.c.b16 %v3207, %v3206
        %v3264 = vpack.c.b16 %v3209, %v3208
        %v3265 = vpack.c.b16 %v3211, %v3210
        %v3266 = vpack.c.b16 %v3213, %v3212
        %v3267 = vpack.c.b16 %v3215, %v3214
        %v3268 = vpack.c.b16 %v3217, %v3216
        %v3269 = vpack.c.b16 %v3219, %v3218
        %v3270 = vpack.c.b16 %v3221, %v3220
        %v3271 = vpack.c.b16 %v3223, %v3222
        %v3272 = vpack.c.b16 %v3225, %v3224
        %v3273 = vpack.c.b16 %v3227, %v3226
        %v3274 = vpack.c.b16 %v3229, %v3228
        %v3275 = vpack.c.b16 %v3231, %v3230
        %v3276 = vpack.c.b16 %v3233, %v3232
        %v3277 = vpack.c.b16 %v3235, %v3234
        %v3278 = vpack.c.b16 %v3237, %v3236
        %v3279 = vpack.c.b16 %v3239, %v3238
        %v3280 = vpack.c.b16 %v3241, %v3240
        %v3281 = vpack.c.b16 %v3243, %v3242
        %v3282 = vpack.c.b16 %v3245, %v3244
        %v3283 = vpack.c.b16 %v3247, %v3246
        %v3284 = vpack.c.b16 %v3249, %v3248
        %v3285 = vpack.c.b16 %v3251, %v3250
        %v3286 = vpack.c.b16 %v3253, %v3252
        %v3287 = vpack.c.b16 %v3255, %v3254
        %3320 = vmatprep.subr.bf16.mxu0 0
        %3321 = vmatpush1.bf16.msra.mxu0 %v3256
        %3322 = vmatprep.subr.bf16.mxu0 0
        %3323 = vmatpush1.bf16.msra.mxu0 %v3257
        %3324 = vmatprep.subr.bf16.mxu0 0
        %3325 = vmatpush1.bf16.msra.mxu0 %v3258
        %3326 = vmatprep.subr.bf16.mxu0 0
        %3327 = vmatpush1.bf16.msra.mxu0 %v3259
        %3328 = vmatprep.subr.bf16.mxu0 0
        %3329 = vmatpush1.bf16.msra.mxu0 %v3260
        %3330 = vmatprep.subr.bf16.mxu0 0
        %3331 = vmatpush1.bf16.msra.mxu0 %v3261
        %3332 = vmatprep.subr.bf16.mxu0 0
        %3333 = vmatpush1.bf16.msra.mxu0 %v3262
        %3334 = vmatprep.subr.bf16.mxu0 0
        %3335 = vmatpush1.bf16.msra.mxu0 %v3263
        %3336 = vmatprep.subr.bf16.mxu0 0
        %3337 = vmatpush1.bf16.msra.mxu0 %v3264
        %3338 = vmatprep.subr.bf16.mxu0 0
        %3339 = vmatpush1.bf16.msra.mxu0 %v3265
        %3340 = vmatprep.subr.bf16.mxu0 0
        %3341 = vmatpush1.bf16.msra.mxu0 %v3266
        %3342 = vmatprep.subr.bf16.mxu0 0
        %3343 = vmatpush1.bf16.msra.mxu0 %v3267
        %3344 = vmatprep.subr.bf16.mxu0 0
        %3345 = vmatpush1.bf16.msra.mxu0 %v3268
        %3346 = vmatprep.subr.bf16.mxu0 0
        %3347 = vmatpush1.bf16.msra.mxu0 %v3269
        %3348 = vmatprep.subr.bf16.mxu0 0
        %3349 = vmatpush1.bf16.msra.mxu0 %v3270
        %3350 = vmatprep.subr.bf16.mxu0 0
        %3351 = vmatpush1.bf16.msra.mxu0 %v3271
        %3352 = vmatprep.mubr.bf16.mxu0 %v3061
        %3353 = vmatmul.mubr.bf16.gmra.mrb[0].mxu0 %v3060
        %v3354 = vpop.f32.mrb[0].mxu0
        %v3355 = vadd.f32 0.0, %v3354
        %v3356 = vpop.f32.mrb[0].mxu0
        %v3357 = vpop.f32.mrb[0].mxu0
        %v3358 = vpop.f32.mrb[0].mxu0
        %3359 = vdwg.mxu0
        %3360 = vmatprep.subr.bf16.mxu0 0
        %3361 = vmatpush1.bf16.msra.mxu0 %v3272
        %3362 = vmatprep.subr.bf16.mxu0 0
        %3363 = vmatpush1.bf16.msra.mxu0 %v3273
        %3364 = vmatprep.subr.bf16.mxu0 0
        %3365 = vmatpush1.bf16.msra.mxu0 %v3274
        %3366 = vmatprep.subr.bf16.mxu0 0
        %3367 = vmatpush1.bf16.msra.mxu0 %v3275
        %3368 = vmatprep.subr.bf16.mxu0 0
        %3369 = vmatpush1.bf16.msra.mxu0 %v3276
        %3370 = vmatprep.subr.bf16.mxu0 0
        %3371 = vmatpush1.bf16.msra.mxu0 %v3277
        %3372 = vmatprep.subr.bf16.mxu0 0
        %3373 = vmatpush1.bf16.msra.mxu0 %v3278
        %3374 = vmatprep.subr.bf16.mxu0 0
        %3375 = vmatpush1.bf16.msra.mxu0 %v3279
        %3376 = vmatprep.subr.bf16.mxu0 0
        %3377 = vmatpush1.bf16.msra.mxu0 %v3280
        %3378 = vmatprep.subr.bf16.mxu0 0
        %3379 = vmatpush1.bf16.msra.mxu0 %v3281
        %3380 = vmatprep.subr.bf16.mxu0 0
        %3381 = vmatpush1.bf16.msra.mxu0 %v3282
        %3382 = vmatprep.subr.bf16.mxu0 0
        %3383 = vmatpush1.bf16.msra.mxu0 %v3283
        %3384 = vmatprep.subr.bf16.mxu0 0
        %3385 = vmatpush1.bf16.msra.mxu0 %v3284
        %3386 = vmatprep.subr.bf16.mxu0 0
        %3387 = vmatpush1.bf16.msra.mxu0 %v3285
        %3388 = vmatprep.subr.bf16.mxu0 0
        %3389 = vmatpush1.bf16.msra.mxu0 %v3286
        %3390 = vmatprep.subr.bf16.mxu0 0
        %3391 = vmatpush1.bf16.msra.mxu0 %v3287
        %3392 = vmatprep.mubr.bf16.mxu0 %v3063
        %3393 = vmatmul.mubr.bf16.gmra.mrb[0].mxu0 %v3062
        %v3394 = vpop.f32.mrb[0].mxu0
        %v3395 = vadd.f32 %v3355, %v3394
        %v3396 = vpop.f32.mrb[0].mxu0
        %v3397 = vpop.f32.mrb[0].mxu0
        %v3398 = vpop.f32.mrb[0].mxu0
        %3399 = vdwg.mxu0
        %v3400 = vmul.f32 %v3395, 0.00390625
        %v3401 = vpack.c.bf16 %v3400, %v3400
        %v3402 = vld [vmem:[%s8] sm:$0xf]
        %v3403 = vld [vmem:[%s8 + $0x4] sm:$0xf]
        %v3404 = vld [vmem:[%s8 + $0x8] sm:$0xf]
        %v3405 = vld [vmem:[%s8 + $0xc] sm:$0xf]
        %v3410 = vunpack.c.l.b16 %v3402
        %v3411 = vunpack.c.l.b16 %v3403
        %v3412 = vunpack.c.l.b16 %v3404
        %v3413 = vunpack.c.l.b16 %v3405
        %v3414 = vpack.c.b16 %v3411, %v3410
        %v3415 = vpack.c.b16 %v3413, %v3412
        %v3419 = vsel %vm1931, %v3401, 0
        %3421 = vmatprep.subr.bf16.mxu0 0
        %3422 = vmatpush1.bf16.msra.mxu0 %v3414
        %3423 = vmatprep.subr.bf16.mxu0 0
        %3424 = vmatpush1.bf16.msra.mxu0 %v3415
        %3425 = vmatprep.subr.bf16.mxu0 0
        %3426 = vmatpush1.bf16.msra.mxu0 0
        %3427 = vmatprep.subr.bf16.mxu0 0
        %3428 = vmatpush1.bf16.msra.mxu0 0
        %3429 = vmatprep.subr.bf16.mxu0 0
        %3430 = vmatpush1.bf16.msra.mxu0 0
        %3431 = vmatprep.subr.bf16.mxu0 0
        %3432 = vmatpush1.bf16.msra.mxu0 0
        %3433 = vmatprep.subr.bf16.mxu0 0
        %3434 = vmatpush1.bf16.msra.mxu0 0
        %3435 = vmatprep.subr.bf16.mxu0 0
        %3436 = vmatpush1.bf16.msra.mxu0 0
        %3437 = vmatprep.subr.bf16.mxu0 0
        %3438 = vmatpush1.bf16.msra.mxu0 0
        %3439 = vmatprep.subr.bf16.mxu0 0
        %3440 = vmatpush1.bf16.msra.mxu0 0
        %3441 = vmatprep.subr.bf16.mxu0 0
        %3442 = vmatpush1.bf16.msra.mxu0 0
        %3443 = vmatprep.subr.bf16.mxu0 0
        %3444 = vmatpush1.bf16.msra.mxu0 0
        %3445 = vmatprep.subr.bf16.mxu0 0
        %3446 = vmatpush1.bf16.msra.mxu0 0
        %3447 = vmatprep.subr.bf16.mxu0 0
        %3448 = vmatpush1.bf16.msra.mxu0 0
        %3449 = vmatprep.subr.bf16.mxu0 0
        %3450 = vmatpush1.bf16.msra.mxu0 0
        %3451 = vmatprep.subr.bf16.mxu0 0
        %3452 = vmatpush1.bf16.msra.mxu0 0
        %3453 = vmatprep.mubr.bf16.mxu0 0
        %3454 = vmatmul.mubr.bf16.gmra.mrb[0].mxu0 %v3419
        %v3455 = vpop.f32.mrb[0].mxu0
        %v3456 = vadd.f32 0.0, %v3455
        %v3457 = vpop.f32.mrb[0].mxu0
        %v3458 = vpop.f32.mrb[0].mxu0
        %v3459 = vpop.f32.mrb[0].mxu0
        %3460 = vdwg.mxu0
        %v3461 = vxor.u32 %v3456, 2147483648
        %v3462 = vmul.f32 %v3461, 1.442695
        %v3463 = vpow.pop %v3462
        %v3464 = vadd.f32 %v3463, 1.0
        %v3465 = vrcp.pop %v3464
        %v3466 = vmul.f32 1.0, %v3465
        %v3467 = vmul.f32 %v3456, %v3466
        %v3468 = vpack.c.bf16 %v3467, %v3467
        %v3469 = vld [vmem:[%s9] sm:$0xf]
        %v3470 = vld [vmem:[%s9 + $0x4] sm:$0xf]
        %v3471 = vld [vmem:[%s10] sm:$0x1]
        %v3474 = vunpack.c.l.b16 %v3469
        %v3475 = vunpack.c.l.b16 %v3470
        %v3476 = vpack.c.b16 %v3475, %v3474
        %v3479 = vsel %vm1735, %v3468, 0
        %3481 = vmatprep.subr.bf16.mxu0 0
        %3482 = vmatpush1.bf16.msra.mxu0 %v3476
        %3483 = vmatprep.subr.bf16.mxu0 0
        %3484 = vmatpush1.bf16.msra.mxu0 0
        %3485 = vmatprep.subr.bf16.mxu0 0
        %3486 = vmatpush1.bf16.msra.mxu0 0
        %3487 = vmatprep.subr.bf16.mxu0 0
        %3488 = vmatpush1.bf16.msra.mxu0 0
        %3489 = vmatprep.subr.bf16.mxu0 0
        %3490 = vmatpush1.bf16.msra.mxu0 0
        %3491 = vmatprep.subr.bf16.mxu0 0
        %3492 = vmatpush1.bf16.msra.mxu0 0
        %3493 = vmatprep.subr.bf16.mxu0 0
        %3494 = vmatpush1.bf16.msra.mxu0 0
        %3495 = vmatprep.subr.bf16.mxu0 0
        %3496 = vmatpush1.bf16.msra.mxu0 0
        %3497 = vmatprep.subr.bf16.mxu0 0
        %3498 = vmatpush1.bf16.msra.mxu0 0
        %3499 = vmatprep.subr.bf16.mxu0 0
        %3500 = vmatpush1.bf16.msra.mxu0 0
        %3501 = vmatprep.subr.bf16.mxu0 0
        %3502 = vmatpush1.bf16.msra.mxu0 0
        %3503 = vmatprep.subr.bf16.mxu0 0
        %3504 = vmatpush1.bf16.msra.mxu0 0
        %3505 = vmatprep.subr.bf16.mxu0 0
        %3506 = vmatpush1.bf16.msra.mxu0 0
        %3507 = vmatprep.subr.bf16.mxu0 0
        %3508 = vmatpush1.bf16.msra.mxu0 0
        %3509 = vmatprep.subr.bf16.mxu0 0
        %3510 = vmatpush1.bf16.msra.mxu0 0
        %3511 = vmatprep.subr.bf16.mxu0 0
        %3512 = vmatpush1.bf16.msra.mxu0 0
        %3513 = vmatprep.mubr.bf16.mxu0 0
        %3514 = vmatmul.mubr.bf16.gmra.mrb[0].mxu0 %v3479
        %v3515 = vpop.f32.mrb[0].mxu0
        %v3516 = vadd.f32 %v3471, %v3515
        %v3517 = vpop.f32.mrb[0].mxu0
        %v3518 = vpop.f32.mrb[0].mxu0
        %v3519 = vpop.f32.mrb[0].mxu0
        %3520 = vdwg.mxu0
        %v3521 = vxor.u32 %v3516, 2147483648
        %v3522 = vmul.f32 %v3521, 1.442695
        %v3523 = vpow.pop %v3522
        %v3524 = vadd.f32 %v3523, 1.0
        %v3525 = vrcp.pop %v3524
        %v3526 = vmul.f32 1.0, %v3525
        %v3527 = vpack.c.bf16 %v3526, %v3526
        %v3528 = vld [vmem:[%s11] sm:$0xff]
        %v3529 = vld [vmem:[%s11 + $0x8] sm:$0xff]
        %v3530 = vld [vmem:[%s11 + $0x10] sm:$0xff]
        %v3531 = vld [vmem:[%s11 + $0x18] sm:$0xff]
        %v3532 = vld [vmem:[%s11 + $0x20] sm:$0xff]
        %v3533 = vld [vmem:[%s11 + $0x28] sm:$0xff]
        %v3534 = vld [vmem:[%s11 + $0x30] sm:$0xff]
        %v3535 = vld [vmem:[%s11 + $0x38] sm:$0xff]
        %v3544 = vunpack.c.l.b16 %v3528
        %v3545 = vunpack.c.h.b16 %v3528
        %v3546 = vunpack.c.l.b16 %v3529
        %v3547 = vunpack.c.h.b16 %v3529
        %v3548 = vunpack.c.l.b16 %v3530
        %v3549 = vunpack.c.h.b16 %v3530
        %v3550 = vunpack.c.l.b16 %v3531
        %v3551 = vunpack.c.h.b16 %v3531
        %v3552 = vunpack.c.l.b16 %v3532
        %v3553 = vunpack.c.h.b16 %v3532
        %v3554 = vunpack.c.l.b16 %v3533
        %v3555 = vunpack.c.h.b16 %v3533
        %v3556 = vunpack.c.l.b16 %v3534
        %v3557 = vunpack.c.h.b16 %v3534
        %v3558 = vunpack.c.l.b16 %v3535
        %v3559 = vunpack.c.h.b16 %v3535
        %v3560 = vpack.c.b16 %v3548, %v3544
        %v3561 = vpack.c.b16 %v3549, %v3545
        %v3562 = vpack.c.b16 %v3550, %v3546
        %v3563 = vpack.c.b16 %v3551, %v3547
        %v3564 = vpack.c.b16 %v3556, %v3552
        %v3565 = vpack.c.b16 %v3557, %v3553
        %v3566 = vpack.c.b16 %v3558, %v3554
        %v3567 = vpack.c.b16 %v3559, %v3555
        %v3577 = vsel %vm1931, %v3527, 0
        %3579 = vmatprep.subr.bf16.mxu0 %v3561
        %3580 = vmatpush1.bf16.msra.mxu0 %v3560
        %3581 = vmatprep.subr.bf16.mxu0 %v3565
        %3582 = vmatpush1.bf16.msra.mxu0 %v3564
        %3583 = vmatprep.subr.bf16.mxu0 0
        %3584 = vmatpush1.bf16.msra.mxu0 0
        %3585 = vmatprep.subr.bf16.mxu0 0
        %3586 = vmatpush1.bf16.msra.mxu0 0
        %3587 = vmatprep.subr.bf16.mxu0 0
        %3588 = vmatpush1.bf16.msra.mxu0 0
        %3589 = vmatprep.subr.bf16.mxu0 0
        %3590 = vmatpush1.bf16.msra.mxu0 0
        %3591 = vmatprep.subr.bf16.mxu0 0
        %3592 = vmatpush1.bf16.msra.mxu0 0
        %3593 = vmatprep.subr.bf16.mxu0 0
        %3594 = vmatpush1.bf16.msra.mxu0 0
        %3595 = vmatprep.subr.bf16.mxu0 0
        %3596 = vmatpush1.bf16.msra.mxu0 0
        %3597 = vmatprep.subr.bf16.mxu0 0
        %3598 = vmatpush1.bf16.msra.mxu0 0
        %3599 = vmatprep.subr.bf16.mxu0 0
        %3600 = vmatpush1.bf16.msra.mxu0 0
        %3601 = vmatprep.subr.bf16.mxu0 0
        %3602 = vmatpush1.bf16.msra.mxu0 0
        %3603 = vmatprep.subr.bf16.mxu0 0
        %3604 = vmatpush1.bf16.msra.mxu0 0
        %3605 = vmatprep.subr.bf16.mxu0 0
        %3606 = vmatpush1.bf16.msra.mxu0 0
        %3607 = vmatprep.subr.bf16.mxu0 0
        %3608 = vmatpush1.bf16.msra.mxu0 0
        %3609 = vmatprep.subr.bf16.mxu0 0
        %3610 = vmatpush1.bf16.msra.mxu0 0
        %3611 = vmatprep.mubr.bf16.mxu0 0
        %3612 = vmatmul.mubr.bf16.gmra.mrb[0].mxu0 %v3577
        %v3613 = vpop.f32.mrb[0].mxu0
        %v3614 = vadd.f32 0.0, %v3613
        %v3615 = vpop.f32.mrb[0].mxu0
        %v3616 = vadd.f32 0.0, %v3615
        %v3617 = vpop.f32.mrb[0].mxu0
        %v3618 = vpop.f32.mrb[0].mxu0
        %3619 = vdwg.mxu0
        %3620 = vmatprep.subr.bf16.mxu0 %v3563
        %3621 = vmatpush1.bf16.msra.mxu0 %v3562
        %3622 = vmatprep.subr.bf16.mxu0 %v3567
        %3623 = vmatpush1.bf16.msra.mxu0 %v3566
        %3624 = vmatprep.subr.bf16.mxu0 0
        %3625 = vmatpush1.bf16.msra.mxu0 0
        %3626 = vmatprep.subr.bf16.mxu0 0
        %3627 = vmatpush1.bf16.msra.mxu0 0
        %3628 = vmatprep.subr.bf16.mxu0 0
        %3629 = vmatpush1.bf16.msra.mxu0 0
        %3630 = vmatprep.subr.bf16.mxu0 0
        %3631 = vmatpush1.bf16.msra.mxu0 0
        %3632 = vmatprep.subr.bf16.mxu0 0
        %3633 = vmatpush1.bf16.msra.mxu0 0
        %3634 = vmatprep.subr.bf16.mxu0 0
        %3635 = vmatpush1.bf16.msra.mxu0 0
        %3636 = vmatprep.subr.bf16.mxu0 0
        %3637 = vmatpush1.bf16.msra.mxu0 0
        %3638 = vmatprep.subr.bf16.mxu0 0
        %3639 = vmatpush1.bf16.msra.mxu0 0
        %3640 = vmatprep.subr.bf16.mxu0 0
        %3641 = vmatpush1.bf16.msra.mxu0 0
        %3642 = vmatprep.subr.bf16.mxu0 0
        %3643 = vmatpush1.bf16.msra.mxu0 0
        %3644 = vmatprep.subr.bf16.mxu0 0
        %3645 = vmatpush1.bf16.msra.mxu0 0
        %3646 = vmatprep.subr.bf16.mxu0 0
        %3647 = vmatpush1.bf16.msra.mxu0 0
        %3648 = vmatprep.subr.bf16.mxu0 0
        %3649 = vmatpush1.bf16.msra.mxu0 0
        %3650 = vmatprep.subr.bf16.mxu0 0
        %3651 = vmatpush1.bf16.msra.mxu0 0
        %3652 = vmatprep.mubr.bf16.mxu0 0
        %3653 = vmatmul.mubr.bf16.gmra.mrb[0].mxu0 %v3577
        %v3654 = vpop.f32.mrb[0].mxu0
        %v3655 = vadd.f32 0.0, %v3654
        %v3656 = vpop.f32.mrb[0].mxu0
        %v3657 = vadd.f32 0.0, %v3656
        %v3658 = vpop.f32.mrb[0].mxu0
        %v3659 = vpop.f32.mrb[0].mxu0
        %3660 = vdwg.mxu0
        %v3661 = vlaneseq
        %v3662 = vshrl.u32 %v3661, 7
        %v3663 = vsub.s32 0, %v3662
        %v3664 = vrot.slane %v3614, %v3663
        %v3665 = vlaneseq
        %v3666 = vshrl.u32 %v3665, 7
        %v3667 = vsub.s32 0, %v3666
        %v3668 = vrot.slane %v3616, %v3667
        %v3669 = vlaneseq
        %v3670 = vshrl.u32 %v3669, 7
        %v3671 = vsub.s32 0, %v3670
        %v3672 = vrot.slane %v3655, %v3671
        %v3673 = vlaneseq
        %v3674 = vshrl.u32 %v3673, 7
        %v3675 = vsub.s32 0, %v3674
        %v3676 = vrot.slane %v3657, %v3675
        %v3677 = vmul.f32 %v2963, %v3664
        %v3678 = vmul.f32 %v2964, %v3668
        %v3679 = vmul.f32 %v2965, %v3672
        %v3680 = vmul.f32 %v2966, %v3676
        %v3681 = vmul.f32 %v2967, %v3664
        %v3682 = vmul.f32 %v2968, %v3668
        %v3683 = vmul.f32 %v2969, %v3672
        %v3684 = vmul.f32 %v2970, %v3676
        %v3685 = vpack.c.bf16 %v3681, %v3677
        %v3686 = vpack.c.bf16 %v3682, %v3678
        %v3687 = vpack.c.bf16 %v3683, %v3679
        %v3688 = vpack.c.bf16 %v3684, %v3680
        %v3689 = vld [vmem:[%s13] sm:$0xf]
        %v3690 = vld [vmem:[%s13 + $0x4] sm:$0xf]
        %v3691 = vld [vmem:[%s13 + $0x8] sm:$0xf]
        %v3692 = vld [vmem:[%s13 + $0xc] sm:$0xf]
        %v3693 = vld [vmem:[%s13 + $0x10] sm:$0xf]
        %v3694 = vld [vmem:[%s13 + $0x14] sm:$0xf]
        %v3695 = vld [vmem:[%s13 + $0x18] sm:$0xf]
        %v3696 = vld [vmem:[%s13 + $0x1c] sm:$0xf]
        %v3697 = vld [vmem:[%s13 + $0x20] sm:$0xf]
        %v3698 = vld [vmem:[%s13 + $0x24] sm:$0xf]
        %v3699 = vld [vmem:[%s13 + $0x28] sm:$0xf]
        %v3700 = vld [vmem:[%s13 + $0x2c] sm:$0xf]
        %v3701 = vld [vmem:[%s13 + $0x30] sm:$0xf]
        %v3702 = vld [vmem:[%s13 + $0x34] sm:$0xf]
        %v3703 = vld [vmem:[%s13 + $0x38] sm:$0xf]
        %v3704 = vld [vmem:[%s13 + $0x3c] sm:$0xf]
        %v3705 = vld [vmem:[%s13 + $0x40] sm:$0xf]
        %v3706 = vld [vmem:[%s13 + $0x44] sm:$0xf]
        %v3707 = vld [vmem:[%s13 + $0x48] sm:$0xf]
        %v3708 = vld [vmem:[%s13 + $0x4c] sm:$0xf]
        %v3709 = vld [vmem:[%s13 + $0x50] sm:$0xf]
        %v3710 = vld [vmem:[%s13 + $0x54] sm:$0xf]
        %v3711 = vld [vmem:[%s13 + $0x58] sm:$0xf]
        %v3712 = vld [vmem:[%s13 + $0x5c] sm:$0xf]
        %v3713 = vld [vmem:[%s13 + $0x60] sm:$0xf]
        %v3714 = vld [vmem:[%s13 + $0x64] sm:$0xf]
        %v3715 = vld [vmem:[%s13 + $0x68] sm:$0xf]
        %v3716 = vld [vmem:[%s13 + $0x6c] sm:$0xf]
        %v3717 = vld [vmem:[%s13 + $0x70] sm:$0xf]
        %v3718 = vld [vmem:[%s13 + $0x74] sm:$0xf]
        %v3719 = vld [vmem:[%s13 + $0x78] sm:$0xf]
        %v3720 = vld [vmem:[%s13 + $0x7c] sm:$0xf]
        %v3721 = vld [vmem:[%s13 + $0x80] sm:$0xf]
        %v3722 = vld [vmem:[%s13 + $0x84] sm:$0xf]
        %v3723 = vld [vmem:[%s13 + $0x88] sm:$0xf]
        %v3724 = vld [vmem:[%s13 + $0x8c] sm:$0xf]
        %v3725 = vld [vmem:[%s13 + $0x90] sm:$0xf]
        %v3726 = vld [vmem:[%s13 + $0x94] sm:$0xf]
        %v3727 = vld [vmem:[%s13 + $0x98] sm:$0xf]
        %v3728 = vld [vmem:[%s13 + $0x9c] sm:$0xf]
        %v3729 = vld [vmem:[%s13 + $0xa0] sm:$0xf]
        %v3730 = vld [vmem:[%s13 + $0xa4] sm:$0xf]
        %v3731 = vld [vmem:[%s13 + $0xa8] sm:$0xf]
        %v3732 = vld [vmem:[%s13 + $0xac] sm:$0xf]
        %v3733 = vld [vmem:[%s13 + $0xb0] sm:$0xf]
        %v3734 = vld [vmem:[%s13 + $0xb4] sm:$0xf]
        %v3735 = vld [vmem:[%s13 + $0xb8] sm:$0xf]
        %v3736 = vld [vmem:[%s13 + $0xbc] sm:$0xf]
        %v3737 = vld [vmem:[%s13 + $0xc0] sm:$0xf]
        %v3738 = vld [vmem:[%s13 + $0xc4] sm:$0xf]
        %v3739 = vld [vmem:[%s13 + $0xc8] sm:$0xf]
        %v3740 = vld [vmem:[%s13 + $0xcc] sm:$0xf]
        %v3741 = vld [vmem:[%s13 + $0xd0] sm:$0xf]
        %v3742 = vld [vmem:[%s13 + $0xd4] sm:$0xf]
        %v3743 = vld [vmem:[%s13 + $0xd8] sm:$0xf]
        %v3744 = vld [vmem:[%s13 + $0xdc] sm:$0xf]
        %v3745 = vld [vmem:[%s13 + $0xe0] sm:$0xf]
        %v3746 = vld [vmem:[%s13 + $0xe4] sm:$0xf]
        %v3747 = vld [vmem:[%s13 + $0xe8] sm:$0xf]
        %v3748 = vld [vmem:[%s13 + $0xec] sm:$0xf]
        %v3749 = vld [vmem:[%s13 + $0xf0] sm:$0xf]
        %v3750 = vld [vmem:[%s13 + $0xf4] sm:$0xf]
        %v3751 = vld [vmem:[%s13 + $0xf8] sm:$0xf]
        %v3752 = vld [vmem:[%s13 + $0xfc] sm:$0xf]
        %v3817 = vunpack.c.l.b16 %v3689
        %v3818 = vunpack.c.l.b16 %v3690
        %v3819 = vunpack.c.l.b16 %v3691
        %v3820 = vunpack.c.l.b16 %v3692
        %v3821 = vunpack.c.l.b16 %v3693
        %v3822 = vunpack.c.l.b16 %v3694
        %v3823 = vunpack.c.l.b16 %v3695
        %v3824 = vunpack.c.l.b16 %v3696
        %v3825 = vunpack.c.l.b16 %v3697
        %v3826 = vunpack.c.l.b16 %v3698
        %v3827 = vunpack.c.l.b16 %v3699
        %v3828 = vunpack.c.l.b16 %v3700
        %v3829 = vunpack.c.l.b16 %v3701
        %v3830 = vunpack.c.l.b16 %v3702
        %v3831 = vunpack.c.l.b16 %v3703
        %v3832 = vunpack.c.l.b16 %v3704
        %v3833 = vunpack.c.l.b16 %v3705
        %v3834 = vunpack.c.l.b16 %v3706
        %v3835 = vunpack.c.l.b16 %v3707
        %v3836 = vunpack.c.l.b16 %v3708
        %v3837 = vunpack.c.l.b16 %v3709
        %v3838 = vunpack.c.l.b16 %v3710
        %v3839 = vunpack.c.l.b16 %v3711
        %v3840 = vunpack.c.l.b16 %v3712
        %v3841 = vunpack.c.l.b16 %v3713
        %v3842 = vunpack.c.l.b16 %v3714
        %v3843 = vunpack.c.l.b16 %v3715
        %v3844 = vunpack.c.l.b16 %v3716
        %v3845 = vunpack.c.l.b16 %v3717
        %v3846 = vunpack.c.l.b16 %v3718
        %v3847 = vunpack.c.l.b16 %v3719
        %v3848 = vunpack.c.l.b16 %v3720
        %v3849 = vunpack.c.l.b16 %v3721
        %v3850 = vunpack.c.l.b16 %v3722
        %v3851 = vunpack.c.l.b16 %v3723
        %v3852 = vunpack.c.l.b16 %v3724
        %v3853 = vunpack.c.l.b16 %v3725
        %v3854 = vunpack.c.l.b16 %v3726
        %v3855 = vunpack.c.l.b16 %v3727
        %v3856 = vunpack.c.l.b16 %v3728
        %v3857 = vunpack.c.l.b16 %v3729
        %v3858 = vunpack.c.l.b16 %v3730
        %v3859 = vunpack.c.l.b16 %v3731
        %v3860 = vunpack.c.l.b16 %v3732
        %v3861 = vunpack.c.l.b16 %v3733
        %v3862 = vunpack.c.l.b16 %v3734
        %v3863 = vunpack.c.l.b16 %v3735
        %v3864 = vunpack.c.l.b16 %v3736
        %v3865 = vunpack.c.l.b16 %v3737
        %v3866 = vunpack.c.l.b16 %v3738
        %v3867 = vunpack.c.l.b16 %v3739
        %v3868 = vunpack.c.l.b16 %v3740
        %v3869 = vunpack.c.l.b16 %v3741
        %v3870 = vunpack.c.l.b16 %v3742
        %v3871 = vunpack.c.l.b16 %v3743
        %v3872 = vunpack.c.l.b16 %v3744
        %v3873 = vunpack.c.l.b16 %v3745
        %v3874 = vunpack.c.l.b16 %v3746
        %v3875 = vunpack.c.l.b16 %v3747
        %v3876 = vunpack.c.l.b16 %v3748
        %v3877 = vunpack.c.l.b16 %v3749
        %v3878 = vunpack.c.l.b16 %v3750
        %v3879 = vunpack.c.l.b16 %v3751
        %v3880 = vunpack.c.l.b16 %v3752
        %v3881 = vpack.c.b16 %v3818, %v3817
        %v3882 = vpack.c.b16 %v3820, %v3819
        %v3883 = vpack.c.b16 %v3822, %v3821
        %v3884 = vpack.c.b16 %v3824, %v3823
        %v3885 = vpack.c.b16 %v3826, %v3825
        %v3886 = vpack.c.b16 %v3828, %v3827
        %v3887 = vpack.c.b16 %v3830, %v3829
        %v3888 = vpack.c.b16 %v3832, %v3831
        %v3889 = vpack.c.b16 %v3834, %v3833
        %v3890 = vpack.c.b16 %v3836, %v3835
        %v3891 = vpack.c.b16 %v3838, %v3837
        %v3892 = vpack.c.b16 %v3840, %v3839
        %v3893 = vpack.c.b16 %v3842, %v3841
        %v3894 = vpack.c.b16 %v3844, %v3843
        %v3895 = vpack.c.b16 %v3846, %v3845
        %v3896 = vpack.c.b16 %v3848, %v3847
        %v3897 = vpack.c.b16 %v3850, %v3849
        %v3898 = vpack.c.b16 %v3852, %v3851
        %v3899 = vpack.c.b16 %v3854, %v3853
        %v3900 = vpack.c.b16 %v3856, %v3855
        %v3901 = vpack.c.b16 %v3858, %v3857
        %v3902 = vpack.c.b16 %v3860, %v3859
        %v3903 = vpack.c.b16 %v3862, %v3861
        %v3904 = vpack.c.b16 %v3864, %v3863
        %v3905 = vpack.c.b16 %v3866, %v3865
        %v3906 = vpack.c.b16 %v3868, %v3867
        %v3907 = vpack.c.b16 %v3870, %v3869
        %v3908 = vpack.c.b16 %v3872, %v3871
        %v3909 = vpack.c.b16 %v3874, %v3873
        %v3910 = vpack.c.b16 %v3876, %v3875
        %v3911 = vpack.c.b16 %v3878, %v3877
        %v3912 = vpack.c.b16 %v3880, %v3879
        %3945 = vmatprep.subr.bf16.mxu0 0
        %3946 = vmatpush1.bf16.msra.mxu0 %v3881
        %3947 = vmatprep.subr.bf16.mxu0 0
        %3948 = vmatpush1.bf16.msra.mxu0 %v3882
        %3949 = vmatprep.subr.bf16.mxu0 0
        %3950 = vmatpush1.bf16.msra.mxu0 %v3883
        %3951 = vmatprep.subr.bf16.mxu0 0
        %3952 = vmatpush1.bf16.msra.mxu0 %v3884
        %3953 = vmatprep.subr.bf16.mxu0 0
        %3954 = vmatpush1.bf16.msra.mxu0 %v3885
        %3955 = vmatprep.subr.bf16.mxu0 0
        %3956 = vmatpush1.bf16.msra.mxu0 %v3886
        %3957 = vmatprep.subr.bf16.mxu0 0
        %3958 = vmatpush1.bf16.msra.mxu0 %v3887
        %3959 = vmatprep.subr.bf16.mxu0 0
        %3960 = vmatpush1.bf16.msra.mxu0 %v3888
        %3961 = vmatprep.subr.bf16.mxu0 0
        %3962 = vmatpush1.bf16.msra.mxu0 %v3889
        %3963 = vmatprep.subr.bf16.mxu0 0
        %3964 = vmatpush1.bf16.msra.mxu0 %v3890
        %3965 = vmatprep.subr.bf16.mxu0 0
        %3966 = vmatpush1.bf16.msra.mxu0 %v3891
        %3967 = vmatprep.subr.bf16.mxu0 0
        %3968 = vmatpush1.bf16.msra.mxu0 %v3892
        %3969 = vmatprep.subr.bf16.mxu0 0
        %3970 = vmatpush1.bf16.msra.mxu0 %v3893
        %3971 = vmatprep.subr.bf16.mxu0 0
        %3972 = vmatpush1.bf16.msra.mxu0 %v3894
        %3973 = vmatprep.subr.bf16.mxu0 0
        %3974 = vmatpush1.bf16.msra.mxu0 %v3895
        %3975 = vmatprep.subr.bf16.mxu0 0
        %3976 = vmatpush1.bf16.msra.mxu0 %v3896
        %3977 = vmatprep.mubr.bf16.mxu0 %v3686
        %3978 = vmatmul.mubr.bf16.gmra.mrb[0].mxu0 %v3685
        %v3979 = vpop.f32.mrb[0].mxu0
        %v3980 = vadd.f32 0.0, %v3979
        %v3981 = vpop.f32.mrb[0].mxu0
        %v3982 = vpop.f32.mrb[0].mxu0
        %v3983 = vadd.f32 0.0, %v3982
        %v3984 = vpop.f32.mrb[0].mxu0
        %3985 = vdwg.mxu0
        %3986 = vmatprep.subr.bf16.mxu0 0
        %3987 = vmatpush1.bf16.msra.mxu0 %v3897
        %3988 = vmatprep.subr.bf16.mxu0 0
        %3989 = vmatpush1.bf16.msra.mxu0 %v3898
        %3990 = vmatprep.subr.bf16.mxu0 0
        %3991 = vmatpush1.bf16.msra.mxu0 %v3899
        %3992 = vmatprep.subr.bf16.mxu0 0
        %3993 = vmatpush1.bf16.msra.mxu0 %v3900
        %3994 = vmatprep.subr.bf16.mxu0 0
        %3995 = vmatpush1.bf16.msra.mxu0 %v3901
        %3996 = vmatprep.subr.bf16.mxu0 0
        %3997 = vmatpush1.bf16.msra.mxu0 %v3902
        %3998 = vmatprep.subr.bf16.mxu0 0
        %3999 = vmatpush1.bf16.msra.mxu0 %v3903
        %4000 = vmatprep.subr.bf16.mxu0 0
        %4001 = vmatpush1.bf16.msra.mxu0 %v3904
        %4002 = vmatprep.subr.bf16.mxu0 0
        %4003 = vmatpush1.bf16.msra.mxu0 %v3905
        %4004 = vmatprep.subr.bf16.mxu0 0
        %4005 = vmatpush1.bf16.msra.mxu0 %v3906
        %4006 = vmatprep.subr.bf16.mxu0 0
        %4007 = vmatpush1.bf16.msra.mxu0 %v3907
        %4008 = vmatprep.subr.bf16.mxu0 0
        %4009 = vmatpush1.bf16.msra.mxu0 %v3908
        %4010 = vmatprep.subr.bf16.mxu0 0
        %4011 = vmatpush1.bf16.msra.mxu0 %v3909
        %4012 = vmatprep.subr.bf16.mxu0 0
        %4013 = vmatpush1.bf16.msra.mxu0 %v3910
        %4014 = vmatprep.subr.bf16.mxu0 0
        %4015 = vmatpush1.bf16.msra.mxu0 %v3911
        %4016 = vmatprep.subr.bf16.mxu0 0
        %4017 = vmatpush1.bf16.msra.mxu0 %v3912
        %4018 = vmatprep.mubr.bf16.mxu0 %v3688
        %4019 = vmatmul.mubr.bf16.gmra.mrb[0].mxu0 %v3687
        %v4020 = vpop.f32.mrb[0].mxu0
        %v4021 = vadd.f32 %v3980, %v4020
        %v4022 = vpop.f32.mrb[0].mxu0
        %v4023 = vpop.f32.mrb[0].mxu0
        %v4024 = vadd.f32 %v3983, %v4023
        %v4025 = vpop.f32.mrb[0].mxu0
        %4026 = vdwg.mxu0
        %v4027 = vld [vmem:[%s14] sm:$0x1]
        %v4029 = vlaneseq
        %v4030 = vshrl.u32 %v4029, 7
        %v4031 = vsub.s32 0, %v4030
        %v4032 = vrot.slane %v4027, %v4031
        %v4034 = vmul.f32 %v4021, %v4032
        %v4035 = vmul.f32 %v4024, %v4032
        %v4036 = vld [vmem:[%s15] sm:$0x1]
        %v4038 = vlaneseq
        %v4039 = vshrl.u32 %v4038, 7
        %v4040 = vsub.s32 0, %v4039
        %v4041 = vrot.slane %v4036, %v4040
        %v4043 = vadd.f32 %v4034, %v4041
        %v4044 = vadd.f32 %v4035, %v4041
        %4045 = vst [vmem:[%s514] sm:$0xff] %v4043
        %4046 = vst [vmem:[%s514 + $0x8] sm:$0xff] %v4044
        %s4047 = sand.u32 %s379, 1
        %s4048 = scalar_lea.sflag [#allocation3], %s4047
        %s4049 = sand.u32 %s379, 1
        %s4050 = smul.addr %s4049, 16
        %s4051 = scalar_lea.vmem [#allocation2], %s4050
        // Predicated region
        $region85: #{tpu_custom_call.1} parent=83 // pred_check
          %p4052 = pneg %p389
        $region86: #{tpu_custom_call.1} parent=83 // pred_check_branch
          %4054 = sbr.rel (%p4052) target = $region88
        $region87: #{tpu_custom_call.1} parent=83 // pred_region
          %s4056 = ssub.s32 256, 256
          %4057 = vsyncadd %s4048, %s4056
          %s4058 = smul.addr %s30, 2
          %s4059 = smul.addr %s4058, 128
          %s4060 = scalar_lea.hbm %s16, %s4059
          %s4061 = sshll.u32 %s4051, 4
          %s4062 = int_to_ptr.vmem [resolvable:$true] %s4061
          %4067 = dma.vmem_to_hbm [thread:$0]  %s4062, 256, %s4060, %s4048, 128, 128, 8
        $region88: #{tpu_custom_call.1} parent=83 // pred_fallthru
          _
      $region84: #{tpu_custom_call.1} parent=5 // pred_fallthru
        _
      %p4068 = scmp.le.s32.totalorder 2, %s25
      // Predicated region
      $region89: #{tpu_custom_call.1} parent=5 // pred_check
        %p4069 = pneg %p4068
      $region90: #{tpu_custom_call.1} parent=5 // pred_check_branch
        %4071 = sbr.rel (%p4069) target = $region92
      $region91: #{tpu_custom_call.1} parent=5 // pred_region
        %s4072 = ssub.s32 %s25, 2
        // Predicated region
        $region93: #{tpu_custom_call.1} parent=91 // pred_check
          %p4073 = pneg %p395
        $region94: #{tpu_custom_call.1} parent=91 // pred_check_branch
          %4075 = sbr.rel (%p4073) target = $region96
        $region95: #{tpu_custom_call.1} parent=91 // pred_region
          %s4076 = sand.u32 %s380, 1
          %s4077 = scalar_lea.sflag [#allocation3], %s4076
          %s4078 = sand.u32 %s380, 1
          %s4079 = smul.addr %s4078, 16
          %s4080 = scalar_lea.vmem [#allocation2], %s4079
          %4081 = dma.done %s4077, 256
        $region96: #{tpu_custom_call.1} parent=91 // pred_fallthru
          _
      $region92: #{tpu_custom_call.1} parent=5 // pred_fallthru
        _
    $region6: #{tpu_custom_call.1} parent=1 // loop_footer
      %s29 = sadd.s32 1, %s25
    $region7: #{tpu_custom_call.1} parent=1 // loop_footer_branch
      %24 = sbr.rel target = $region3
    $region8: #{tpu_custom_call.1} parent=1 // loop_exit
      _
    %4082 = vsyncpa [#allocation3], 1
    %s4083 = scalar_lea.sflag [#allocation3], 1
    %4084 = vsyncpa %s4083, 1

</llo_original>
